<compile_context>
chip_gen: v5e
topology: v5e:2x2
jax: 0.10.0
libtpu: 0.0.40
codegen_flags: <defaults>
</compile_context>

<pallas_src>
import jax
import jax.numpy as jnp
import numpy as np
from jax.experimental import pallas as pl
from jax.experimental.pallas import tpu as pltpu

N_Z = 32            # latent size (module spec)
D_IN = 28 * 28      # 784
D_H1 = 14 * 28      # 392
D_H2 = 14 * 14      # 196

# Lane/sublane-aligned (zero-padded) internal sizes used inside the kernel.
N_ZP = 128          # 32  -> 128  (1 x 128 lanes)
D_H1P = 512         # 392 -> 512  (4 x 128 lanes)
D_H2P = 256         # 196 -> 256  (2 x 128 lanes; 196 is not even sublane-aligned)


def _round_up(n, m):
    return ((n + m - 1) // m) * m


def _resident_spec(shape):
    """Constant-index, whole-array spec for a VMEM-resident parameter.

    Uses single-buffering (pl.Buffered(1)) when available so resident weights
    don't pay for a useless second pipeline buffer; falls back to the default
    (double-buffered) pipelining on JAX versions without pipeline_mode.
    """
    idx = lambda i: (0, 0)
    if hasattr(pl, "Buffered"):
        try:
            return pl.BlockSpec(shape, idx, pipeline_mode=pl.Buffered(1))
        except TypeError:
            pass
    return pl.BlockSpec(shape, idx)


def _choose_tb(B, tb):
    """Pick the batch tile.

    Preference order: (1) TB divides B exactly (no padded rows, no post-kernel
    batch-slice copy of the (B, 784) output), (2) >=2 grid steps when the batch
    allows it (pipelining / v7x megacore), (3) as large as possible (<= tb).
    """
    B8 = _round_up(max(B, 1), 8)
    cap = min(tb, max(8, _round_up(pl.cdiv(B8, 2), 8)))
    # Prefer the largest multiple-of-8 tile <= cap that divides B exactly.
    for cand in range(cap, 7, -8):
        if B % cand == 0:
            return cand
    return cap


def _ae_forward_kernel(x_ref,
                       w1_ref, b1_ref, w2_ref, b2_ref, w3_ref, b3_ref,
                       w4_ref, b4_ref, w5_ref, b5_ref, w6_ref, b6_ref,
                       enc_ref, out_ref):
    x = x_ref[...]                                             # (TB, 784)

    # ---- input normalization ----
    sumsq = jnp.sum(x * x, axis=1, keepdims=True)              # (TB, 1)
    x_norm = jnp.sqrt(sumsq)                                   # kept for rescale (matches reference)
    inv_norm = jax.lax.rsqrt(sumsq)                            # EUP rsqrt
    xh = x * inv_norm

    # ---- encoder: 784 -> 512(pad of 392) -> 256(pad of 196) -> 128(pad of 32) ----
    h = jnp.tanh(jnp.dot(xh, w1_ref[...],
                         preferred_element_type=jnp.float32) + b1_ref[...])
    h = jnp.tanh(jnp.dot(h, w2_ref[...],
                         preferred_element_type=jnp.float32) + b2_ref[...])
    z = jnp.dot(h, w3_ref[...],
                preferred_element_type=jnp.float32) + b3_ref[...]   # (TB, 128)
    z = z * jax.lax.rsqrt(jnp.sum(z * z, axis=1, keepdims=True))    # L2-normalize latent
    enc_ref[...] = z                                                # lane-dense (128) store

    # ---- decoder: 128 -> 256 -> 512 -> 784 ----
    d = jnp.tanh(jnp.dot(z, w4_ref[...],
                         preferred_element_type=jnp.float32) + b4_ref[...])
    d = jnp.tanh(jnp.dot(d, w5_ref[...],
                         preferred_element_type=jnp.float32) + b5_ref[...])
    d = jnp.dot(d, w6_ref[...],
                preferred_element_type=jnp.float32) + b6_ref[...]   # (TB, 784)
    d = d * jax.lax.rsqrt(jnp.sum(d * d, axis=1, keepdims=True))    # L2-normalize output

    # rescale by input norm
    out_ref[...] = d * x_norm


def mnist_ae_forward(x, params, *, tb=512):
    """x: (B, 784) f32.  params: flat list [w1,b1,...,w6,b6] in original shapes.

    Returns (enc (B, N_Z), out (B, 784)).
    """
    w1, b1, w2, b2, w3, b3, w4, b4, w5, b5, w6, b6 = params

    # Zero-pad internal dims to lane/sublane-aligned sizes (numerically exact).
    def pad2(a, r, c):
        return jnp.pad(a, ((0, r - a.shape[0]), (0, c - a.shape[1])))

    padded_params = [
        pad2(w1, D_IN, D_H1P),  pad2(b1, 1, D_H1P),
        pad2(w2, D_H1P, D_H2P), pad2(b2, 1, D_H2P),
        pad2(w3, D_H2P, N_ZP),  pad2(b3, 1, N_ZP),
        pad2(w4, N_ZP, D_H2P),  pad2(b4, 1, D_H2P),
        pad2(w5, D_H2P, D_H1P), pad2(b5, 1, D_H1P),
        pad2(w6, D_H1P, D_IN),  b6,
    ]

    B = x.shape[0]
    TB = _choose_tb(B, tb)
    B_pad = _round_up(B, TB)
    if B_pad != B:
        # Pad with ones so padded rows don't divide by zero (they are discarded).
        x = jnp.pad(x, ((0, B_pad - B), (0, 0)), constant_values=1.0)

    grid = (B_pad // TB,)

    # Streamed tiles for x / enc / out; weights are VMEM-resident (constant
    # index_map + single buffer).
    param_specs = [_resident_spec(p.shape) for p in padded_params]
    in_specs = [pl.BlockSpec((TB, D_IN), lambda i: (i, 0))] + param_specs
    out_specs = (pl.BlockSpec((TB, N_ZP), lambda i: (i, 0)),
                 pl.BlockSpec((TB, D_IN), lambda i: (i, 0)))
    out_shapes = (jax.ShapeDtypeStruct((B_pad, N_ZP), jnp.float32),
                  jax.ShapeDtypeStruct((B_pad, D_IN), jnp.float32))

    flops_per_row = 2 * (D_IN * D_H1P + D_H1P * D_H2P + D_H2P * N_ZP
                         + N_ZP * D_H2P + D_H2P * D_H1P + D_H1P * D_IN)
    transc_per_row = 2 * (D_H1P + D_H2P) + 4
    param_bytes = sum(int(np.prod(p.shape)) * 4 for p in padded_params)
    cost = pl.CostEstimate(
        flops=B_pad * flops_per_row,
        transcendentals=B_pad * transc_per_row,
        bytes_accessed=B_pad * (2 * D_IN + N_ZP) * 4 + param_bytes,
    )

    enc_p, out_p = pl.pallas_call(
        _ae_forward_kernel,
        out_shape=out_shapes,
        grid=grid,
        in_specs=in_specs,
        out_specs=out_specs,
        compiler_params=pltpu.CompilerParams(
            dimension_semantics=("parallel",),      # megacore sharding on v7x
            vmem_limit_bytes=48 * 1024 * 1024,      # fits TB<=512 tiles + ~4.5 MB resident weights,
                                                    # within v7x's 64 MiB physical VMEM
        ),
        cost_estimate=cost,
    )(x, *padded_params)

    enc = enc_p[:B, :N_Z]                 # tiny (B x 32) slice
    out = out_p if B_pad == B else out_p[:B]   # avoid a full-output copy when TB | B
    return enc, out


def init_params(key):
    """Deterministic PyTorch-style init: U(-1/sqrt(fan_in), 1/sqrt(fan_in)).

    Weights stored as (in_features, out_features); biases as (1, out_features).
    """
    dims = [(D_IN, D_H1), (D_H1, D_H2), (D_H2, N_Z),
            (N_Z, D_H2), (D_H2, D_H1), (D_H1, D_IN)]
    params = []
    for (fan_in, fan_out) in dims:
        key, kw, kb = jax.random.split(key, 3)
        bound = 1.0 / np.sqrt(fan_in)
        w = jax.random.uniform(kw, (fan_in, fan_out), jnp.float32, -bound, bound)
        b = jax.random.uniform(kb, (1, fan_out), jnp.float32, -bound, bound)
        params += [w, b]
    return params


def reference_forward(x, params):
    """Pure-JAX reference matching the PyTorch module exactly."""
    w1, b1, w2, b2, w3, b3, w4, b4, w5, b5, w6, b6 = params
    x_norm = jnp.sqrt(jnp.sum(x * x, axis=1, keepdims=True))
    xh = x / x_norm
    h = jnp.tanh(xh @ w1 + b1)
    h = jnp.tanh(h @ w2 + b2)
    z = h @ w3 + b3
    z = z / jnp.sqrt(jnp.sum(z * z, axis=1, keepdims=True))
    d = jnp.tanh(z @ w4 + b4)
    d = jnp.tanh(d @ w5 + b5)
    d = d @ w6 + b6
    d = d / jnp.sqrt(jnp.sum(d * d, axis=1, keepdims=True))
    return z, d * x_norm


if __name__ == "__main__":
    key = jax.random.PRNGKey(0)
    key, kx = jax.random.split(key)
    B = 8
    x = jax.random.uniform(kx, (B, D_IN), jnp.float32, 0.0, 1.0)  # MNIST-like pixels

    params = init_params(key)

    fwd = jax.jit(mnist_ae_forward)
    enc, out = fwd(x, params)
    jax.block_until_ready((enc, out))

    enc_ref, out_ref = reference_forward(x, params)
    np.testing.assert_allclose(np.asarray(enc), np.asarray(enc_ref),
                               rtol=1e-5, atol=1e-5)
    np.testing.assert_allclose(np.asarray(out), np.asarray(out_ref),
                               rtol=1e-5, atol=1e-5)

    assert enc.shape == (B, N_Z) and out.shape == (B, D_IN)
    print("KERNEL_OK")
</pallas_src>

<mosaic_0001>
module attributes {stable_mosaic.version = 11 : i64} {
  func.func @_ae_forward_kernel(%arg0: i32, %arg1: memref<8x784xf32, #tpu.memory_space<vmem>>, %arg2: memref<784x512xf32, #tpu.memory_space<vmem>>, %arg3: memref<1x512xf32, #tpu.memory_space<vmem>>, %arg4: memref<512x256xf32, #tpu.memory_space<vmem>>, %arg5: memref<1x256xf32, #tpu.memory_space<vmem>>, %arg6: memref<256x128xf32, #tpu.memory_space<vmem>>, %arg7: memref<1x128xf32, #tpu.memory_space<vmem>>, %arg8: memref<128x256xf32, #tpu.memory_space<vmem>>, %arg9: memref<1x256xf32, #tpu.memory_space<vmem>>, %arg10: memref<256x512xf32, #tpu.memory_space<vmem>>, %arg11: memref<1x512xf32, #tpu.memory_space<vmem>>, %arg12: memref<512x784xf32, #tpu.memory_space<vmem>>, %arg13: memref<1x784xf32, #tpu.memory_space<vmem>>, %arg14: memref<8x128xf32, #tpu.memory_space<vmem>>, %arg15: memref<8x784xf32, #tpu.memory_space<vmem>>) attributes {dimension_semantics = [#tpu.dimension_semantics<parallel>], iteration_bounds = array<i64: 1>, scalar_prefetch = 0 : i64, scratch_operands = 0 : i64, tpu.core_type = #tpu.core_type<tc>, window_params = [{transform_indices = @transform_0, window_bounds = array<i64: 8, 784>}, {pipeline_mode = #tpu.pipeline_mode<synchronous>, transform_indices = @transform_1, window_bounds = array<i64: 784, 512>}, {pipeline_mode = #tpu.pipeline_mode<synchronous>, transform_indices = @transform_2, window_bounds = array<i64: 1, 512>}, {pipeline_mode = #tpu.pipeline_mode<synchronous>, transform_indices = @transform_3, window_bounds = array<i64: 512, 256>}, {pipeline_mode = #tpu.pipeline_mode<synchronous>, transform_indices = @transform_4, window_bounds = array<i64: 1, 256>}, {pipeline_mode = #tpu.pipeline_mode<synchronous>, transform_indices = @transform_5, window_bounds = array<i64: 256, 128>}, {pipeline_mode = #tpu.pipeline_mode<synchronous>, transform_indices = @transform_6, window_bounds = array<i64: 1, 128>}, {pipeline_mode = #tpu.pipeline_mode<synchronous>, transform_indices = @transform_7, window_bounds = array<i64: 128, 256>}, {pipeline_mode = #tpu.pipeline_mode<synchronous>, transform_indices = @transform_8, window_bounds = array<i64: 1, 256>}, {pipeline_mode = #tpu.pipeline_mode<synchronous>, transform_indices = @transform_9, window_bounds = array<i64: 256, 512>}, {pipeline_mode = #tpu.pipeline_mode<synchronous>, transform_indices = @transform_10, window_bounds = array<i64: 1, 512>}, {pipeline_mode = #tpu.pipeline_mode<synchronous>, transform_indices = @transform_11, window_bounds = array<i64: 512, 784>}, {pipeline_mode = #tpu.pipeline_mode<synchronous>, transform_indices = @transform_12, window_bounds = array<i64: 1, 784>}, {transform_indices = @transform_13, window_bounds = array<i64: 8, 128>}, {transform_indices = @transform_14, window_bounds = array<i64: 8, 784>}]} {
    %c0 = arith.constant 0 : index
    %c0_0 = arith.constant 0 : index
    %0 = vector.load %arg1[%c0, %c0_0] : memref<8x784xf32, #tpu.memory_space<vmem>>, vector<8x784xf32>
    %1 = arith.mulf %0, %0 : vector<8x784xf32>
    %cst = arith.constant dense<0.000000e+00> : vector<8xf32>
    %2 = vector.multi_reduction <add>, %1, %cst [1] : vector<8x784xf32> to vector<8xf32>
    %3 = vector.shape_cast %2 : vector<8xf32> to vector<8x1xf32>
    %4 = math.sqrt %3 : vector<8x1xf32>
    %5 = math.rsqrt %3 : vector<8x1xf32>
    %6 = vector.broadcast %5 : vector<8x1xf32> to vector<8x784xf32>
    %7 = arith.mulf %0, %6 : vector<8x784xf32>
    %c0_1 = arith.constant 0 : index
    %c0_2 = arith.constant 0 : index
    %8 = vector.load %arg2[%c0_1, %c0_2] : memref<784x512xf32, #tpu.memory_space<vmem>>, vector<784x512xf32>
    %cst_3 = arith.constant dense<0.000000e+00> : vector<8x512xf32>
    %9 = tpu.matmul %7, %8, %cst_3 {dimension_numbers = #tpu.dot_dimension_numbers<[1], [0], [0], [1], [0, 0, 1, 1], [], []>} : vector<8x784xf32>, vector<784x512xf32>, vector<8x512xf32> -> vector<8x512xf32>
    %c0_4 = arith.constant 0 : index
    %c0_5 = arith.constant 0 : index
    %10 = vector.load %arg3[%c0_4, %c0_5] : memref<1x512xf32, #tpu.memory_space<vmem>>, vector<1x512xf32>
    %11 = vector.broadcast %10 : vector<1x512xf32> to vector<8x512xf32>
    %12 = arith.addf %9, %11 : vector<8x512xf32>
    %13 = math.tanh %12 : vector<8x512xf32>
    %c0_6 = arith.constant 0 : index
    %c0_7 = arith.constant 0 : index
    %14 = vector.load %arg4[%c0_6, %c0_7] : memref<512x256xf32, #tpu.memory_space<vmem>>, vector<512x256xf32>
    %cst_8 = arith.constant dense<0.000000e+00> : vector<8x256xf32>
    %15 = tpu.matmul %13, %14, %cst_8 {dimension_numbers = #tpu.dot_dimension_numbers<[1], [0], [0], [1], [0, 0, 1, 1], [], []>} : vector<8x512xf32>, vector<512x256xf32>, vector<8x256xf32> -> vector<8x256xf32>
    %c0_9 = arith.constant 0 : index
    %c0_10 = arith.constant 0 : index
    %16 = vector.load %arg5[%c0_9, %c0_10] : memref<1x256xf32, #tpu.memory_space<vmem>>, vector<1x256xf32>
    %17 = vector.broadcast %16 : vector<1x256xf32> to vector<8x256xf32>
    %18 = arith.addf %15, %17 : vector<8x256xf32>
    %19 = math.tanh %18 : vector<8x256xf32>
    %c0_11 = arith.constant 0 : index
    %c0_12 = arith.constant 0 : index
    %20 = vector.load %arg6[%c0_11, %c0_12] : memref<256x128xf32, #tpu.memory_space<vmem>>, vector<256x128xf32>
    %cst_13 = arith.constant dense<0.000000e+00> : vector<8x128xf32>
    %21 = tpu.matmul %19, %20, %cst_13 {dimension_numbers = #tpu.dot_dimension_numbers<[1], [0], [0], [1], [0, 0, 1, 1], [], []>} : vector<8x256xf32>, vector<256x128xf32>, vector<8x128xf32> -> vector<8x128xf32>
    %c0_14 = arith.constant 0 : index
    %c0_15 = arith.constant 0 : index
    %22 = vector.load %arg7[%c0_14, %c0_15] : memref<1x128xf32, #tpu.memory_space<vmem>>, vector<1x128xf32>
    %23 = vector.broadcast %22 : vector<1x128xf32> to vector<8x128xf32>
    %24 = arith.addf %21, %23 : vector<8x128xf32>
    %25 = arith.mulf %24, %24 : vector<8x128xf32>
    %cst_16 = arith.constant dense<0.000000e+00> : vector<8xf32>
    %26 = vector.multi_reduction <add>, %25, %cst_16 [1] : vector<8x128xf32> to vector<8xf32>
    %27 = vector.shape_cast %26 : vector<8xf32> to vector<8x1xf32>
    %28 = math.rsqrt %27 : vector<8x1xf32>
    %29 = vector.broadcast %28 : vector<8x1xf32> to vector<8x128xf32>
    %30 = arith.mulf %24, %29 : vector<8x128xf32>
    %c0_17 = arith.constant 0 : index
    %c0_18 = arith.constant 0 : index
    %31 = vector.load %arg14[%c0_17, %c0_18] : memref<8x128xf32, #tpu.memory_space<vmem>>, vector<8x128xf32>
    tpu.vector_store %arg14[%c0_17, %c0_18], %30 {strides = array<i32>} : memref<8x128xf32, #tpu.memory_space<vmem>>, vector<8x128xf32>,
    %c0_19 = arith.constant 0 : index
    %c0_20 = arith.constant 0 : index
    %32 = vector.load %arg8[%c0_19, %c0_20] : memref<128x256xf32, #tpu.memory_space<vmem>>, vector<128x256xf32>
    %cst_21 = arith.constant dense<0.000000e+00> : vector<8x256xf32>
    %33 = tpu.matmul %30, %32, %cst_21 {dimension_numbers = #tpu.dot_dimension_numbers<[1], [0], [0], [1], [0, 0, 1, 1], [], []>} : vector<8x128xf32>, vector<128x256xf32>, vector<8x256xf32> -> vector<8x256xf32>
    %c0_22 = arith.constant 0 : index
    %c0_23 = arith.constant 0 : index
    %34 = vector.load %arg9[%c0_22, %c0_23] : memref<1x256xf32, #tpu.memory_space<vmem>>, vector<1x256xf32>
    %35 = vector.broadcast %34 : vector<1x256xf32> to vector<8x256xf32>
    %36 = arith.addf %33, %35 : vector<8x256xf32>
    %37 = math.tanh %36 : vector<8x256xf32>
    %c0_24 = arith.constant 0 : index
    %c0_25 = arith.constant 0 : index
    %38 = vector.load %arg10[%c0_24, %c0_25] : memref<256x512xf32, #tpu.memory_space<vmem>>, vector<256x512xf32>
    %cst_26 = arith.constant dense<0.000000e+00> : vector<8x512xf32>
    %39 = tpu.matmul %37, %38, %cst_26 {dimension_numbers = #tpu.dot_dimension_numbers<[1], [0], [0], [1], [0, 0, 1, 1], [], []>} : vector<8x256xf32>, vector<256x512xf32>, vector<8x512xf32> -> vector<8x512xf32>
    %c0_27 = arith.constant 0 : index
    %c0_28 = arith.constant 0 : index
    %40 = vector.load %arg11[%c0_27, %c0_28] : memref<1x512xf32, #tpu.memory_space<vmem>>, vector<1x512xf32>
    %41 = vector.broadcast %40 : vector<1x512xf32> to vector<8x512xf32>
    %42 = arith.addf %39, %41 : vector<8x512xf32>
    %43 = math.tanh %42 : vector<8x512xf32>
    %c0_29 = arith.constant 0 : index
    %c0_30 = arith.constant 0 : index
    %44 = vector.load %arg12[%c0_29, %c0_30] : memref<512x784xf32, #tpu.memory_space<vmem>>, vector<512x784xf32>
    %cst_31 = arith.constant dense<0.000000e+00> : vector<8x784xf32>
    %45 = tpu.matmul %43, %44, %cst_31 {dimension_numbers = #tpu.dot_dimension_numbers<[1], [0], [0], [1], [0, 0, 1, 1], [], []>} : vector<8x512xf32>, vector<512x784xf32>, vector<8x784xf32> -> vector<8x784xf32>
    %c0_32 = arith.constant 0 : index
    %c0_33 = arith.constant 0 : index
    %46 = vector.load %arg13[%c0_32, %c0_33] : memref<1x784xf32, #tpu.memory_space<vmem>>, vector<1x784xf32>
    %47 = vector.broadcast %46 : vector<1x784xf32> to vector<8x784xf32>
    %48 = arith.addf %45, %47 : vector<8x784xf32>
    %49 = arith.mulf %48, %48 : vector<8x784xf32>
    %cst_34 = arith.constant dense<0.000000e+00> : vector<8xf32>
    %50 = vector.multi_reduction <add>, %49, %cst_34 [1] : vector<8x784xf32> to vector<8xf32>
    %51 = vector.shape_cast %50 : vector<8xf32> to vector<8x1xf32>
    %52 = math.rsqrt %51 : vector<8x1xf32>
    %53 = vector.broadcast %52 : vector<8x1xf32> to vector<8x784xf32>
    %54 = arith.mulf %48, %53 : vector<8x784xf32>
    %55 = vector.broadcast %4 : vector<8x1xf32> to vector<8x784xf32>
    %56 = arith.mulf %54, %55 : vector<8x784xf32>
    %c0_35 = arith.constant 0 : index
    %c0_36 = arith.constant 0 : index
    %57 = vector.load %arg15[%c0_35, %c0_36] : memref<8x784xf32, #tpu.memory_space<vmem>>, vector<8x784xf32>
    tpu.vector_store %arg15[%c0_35, %c0_36], %56 {strides = array<i32>} : memref<8x784xf32, #tpu.memory_space<vmem>>, vector<8x784xf32>,
    return
  }
  func.func @transform_0(%arg0: i32) -> (i32, i32) {
    %c0_i32 = arith.constant 0 : i32
    %c0_i32_0 = arith.constant 0 : i32
    return %arg0, %c0_i32 : i32, i32
  }
  func.func @transform_1(%arg0: i32) -> (i32, i32) {
    %c0_i32 = arith.constant 0 : i32
    %c0_i32_0 = arith.constant 0 : i32
    %c0_i32_1 = arith.constant 0 : i32
    return %c0_i32, %c0_i32_0 : i32, i32
  }
  func.func @transform_2(%arg0: i32) -> (i32, i32) {
    %c0_i32 = arith.constant 0 : i32
    %c0_i32_0 = arith.constant 0 : i32
    %c0_i32_1 = arith.constant 0 : i32
    return %c0_i32, %c0_i32_0 : i32, i32
  }
  func.func @transform_3(%arg0: i32) -> (i32, i32) {
    %c0_i32 = arith.constant 0 : i32
    %c0_i32_0 = arith.constant 0 : i32
    %c0_i32_1 = arith.constant 0 : i32
    return %c0_i32, %c0_i32_0 : i32, i32
  }
  func.func @transform_4(%arg0: i32) -> (i32, i32) {
    %c0_i32 = arith.constant 0 : i32
    %c0_i32_0 = arith.constant 0 : i32
    %c0_i32_1 = arith.constant 0 : i32
    return %c0_i32, %c0_i32_0 : i32, i32
  }
  func.func @transform_5(%arg0: i32) -> (i32, i32) {
    %c0_i32 = arith.constant 0 : i32
    %c0_i32_0 = arith.constant 0 : i32
    %c0_i32_1 = arith.constant 0 : i32
    return %c0_i32, %c0_i32_0 : i32, i32
  }
  func.func @transform_6(%arg0: i32) -> (i32, i32) {
    %c0_i32 = arith.constant 0 : i32
    %c0_i32_0 = arith.constant 0 : i32
    %c0_i32_1 = arith.constant 0 : i32
    return %c0_i32, %c0_i32_0 : i32, i32
  }
  func.func @transform_7(%arg0: i32) -> (i32, i32) {
    %c0_i32 = arith.constant 0 : i32
    %c0_i32_0 = arith.constant 0 : i32
    %c0_i32_1 = arith.constant 0 : i32
    return %c0_i32, %c0_i32_0 : i32, i32
  }
  func.func @transform_8(%arg0: i32) -> (i32, i32) {
    %c0_i32 = arith.constant 0 : i32
    %c0_i32_0 = arith.constant 0 : i32
    %c0_i32_1 = arith.constant 0 : i32
    return %c0_i32, %c0_i32_0 : i32, i32
  }
  func.func @transform_9(%arg0: i32) -> (i32, i32) {
    %c0_i32 = arith.constant 0 : i32
    %c0_i32_0 = arith.constant 0 : i32
    %c0_i32_1 = arith.constant 0 : i32
    return %c0_i32, %c0_i32_0 : i32, i32
  }
  func.func @transform_10(%arg0: i32) -> (i32, i32) {
    %c0_i32 = arith.constant 0 : i32
    %c0_i32_0 = arith.constant 0 : i32
    %c0_i32_1 = arith.constant 0 : i32
    return %c0_i32, %c0_i32_0 : i32, i32
  }
  func.func @transform_11(%arg0: i32) -> (i32, i32) {
    %c0_i32 = arith.constant 0 : i32
    %c0_i32_0 = arith.constant 0 : i32
    %c0_i32_1 = arith.constant 0 : i32
    return %c0_i32, %c0_i32_0 : i32, i32
  }
  func.func @transform_12(%arg0: i32) -> (i32, i32) {
    %c0_i32 = arith.constant 0 : i32
    %c0_i32_0 = arith.constant 0 : i32
    %c0_i32_1 = arith.constant 0 : i32
    return %c0_i32, %c0_i32_0 : i32, i32
  }
  func.func @transform_13(%arg0: i32) -> (i32, i32) {
    %c0_i32 = arith.constant 0 : i32
    %c0_i32_0 = arith.constant 0 : i32
    return %arg0, %c0_i32 : i32, i32
  }
  func.func @transform_14(%arg0: i32) -> (i32, i32) {
    %c0_i32 = arith.constant 0 : i32
    %c0_i32_0 = arith.constant 0 : i32
    return %arg0, %c0_i32 : i32, i32
  }
}

</mosaic_0001>

<llo_original>
// kernel: mnist_ae_forward.1
$region0: #{mnist_ae_forward.1}
  #allocation0 [shape = 'u32[]', space=smem, size = 0x4, offset = 0x4, fixed_abs, tag = 'smem constant byte address 0x4 - core index']
  #allocation1 [shape = 'u32[72,128]{1,0:T(1,128)}', space=vmem, size = 0x9000, scoped, tag = 'internal scratch']
  %s0 = inlined_call_operand.vmem [shape: f32[8,784], index: 0, kind: input, shape index: {}]
  %s1 = inlined_call_operand.vmem [shape: f32[784,512], index: 1, kind: input, shape index: {}]
  %s2 = inlined_call_operand.vmem [shape: f32[1,512], index: 2, kind: input, shape index: {}]
  %s3 = inlined_call_operand.vmem [shape: f32[512,256], index: 3, kind: input, shape index: {}]
  %s4 = inlined_call_operand.vmem [shape: f32[1,256], index: 4, kind: input, shape index: {}]
  %s5 = inlined_call_operand.vmem [shape: f32[256,128], index: 5, kind: input, shape index: {}]
  %s6 = inlined_call_operand.vmem [shape: f32[1,128], index: 6, kind: input, shape index: {}]
  %s7 = inlined_call_operand.vmem [shape: f32[128,256], index: 7, kind: input, shape index: {}]
  %s8 = inlined_call_operand.vmem [shape: f32[1,256], index: 8, kind: input, shape index: {}]
  %s9 = inlined_call_operand.vmem [shape: f32[256,512], index: 9, kind: input, shape index: {}]
  %s10 = inlined_call_operand.vmem [shape: f32[1,512], index: 10, kind: input, shape index: {}]
  %s11 = inlined_call_operand.vmem [shape: f32[512,784], index: 11, kind: input, shape index: {}]
  %s12 = inlined_call_operand.vmem [shape: f32[1,784], index: 12, kind: input, shape index: {}]
  %s13 = inlined_call_operand.hbm [shape: f32[8,128], index: 13, kind: output, shape index: {0}]
  %s14 = inlined_call_operand.hbm [shape: f32[8,784], index: 14, kind: output, shape index: {1}]
  %15 = xla_tuple %s13, %s14
  %s16 = sld [smem:[#allocation0]]
  $region70: #{mnist_ae_forward.1} parent=0
    _
  %s18 = ssub.s32 1, %s16
  %s19 = scalar_select 0, %s18, %s16
  $region1: #{mnist_ae_forward.1} parent=0
    #allocation2 [shape = 'u8[4096]{0}', space=vmem, size = 0x1000, scoped, tag = 'output window, operand 0, single buffered']
    #allocation3 [shape = 's32[1]{0}', space=sflag, size = 0x4, scoped, tag = 'scoped memory for mnist_ae_forward.1']
    #allocation4 [shape = 'u8[28672]{0}', space=vmem, size = 0x7000, scoped, tag = 'output window, operand 1, single buffered']
    #allocation5 [shape = 's32[1]{0}', space=sflag, size = 0x4, scoped, tag = 'scoped memory for mnist_ae_forward.1']
    %20 = vsyncpa [#allocation3], 0
    %21 = vsyncpa [#allocation5], 0
    // Predicated region
    $region2: #{mnist_ae_forward.1} parent=1 // pred_check
      _
    $region3: #{mnist_ae_forward.1} parent=1 // pred_check_branch
      %23 = sbr.rel (0) target = $region5
    $region4: #{mnist_ae_forward.1} parent=1 // pred_region
      _
    $region5: #{mnist_ae_forward.1} parent=1 // pred_fallthru
      _
    // Predicated region
    $region6: #{mnist_ae_forward.1} parent=1 // pred_check
      _
    $region7: #{mnist_ae_forward.1} parent=1 // pred_check_branch
      %25 = sbr.rel (0) target = $region9
    $region8: #{mnist_ae_forward.1} parent=1 // pred_region
      _
    $region9: #{mnist_ae_forward.1} parent=1 // pred_fallthru
      _
    // Predicated region
    $region10: #{mnist_ae_forward.1} parent=1 // pred_check
      _
    $region11: #{mnist_ae_forward.1} parent=1 // pred_check_branch
      %27 = sbr.rel (0) target = $region13
    $region12: #{mnist_ae_forward.1} parent=1 // pred_region
      _
    $region13: #{mnist_ae_forward.1} parent=1 // pred_fallthru
      _
    // Predicated region
    $region14: #{mnist_ae_forward.1} parent=1 // pred_check
      _
    $region15: #{mnist_ae_forward.1} parent=1 // pred_check_branch
      %29 = sbr.rel (0) target = $region17
    $region16: #{mnist_ae_forward.1} parent=1 // pred_region
      _
    $region17: #{mnist_ae_forward.1} parent=1 // pred_fallthru
      _
    // Predicated region
    $region18: #{mnist_ae_forward.1} parent=1 // pred_check
      _
    $region19: #{mnist_ae_forward.1} parent=1 // pred_check_branch
      %31 = sbr.rel (0) target = $region21
    $region20: #{mnist_ae_forward.1} parent=1 // pred_region
      _
    $region21: #{mnist_ae_forward.1} parent=1 // pred_fallthru
      _
    // Predicated region
    $region22: #{mnist_ae_forward.1} parent=1 // pred_check
      _
    $region23: #{mnist_ae_forward.1} parent=1 // pred_check_branch
      %33 = sbr.rel (0) target = $region25
    $region24: #{mnist_ae_forward.1} parent=1 // pred_region
      _
    $region25: #{mnist_ae_forward.1} parent=1 // pred_fallthru
      _
    // Predicated region
    $region26: #{mnist_ae_forward.1} parent=1 // pred_check
      _
    $region27: #{mnist_ae_forward.1} parent=1 // pred_check_branch
      %35 = sbr.rel (0) target = $region29
    $region28: #{mnist_ae_forward.1} parent=1 // pred_region
      _
    $region29: #{mnist_ae_forward.1} parent=1 // pred_fallthru
      _
    // Predicated region
    $region30: #{mnist_ae_forward.1} parent=1 // pred_check
      _
    $region31: #{mnist_ae_forward.1} parent=1 // pred_check_branch
      %37 = sbr.rel (0) target = $region33
    $region32: #{mnist_ae_forward.1} parent=1 // pred_region
      _
    $region33: #{mnist_ae_forward.1} parent=1 // pred_fallthru
      _
    // Predicated region
    $region34: #{mnist_ae_forward.1} parent=1 // pred_check
      _
    $region35: #{mnist_ae_forward.1} parent=1 // pred_check_branch
      %39 = sbr.rel (0) target = $region37
    $region36: #{mnist_ae_forward.1} parent=1 // pred_region
      _
    $region37: #{mnist_ae_forward.1} parent=1 // pred_fallthru
      _
    // Predicated region
    $region38: #{mnist_ae_forward.1} parent=1 // pred_check
      _
    $region39: #{mnist_ae_forward.1} parent=1 // pred_check_branch
      %41 = sbr.rel (0) target = $region41
    $region40: #{mnist_ae_forward.1} parent=1 // pred_region
      _
    $region41: #{mnist_ae_forward.1} parent=1 // pred_fallthru
      _
    // Predicated region
    $region42: #{mnist_ae_forward.1} parent=1 // pred_check
      _
    $region43: #{mnist_ae_forward.1} parent=1 // pred_check_branch
      %43 = sbr.rel (0) target = $region45
    $region44: #{mnist_ae_forward.1} parent=1 // pred_region
      _
    $region45: #{mnist_ae_forward.1} parent=1 // pred_fallthru
      _
    // Predicated region
    $region46: #{mnist_ae_forward.1} parent=1 // pred_check
      _
    $region47: #{mnist_ae_forward.1} parent=1 // pred_check_branch
      %45 = sbr.rel (0) target = $region49
    $region48: #{mnist_ae_forward.1} parent=1 // pred_region
      _
    $region49: #{mnist_ae_forward.1} parent=1 // pred_fallthru
      _
    // Predicated region
    $region50: #{mnist_ae_forward.1} parent=1 // pred_check
      _
    $region51: #{mnist_ae_forward.1} parent=1 // pred_check_branch
      %47 = sbr.rel (0) target = $region53
    $region52: #{mnist_ae_forward.1} parent=1 // pred_region
      _
    $region53: #{mnist_ae_forward.1} parent=1 // pred_fallthru
      _
    %v48 = vld [vmem:[%s0] sm:$0xff]
    %v49 = vld [vmem:[%s0 + $0x8] sm:$0xff]
    %v50 = vld [vmem:[%s0 + $0x10] sm:$0xff]
    %v51 = vld [vmem:[%s0 + $0x18] sm:$0xff]
    %v52 = vld [vmem:[%s0 + $0x20] sm:$0xff]
    %v53 = vld [vmem:[%s0 + $0x28] sm:$0xff]
    %v54 = vld [vmem:[%s0 + $0x30] sm:$0xff]
    %v55 = vmul.f32 %v48, %v48
    %v56 = vmul.f32 %v49, %v49
    %v57 = vmul.f32 %v50, %v50
    %v58 = vmul.f32 %v51, %v51
    %v59 = vmul.f32 %v52, %v52
    %v60 = vmul.f32 %v53, %v53
    %v61 = vmul.f32 %v54, %v54
    %v62 = vadd.f32 %v55, %v56
    %v63 = vadd.f32 %v62, %v57
    %v64 = vadd.f32 %v63, %v58
    %v65 = vadd.f32 %v64, %v59
    %v66 = vadd.f32 %v65, %v60
    %vm67 = vcmask 130048
    %v68 = vsel %vm67, %v61, 0.0
    %v69 = vadd.f32 %v66, %v68
    %70 = vadd.xlane.f32.xlu0 %v69
    %v71 = vpop.xlane.xlu0 %70
    %v72 = vrsqrt.pop %v71
    %v73 = vmul.f32 %v72, %v71
    %v74 = vmul.f32 %v73, %v72
    %v75 = vmul.f32 0.5, %v74
    %v76 = vsub.f32 1.5, %v75
    %v77 = vmul.f32 %v72, %v76
    %v78 = vmul.f32 %v71, %v77
    %vm79 = vcmp.eq.f32.partialorder %v71, inf
    %v80 = vsel %vm79, %v71, %v78
    %vm81 = vcmp.eq.f32.partialorder %v71, 0.0
    %v82 = vand.u32 %v71, 2147483648
    %v83 = vsel %vm81, %v82, %v80
    %v84 = vrsqrt.pop %v71
    %v85 = vmul.f32 %v84, %v71
    %v86 = vmul.f32 %v85, %v84
    %v87 = vmul.f32 0.5, %v86
    %v88 = vsub.f32 1.5, %v87
    %v89 = vmul.f32 %v84, %v88
    %vm90 = vweird.f32 %v71
    %vm91 = vweird.f32 %v84
    %vm92 = vmor %vm90, %vm91
    %v93 = vsel %vm92, %v84, %v89
    %v94 = vmul.f32 %v48, %v93
    %v95 = vmul.f32 %v49, %v93
    %v96 = vmul.f32 %v50, %v93
    %v97 = vmul.f32 %v51, %v93
    %v98 = vmul.f32 %v52, %v93
    %v99 = vmul.f32 %v53, %v93
    %v100 = vmul.f32 %v54, %v93
    %v101 = vld [vmem:[%s1] sm:$0xff]
    %v102 = vld [vmem:[%s1 + $0x8] sm:$0xff]
    %v103 = vld [vmem:[%s1 + $0x10] sm:$0xff]
    %v104 = vld [vmem:[%s1 + $0x18] sm:$0xff]
    %v105 = vld [vmem:[%s1 + $0x20] sm:$0xff]
    %v106 = vld [vmem:[%s1 + $0x28] sm:$0xff]
    %v107 = vld [vmem:[%s1 + $0x30] sm:$0xff]
    %v108 = vld [vmem:[%s1 + $0x38] sm:$0xff]
    %v109 = vld [vmem:[%s1 + $0x40] sm:$0xff]
    %v110 = vld [vmem:[%s1 + $0x48] sm:$0xff]
    %v111 = vld [vmem:[%s1 + $0x50] sm:$0xff]
    %v112 = vld [vmem:[%s1 + $0x58] sm:$0xff]
    %v113 = vld [vmem:[%s1 + $0x60] sm:$0xff]
    %v114 = vld [vmem:[%s1 + $0x68] sm:$0xff]
    %v115 = vld [vmem:[%s1 + $0x70] sm:$0xff]
    %v116 = vld [vmem:[%s1 + $0x78] sm:$0xff]
    %v117 = vld [vmem:[%s1 + $0x80] sm:$0xff]
    %v118 = vld [vmem:[%s1 + $0x88] sm:$0xff]
    %v119 = vld [vmem:[%s1 + $0x90] sm:$0xff]
    %v120 = vld [vmem:[%s1 + $0x98] sm:$0xff]
    %v121 = vld [vmem:[%s1 + $0xa0] sm:$0xff]
    %v122 = vld [vmem:[%s1 + $0xa8] sm:$0xff]
    %v123 = vld [vmem:[%s1 + $0xb0] sm:$0xff]
    %v124 = vld [vmem:[%s1 + $0xb8] sm:$0xff]
    %v125 = vld [vmem:[%s1 + $0xc0] sm:$0xff]
    %v126 = vld [vmem:[%s1 + $0xc8] sm:$0xff]
    %v127 = vld [vmem:[%s1 + $0xd0] sm:$0xff]
    %v128 = vld [vmem:[%s1 + $0xd8] sm:$0xff]
    %v129 = vld [vmem:[%s1 + $0xe0] sm:$0xff]
    %v130 = vld [vmem:[%s1 + $0xe8] sm:$0xff]
    %v131 = vld [vmem:[%s1 + $0xf0] sm:$0xff]
    %v132 = vld [vmem:[%s1 + $0xf8] sm:$0xff]
    %v133 = vld [vmem:[%s1 + $0x100] sm:$0xff]
    %v134 = vld [vmem:[%s1 + $0x108] sm:$0xff]
    %v135 = vld [vmem:[%s1 + $0x110] sm:$0xff]
    %v136 = vld [vmem:[%s1 + $0x118] sm:$0xff]
    %v137 = vld [vmem:[%s1 + $0x120] sm:$0xff]
    %v138 = vld [vmem:[%s1 + $0x128] sm:$0xff]
    %v139 = vld [vmem:[%s1 + $0x130] sm:$0xff]
    %v140 = vld [vmem:[%s1 + $0x138] sm:$0xff]
    %v141 = vld [vmem:[%s1 + $0x140] sm:$0xff]
    %v142 = vld [vmem:[%s1 + $0x148] sm:$0xff]
    %v143 = vld [vmem:[%s1 + $0x150] sm:$0xff]
    %v144 = vld [vmem:[%s1 + $0x158] sm:$0xff]
    %v145 = vld [vmem:[%s1 + $0x160] sm:$0xff]
    %v146 = vld [vmem:[%s1 + $0x168] sm:$0xff]
    %v147 = vld [vmem:[%s1 + $0x170] sm:$0xff]
    %v148 = vld [vmem:[%s1 + $0x178] sm:$0xff]
    %v149 = vld [vmem:[%s1 + $0x180] sm:$0xff]
    %v150 = vld [vmem:[%s1 + $0x188] sm:$0xff]
    %v151 = vld [vmem:[%s1 + $0x190] sm:$0xff]
    %v152 = vld [vmem:[%s1 + $0x198] sm:$0xff]
    %v153 = vld [vmem:[%s1 + $0x1a0] sm:$0xff]
    %v154 = vld [vmem:[%s1 + $0x1a8] sm:$0xff]
    %v155 = vld [vmem:[%s1 + $0x1b0] sm:$0xff]
    %v156 = vld [vmem:[%s1 + $0x1b8] sm:$0xff]
    %v157 = vld [vmem:[%s1 + $0x1c0] sm:$0xff]
    %v158 = vld [vmem:[%s1 + $0x1c8] sm:$0xff]
    %v159 = vld [vmem:[%s1 + $0x1d0] sm:$0xff]
    %v160 = vld [vmem:[%s1 + $0x1d8] sm:$0xff]
    %v161 = vld [vmem:[%s1 + $0x1e0] sm:$0xff]
    %v162 = vld [vmem:[%s1 + $0x1e8] sm:$0xff]
    %v163 = vld [vmem:[%s1 + $0x1f0] sm:$0xff]
    %v164 = vld [vmem:[%s1 + $0x1f8] sm:$0xff]
    %v165 = vld [vmem:[%s1 + $0x200] sm:$0xff]
    %v166 = vld [vmem:[%s1 + $0x208] sm:$0xff]
    %v167 = vld [vmem:[%s1 + $0x210] sm:$0xff]
    %v168 = vld [vmem:[%s1 + $0x218] sm:$0xff]
    %v169 = vld [vmem:[%s1 + $0x220] sm:$0xff]
    %v170 = vld [vmem:[%s1 + $0x228] sm:$0xff]
    %v171 = vld [vmem:[%s1 + $0x230] sm:$0xff]
    %v172 = vld [vmem:[%s1 + $0x238] sm:$0xff]
    %v173 = vld [vmem:[%s1 + $0x240] sm:$0xff]
    %v174 = vld [vmem:[%s1 + $0x248] sm:$0xff]
    %v175 = vld [vmem:[%s1 + $0x250] sm:$0xff]
    %v176 = vld [vmem:[%s1 + $0x258] sm:$0xff]
    %v177 = vld [vmem:[%s1 + $0x260] sm:$0xff]
    %v178 = vld [vmem:[%s1 + $0x268] sm:$0xff]
    %v179 = vld [vmem:[%s1 + $0x270] sm:$0xff]
    %v180 = vld [vmem:[%s1 + $0x278] sm:$0xff]
    %v181 = vld [vmem:[%s1 + $0x280] sm:$0xff]
    %v182 = vld [vmem:[%s1 + $0x288] sm:$0xff]
    %v183 = vld [vmem:[%s1 + $0x290] sm:$0xff]
    %v184 = vld [vmem:[%s1 + $0x298] sm:$0xff]
    %v185 = vld [vmem:[%s1 + $0x2a0] sm:$0xff]
    %v186 = vld [vmem:[%s1 + $0x2a8] sm:$0xff]
    %v187 = vld [vmem:[%s1 + $0x2b0] sm:$0xff]
    %v188 = vld [vmem:[%s1 + $0x2b8] sm:$0xff]
    %v189 = vld [vmem:[%s1 + $0x2c0] sm:$0xff]
    %v190 = vld [vmem:[%s1 + $0x2c8] sm:$0xff]
    %v191 = vld [vmem:[%s1 + $0x2d0] sm:$0xff]
    %v192 = vld [vmem:[%s1 + $0x2d8] sm:$0xff]
    %v193 = vld [vmem:[%s1 + $0x2e0] sm:$0xff]
    %v194 = vld [vmem:[%s1 + $0x2e8] sm:$0xff]
    %v195 = vld [vmem:[%s1 + $0x2f0] sm:$0xff]
    %v196 = vld [vmem:[%s1 + $0x2f8] sm:$0xff]
    %v197 = vld [vmem:[%s1 + $0x300] sm:$0xff]
    %v198 = vld [vmem:[%s1 + $0x308] sm:$0xff]
    %v199 = vld [vmem:[%s1 + $0x310] sm:$0xff]
    %v200 = vld [vmem:[%s1 + $0x318] sm:$0xff]
    %v201 = vld [vmem:[%s1 + $0x320] sm:$0xff]
    %v202 = vld [vmem:[%s1 + $0x328] sm:$0xff]
    %v203 = vld [vmem:[%s1 + $0x330] sm:$0xff]
    %v204 = vld [vmem:[%s1 + $0x338] sm:$0xff]
    %v205 = vld [vmem:[%s1 + $0x340] sm:$0xff]
    %v206 = vld [vmem:[%s1 + $0x348] sm:$0xff]
    %v207 = vld [vmem:[%s1 + $0x350] sm:$0xff]
    %v208 = vld [vmem:[%s1 + $0x358] sm:$0xff]
    %v209 = vld [vmem:[%s1 + $0x360] sm:$0xff]
    %v210 = vld [vmem:[%s1 + $0x368] sm:$0xff]
    %v211 = vld [vmem:[%s1 + $0x370] sm:$0xff]
    %v212 = vld [vmem:[%s1 + $0x378] sm:$0xff]
    %v213 = vld [vmem:[%s1 + $0x380] sm:$0xff]
    %v214 = vld [vmem:[%s1 + $0x388] sm:$0xff]
    %v215 = vld [vmem:[%s1 + $0x390] sm:$0xff]
    %v216 = vld [vmem:[%s1 + $0x398] sm:$0xff]
    %v217 = vld [vmem:[%s1 + $0x3a0] sm:$0xff]
    %v218 = vld [vmem:[%s1 + $0x3a8] sm:$0xff]
    %v219 = vld [vmem:[%s1 + $0x3b0] sm:$0xff]
    %v220 = vld [vmem:[%s1 + $0x3b8] sm:$0xff]
    %v221 = vld [vmem:[%s1 + $0x3c0] sm:$0xff]
    %v222 = vld [vmem:[%s1 + $0x3c8] sm:$0xff]
    %v223 = vld [vmem:[%s1 + $0x3d0] sm:$0xff]
    %v224 = vld [vmem:[%s1 + $0x3d8] sm:$0xff]
    %v225 = vld [vmem:[%s1 + $0x3e0] sm:$0xff]
    %v226 = vld [vmem:[%s1 + $0x3e8] sm:$0xff]
    %v227 = vld [vmem:[%s1 + $0x3f0] sm:$0xff]
    %v228 = vld [vmem:[%s1 + $0x3f8] sm:$0xff]
    %v229 = vld [vmem:[%s1 + $0x400] sm:$0xff]
    %v230 = vld [vmem:[%s1 + $0x408] sm:$0xff]
    %v231 = vld [vmem:[%s1 + $0x410] sm:$0xff]
    %v232 = vld [vmem:[%s1 + $0x418] sm:$0xff]
    %v233 = vld [vmem:[%s1 + $0x420] sm:$0xff]
    %v234 = vld [vmem:[%s1 + $0x428] sm:$0xff]
    %v235 = vld [vmem:[%s1 + $0x430] sm:$0xff]
    %v236 = vld [vmem:[%s1 + $0x438] sm:$0xff]
    %v237 = vld [vmem:[%s1 + $0x440] sm:$0xff]
    %v238 = vld [vmem:[%s1 + $0x448] sm:$0xff]
    %v239 = vld [vmem:[%s1 + $0x450] sm:$0xff]
    %v240 = vld [vmem:[%s1 + $0x458] sm:$0xff]
    %v241 = vld [vmem:[%s1 + $0x460] sm:$0xff]
    %v242 = vld [vmem:[%s1 + $0x468] sm:$0xff]
    %v243 = vld [vmem:[%s1 + $0x470] sm:$0xff]
    %v244 = vld [vmem:[%s1 + $0x478] sm:$0xff]
    %v245 = vld [vmem:[%s1 + $0x480] sm:$0xff]
    %v246 = vld [vmem:[%s1 + $0x488] sm:$0xff]
    %v247 = vld [vmem:[%s1 + $0x490] sm:$0xff]
    %v248 = vld [vmem:[%s1 + $0x498] sm:$0xff]
    %v249 = vld [vmem:[%s1 + $0x4a0] sm:$0xff]
    %v250 = vld [vmem:[%s1 + $0x4a8] sm:$0xff]
    %v251 = vld [vmem:[%s1 + $0x4b0] sm:$0xff]
    %v252 = vld [vmem:[%s1 + $0x4b8] sm:$0xff]
    %v253 = vld [vmem:[%s1 + $0x4c0] sm:$0xff]
    %v254 = vld [vmem:[%s1 + $0x4c8] sm:$0xff]
    %v255 = vld [vmem:[%s1 + $0x4d0] sm:$0xff]
    %v256 = vld [vmem:[%s1 + $0x4d8] sm:$0xff]
    %v257 = vld [vmem:[%s1 + $0x4e0] sm:$0xff]
    %v258 = vld [vmem:[%s1 + $0x4e8] sm:$0xff]
    %v259 = vld [vmem:[%s1 + $0x4f0] sm:$0xff]
    %v260 = vld [vmem:[%s1 + $0x4f8] sm:$0xff]
    %v261 = vld [vmem:[%s1 + $0x500] sm:$0xff]
    %v262 = vld [vmem:[%s1 + $0x508] sm:$0xff]
    %v263 = vld [vmem:[%s1 + $0x510] sm:$0xff]
    %v264 = vld [vmem:[%s1 + $0x518] sm:$0xff]
    %v265 = vld [vmem:[%s1 + $0x520] sm:$0xff]
    %v266 = vld [vmem:[%s1 + $0x528] sm:$0xff]
    %v267 = vld [vmem:[%s1 + $0x530] sm:$0xff]
    %v268 = vld [vmem:[%s1 + $0x538] sm:$0xff]
    %v269 = vld [vmem:[%s1 + $0x540] sm:$0xff]
    %v270 = vld [vmem:[%s1 + $0x548] sm:$0xff]
    %v271 = vld [vmem:[%s1 + $0x550] sm:$0xff]
    %v272 = vld [vmem:[%s1 + $0x558] sm:$0xff]
    %v273 = vld [vmem:[%s1 + $0x560] sm:$0xff]
    %v274 = vld [vmem:[%s1 + $0x568] sm:$0xff]
    %v275 = vld [vmem:[%s1 + $0x570] sm:$0xff]
    %v276 = vld [vmem:[%s1 + $0x578] sm:$0xff]
    %v277 = vld [vmem:[%s1 + $0x580] sm:$0xff]
    %v278 = vld [vmem:[%s1 + $0x588] sm:$0xff]
    %v279 = vld [vmem:[%s1 + $0x590] sm:$0xff]
    %v280 = vld [vmem:[%s1 + $0x598] sm:$0xff]
    %v281 = vld [vmem:[%s1 + $0x5a0] sm:$0xff]
    %v282 = vld [vmem:[%s1 + $0x5a8] sm:$0xff]
    %v283 = vld [vmem:[%s1 + $0x5b0] sm:$0xff]
    %v284 = vld [vmem:[%s1 + $0x5b8] sm:$0xff]
    %v285 = vld [vmem:[%s1 + $0x5c0] sm:$0xff]
    %v286 = vld [vmem:[%s1 + $0x5c8] sm:$0xff]
    %v287 = vld [vmem:[%s1 + $0x5d0] sm:$0xff]
    %v288 = vld [vmem:[%s1 + $0x5d8] sm:$0xff]
    %v289 = vld [vmem:[%s1 + $0x5e0] sm:$0xff]
    %v290 = vld [vmem:[%s1 + $0x5e8] sm:$0xff]
    %v291 = vld [vmem:[%s1 + $0x5f0] sm:$0xff]
    %v292 = vld [vmem:[%s1 + $0x5f8] sm:$0xff]
    %v293 = vld [vmem:[%s1 + $0x600] sm:$0xff]
    %v294 = vld [vmem:[%s1 + $0x608] sm:$0xff]
    %v295 = vld [vmem:[%s1 + $0x610] sm:$0xff]
    %v296 = vld [vmem:[%s1 + $0x618] sm:$0xff]
    %v297 = vld [vmem:[%s1 + $0x620] sm:$0xff]
    %v298 = vld [vmem:[%s1 + $0x628] sm:$0xff]
    %v299 = vld [vmem:[%s1 + $0x630] sm:$0xff]
    %v300 = vld [vmem:[%s1 + $0x638] sm:$0xff]
    %v301 = vld [vmem:[%s1 + $0x640] sm:$0xff]
    %v302 = vld [vmem:[%s1 + $0x648] sm:$0xff]
    %v303 = vld [vmem:[%s1 + $0x650] sm:$0xff]
    %v304 = vld [vmem:[%s1 + $0x658] sm:$0xff]
    %v305 = vld [vmem:[%s1 + $0x660] sm:$0xff]
    %v306 = vld [vmem:[%s1 + $0x668] sm:$0xff]
    %v307 = vld [vmem:[%s1 + $0x670] sm:$0xff]
    %v308 = vld [vmem:[%s1 + $0x678] sm:$0xff]
    %v309 = vld [vmem:[%s1 + $0x680] sm:$0xff]
    %v310 = vld [vmem:[%s1 + $0x688] sm:$0xff]
    %v311 = vld [vmem:[%s1 + $0x690] sm:$0xff]
    %v312 = vld [vmem:[%s1 + $0x698] sm:$0xff]
    %v313 = vld [vmem:[%s1 + $0x6a0] sm:$0xff]
    %v314 = vld [vmem:[%s1 + $0x6a8] sm:$0xff]
    %v315 = vld [vmem:[%s1 + $0x6b0] sm:$0xff]
    %v316 = vld [vmem:[%s1 + $0x6b8] sm:$0xff]
    %v317 = vld [vmem:[%s1 + $0x6c0] sm:$0xff]
    %v318 = vld [vmem:[%s1 + $0x6c8] sm:$0xff]
    %v319 = vld [vmem:[%s1 + $0x6d0] sm:$0xff]
    %v320 = vld [vmem:[%s1 + $0x6d8] sm:$0xff]
    %v321 = vld [vmem:[%s1 + $0x6e0] sm:$0xff]
    %v322 = vld [vmem:[%s1 + $0x6e8] sm:$0xff]
    %v323 = vld [vmem:[%s1 + $0x6f0] sm:$0xff]
    %v324 = vld [vmem:[%s1 + $0x6f8] sm:$0xff]
    %v325 = vld [vmem:[%s1 + $0x700] sm:$0xff]
    %v326 = vld [vmem:[%s1 + $0x708] sm:$0xff]
    %v327 = vld [vmem:[%s1 + $0x710] sm:$0xff]
    %v328 = vld [vmem:[%s1 + $0x718] sm:$0xff]
    %v329 = vld [vmem:[%s1 + $0x720] sm:$0xff]
    %v330 = vld [vmem:[%s1 + $0x728] sm:$0xff]
    %v331 = vld [vmem:[%s1 + $0x730] sm:$0xff]
    %v332 = vld [vmem:[%s1 + $0x738] sm:$0xff]
    %v333 = vld [vmem:[%s1 + $0x740] sm:$0xff]
    %v334 = vld [vmem:[%s1 + $0x748] sm:$0xff]
    %v335 = vld [vmem:[%s1 + $0x750] sm:$0xff]
    %v336 = vld [vmem:[%s1 + $0x758] sm:$0xff]
    %v337 = vld [vmem:[%s1 + $0x760] sm:$0xff]
    %v338 = vld [vmem:[%s1 + $0x768] sm:$0xff]
    %v339 = vld [vmem:[%s1 + $0x770] sm:$0xff]
    %v340 = vld [vmem:[%s1 + $0x778] sm:$0xff]
    %v341 = vld [vmem:[%s1 + $0x780] sm:$0xff]
    %v342 = vld [vmem:[%s1 + $0x788] sm:$0xff]
    %v343 = vld [vmem:[%s1 + $0x790] sm:$0xff]
    %v344 = vld [vmem:[%s1 + $0x798] sm:$0xff]
    %v345 = vld [vmem:[%s1 + $0x7a0] sm:$0xff]
    %v346 = vld [vmem:[%s1 + $0x7a8] sm:$0xff]
    %v347 = vld [vmem:[%s1 + $0x7b0] sm:$0xff]
    %v348 = vld [vmem:[%s1 + $0x7b8] sm:$0xff]
    %v349 = vld [vmem:[%s1 + $0x7c0] sm:$0xff]
    %v350 = vld [vmem:[%s1 + $0x7c8] sm:$0xff]
    %v351 = vld [vmem:[%s1 + $0x7d0] sm:$0xff]
    %v352 = vld [vmem:[%s1 + $0x7d8] sm:$0xff]
    %v353 = vld [vmem:[%s1 + $0x7e0] sm:$0xff]
    %v354 = vld [vmem:[%s1 + $0x7e8] sm:$0xff]
    %v355 = vld [vmem:[%s1 + $0x7f0] sm:$0xff]
    %v356 = vld [vmem:[%s1 + $0x7f8] sm:$0xff]
    %v357 = vld [vmem:[%s1 + $0x800] sm:$0xff]
    %v358 = vld [vmem:[%s1 + $0x808] sm:$0xff]
    %v359 = vld [vmem:[%s1 + $0x810] sm:$0xff]
    %v360 = vld [vmem:[%s1 + $0x818] sm:$0xff]
    %v361 = vld [vmem:[%s1 + $0x820] sm:$0xff]
    %v362 = vld [vmem:[%s1 + $0x828] sm:$0xff]
    %v363 = vld [vmem:[%s1 + $0x830] sm:$0xff]
    %v364 = vld [vmem:[%s1 + $0x838] sm:$0xff]
    %v365 = vld [vmem:[%s1 + $0x840] sm:$0xff]
    %v366 = vld [vmem:[%s1 + $0x848] sm:$0xff]
    %v367 = vld [vmem:[%s1 + $0x850] sm:$0xff]
    %v368 = vld [vmem:[%s1 + $0x858] sm:$0xff]
    %v369 = vld [vmem:[%s1 + $0x860] sm:$0xff]
    %v370 = vld [vmem:[%s1 + $0x868] sm:$0xff]
    %v371 = vld [vmem:[%s1 + $0x870] sm:$0xff]
    %v372 = vld [vmem:[%s1 + $0x878] sm:$0xff]
    %v373 = vld [vmem:[%s1 + $0x880] sm:$0xff]
    %v374 = vld [vmem:[%s1 + $0x888] sm:$0xff]
    %v375 = vld [vmem:[%s1 + $0x890] sm:$0xff]
    %v376 = vld [vmem:[%s1 + $0x898] sm:$0xff]
    %v377 = vld [vmem:[%s1 + $0x8a0] sm:$0xff]
    %v378 = vld [vmem:[%s1 + $0x8a8] sm:$0xff]
    %v379 = vld [vmem:[%s1 + $0x8b0] sm:$0xff]
    %v380 = vld [vmem:[%s1 + $0x8b8] sm:$0xff]
    %v381 = vld [vmem:[%s1 + $0x8c0] sm:$0xff]
    %v382 = vld [vmem:[%s1 + $0x8c8] sm:$0xff]
    %v383 = vld [vmem:[%s1 + $0x8d0] sm:$0xff]
    %v384 = vld [vmem:[%s1 + $0x8d8] sm:$0xff]
    %v385 = vld [vmem:[%s1 + $0x8e0] sm:$0xff]
    %v386 = vld [vmem:[%s1 + $0x8e8] sm:$0xff]
    %v387 = vld [vmem:[%s1 + $0x8f0] sm:$0xff]
    %v388 = vld [vmem:[%s1 + $0x8f8] sm:$0xff]
    %v389 = vld [vmem:[%s1 + $0x900] sm:$0xff]
    %v390 = vld [vmem:[%s1 + $0x908] sm:$0xff]
    %v391 = vld [vmem:[%s1 + $0x910] sm:$0xff]
    %v392 = vld [vmem:[%s1 + $0x918] sm:$0xff]
    %v393 = vld [vmem:[%s1 + $0x920] sm:$0xff]
    %v394 = vld [vmem:[%s1 + $0x928] sm:$0xff]
    %v395 = vld [vmem:[%s1 + $0x930] sm:$0xff]
    %v396 = vld [vmem:[%s1 + $0x938] sm:$0xff]
    %v397 = vld [vmem:[%s1 + $0x940] sm:$0xff]
    %v398 = vld [vmem:[%s1 + $0x948] sm:$0xff]
    %v399 = vld [vmem:[%s1 + $0x950] sm:$0xff]
    %v400 = vld [vmem:[%s1 + $0x958] sm:$0xff]
    %v401 = vld [vmem:[%s1 + $0x960] sm:$0xff]
    %v402 = vld [vmem:[%s1 + $0x968] sm:$0xff]
    %v403 = vld [vmem:[%s1 + $0x970] sm:$0xff]
    %v404 = vld [vmem:[%s1 + $0x978] sm:$0xff]
    %v405 = vld [vmem:[%s1 + $0x980] sm:$0xff]
    %v406 = vld [vmem:[%s1 + $0x988] sm:$0xff]
    %v407 = vld [vmem:[%s1 + $0x990] sm:$0xff]
    %v408 = vld [vmem:[%s1 + $0x998] sm:$0xff]
    %v409 = vld [vmem:[%s1 + $0x9a0] sm:$0xff]
    %v410 = vld [vmem:[%s1 + $0x9a8] sm:$0xff]
    %v411 = vld [vmem:[%s1 + $0x9b0] sm:$0xff]
    %v412 = vld [vmem:[%s1 + $0x9b8] sm:$0xff]
    %v413 = vld [vmem:[%s1 + $0x9c0] sm:$0xff]
    %v414 = vld [vmem:[%s1 + $0x9c8] sm:$0xff]
    %v415 = vld [vmem:[%s1 + $0x9d0] sm:$0xff]
    %v416 = vld [vmem:[%s1 + $0x9d8] sm:$0xff]
    %v417 = vld [vmem:[%s1 + $0x9e0] sm:$0xff]
    %v418 = vld [vmem:[%s1 + $0x9e8] sm:$0xff]
    %v419 = vld [vmem:[%s1 + $0x9f0] sm:$0xff]
    %v420 = vld [vmem:[%s1 + $0x9f8] sm:$0xff]
    %v421 = vld [vmem:[%s1 + $0xa00] sm:$0xff]
    %v422 = vld [vmem:[%s1 + $0xa08] sm:$0xff]
    %v423 = vld [vmem:[%s1 + $0xa10] sm:$0xff]
    %v424 = vld [vmem:[%s1 + $0xa18] sm:$0xff]
    %v425 = vld [vmem:[%s1 + $0xa20] sm:$0xff]
    %v426 = vld [vmem:[%s1 + $0xa28] sm:$0xff]
    %v427 = vld [vmem:[%s1 + $0xa30] sm:$0xff]
    %v428 = vld [vmem:[%s1 + $0xa38] sm:$0xff]
    %v429 = vld [vmem:[%s1 + $0xa40] sm:$0xff]
    %v430 = vld [vmem:[%s1 + $0xa48] sm:$0xff]
    %v431 = vld [vmem:[%s1 + $0xa50] sm:$0xff]
    %v432 = vld [vmem:[%s1 + $0xa58] sm:$0xff]
    %v433 = vld [vmem:[%s1 + $0xa60] sm:$0xff]
    %v434 = vld [vmem:[%s1 + $0xa68] sm:$0xff]
    %v435 = vld [vmem:[%s1 + $0xa70] sm:$0xff]
    %v436 = vld [vmem:[%s1 + $0xa78] sm:$0xff]
    %v437 = vld [vmem:[%s1 + $0xa80] sm:$0xff]
    %v438 = vld [vmem:[%s1 + $0xa88] sm:$0xff]
    %v439 = vld [vmem:[%s1 + $0xa90] sm:$0xff]
    %v440 = vld [vmem:[%s1 + $0xa98] sm:$0xff]
    %v441 = vld [vmem:[%s1 + $0xaa0] sm:$0xff]
    %v442 = vld [vmem:[%s1 + $0xaa8] sm:$0xff]
    %v443 = vld [vmem:[%s1 + $0xab0] sm:$0xff]
    %v444 = vld [vmem:[%s1 + $0xab8] sm:$0xff]
    %v445 = vld [vmem:[%s1 + $0xac0] sm:$0xff]
    %v446 = vld [vmem:[%s1 + $0xac8] sm:$0xff]
    %v447 = vld [vmem:[%s1 + $0xad0] sm:$0xff]
    %v448 = vld [vmem:[%s1 + $0xad8] sm:$0xff]
    %v449 = vld [vmem:[%s1 + $0xae0] sm:$0xff]
    %v450 = vld [vmem:[%s1 + $0xae8] sm:$0xff]
    %v451 = vld [vmem:[%s1 + $0xaf0] sm:$0xff]
    %v452 = vld [vmem:[%s1 + $0xaf8] sm:$0xff]
    %v453 = vld [vmem:[%s1 + $0xb00] sm:$0xff]
    %v454 = vld [vmem:[%s1 + $0xb08] sm:$0xff]
    %v455 = vld [vmem:[%s1 + $0xb10] sm:$0xff]
    %v456 = vld [vmem:[%s1 + $0xb18] sm:$0xff]
    %v457 = vld [vmem:[%s1 + $0xb20] sm:$0xff]
    %v458 = vld [vmem:[%s1 + $0xb28] sm:$0xff]
    %v459 = vld [vmem:[%s1 + $0xb30] sm:$0xff]
    %v460 = vld [vmem:[%s1 + $0xb38] sm:$0xff]
    %v461 = vld [vmem:[%s1 + $0xb40] sm:$0xff]
    %v462 = vld [vmem:[%s1 + $0xb48] sm:$0xff]
    %v463 = vld [vmem:[%s1 + $0xb50] sm:$0xff]
    %v464 = vld [vmem:[%s1 + $0xb58] sm:$0xff]
    %v465 = vld [vmem:[%s1 + $0xb60] sm:$0xff]
    %v466 = vld [vmem:[%s1 + $0xb68] sm:$0xff]
    %v467 = vld [vmem:[%s1 + $0xb70] sm:$0xff]
    %v468 = vld [vmem:[%s1 + $0xb78] sm:$0xff]
    %v469 = vld [vmem:[%s1 + $0xb80] sm:$0xff]
    %v470 = vld [vmem:[%s1 + $0xb88] sm:$0xff]
    %v471 = vld [vmem:[%s1 + $0xb90] sm:$0xff]
    %v472 = vld [vmem:[%s1 + $0xb98] sm:$0xff]
    %v473 = vld [vmem:[%s1 + $0xba0] sm:$0xff]
    %v474 = vld [vmem:[%s1 + $0xba8] sm:$0xff]
    %v475 = vld [vmem:[%s1 + $0xbb0] sm:$0xff]
    %v476 = vld [vmem:[%s1 + $0xbb8] sm:$0xff]
    %v477 = vld [vmem:[%s1 + $0xbc0] sm:$0xff]
    %v478 = vld [vmem:[%s1 + $0xbc8] sm:$0xff]
    %v479 = vld [vmem:[%s1 + $0xbd0] sm:$0xff]
    %v480 = vld [vmem:[%s1 + $0xbd8] sm:$0xff]
    %v481 = vld [vmem:[%s1 + $0xbe0] sm:$0xff]
    %v482 = vld [vmem:[%s1 + $0xbe8] sm:$0xff]
    %v483 = vld [vmem:[%s1 + $0xbf0] sm:$0xff]
    %v484 = vld [vmem:[%s1 + $0xbf8] sm:$0xff]
    %v485 = vld [vmem:[%s1 + $0xc00] sm:$0xff]
    %v486 = vld [vmem:[%s1 + $0xc08] sm:$0xff]
    %v487 = vld [vmem:[%s1 + $0xc10] sm:$0xff]
    %v488 = vld [vmem:[%s1 + $0xc18] sm:$0xff]
    %v489 = vld [vmem:[%s1 + $0xc20] sm:$0xff]
    %v490 = vld [vmem:[%s1 + $0xc28] sm:$0xff]
    %v491 = vld [vmem:[%s1 + $0xc30] sm:$0xff]
    %v492 = vld [vmem:[%s1 + $0xc38] sm:$0xff]
    %v493 = vld [vmem:[%s2] sm:$0xf]
    %v495 = vperm.slane %v493, 0
    %v496 = vperm.slane %v493, 1
    %v497 = vperm.slane %v493, 2
    %v498 = vperm.slane %v493, 3
    %v504 = vsel %vm67, %v100, 0
    %506 = vmatpush.msra.mxu0 %v161
    %507 = vmatpush.msra.mxu0 %v157
    %508 = vmatpush.msra.mxu0 %v153
    %509 = vmatpush.msra.mxu0 %v149
    %510 = vmatpush.msra.mxu0 %v145
    %511 = vmatpush.msra.mxu0 %v141
    %512 = vmatpush.msra.mxu0 %v137
    %513 = vmatpush.msra.mxu0 %v133
    %514 = vmatpush.msra.mxu0 %v129
    %515 = vmatpush.msra.mxu0 %v125
    %516 = vmatpush.msra.mxu0 %v121
    %517 = vmatpush.msra.mxu0 %v117
    %518 = vmatpush.msra.mxu0 %v113
    %519 = vmatpush.msra.mxu0 %v109
    %520 = vmatpush.msra.mxu0 %v105
    %521 = vmatpush.msra.mxu0 %v101
    %522 = vmatmul.f32.gmra.mxu0 %v94
    %v523 = vpop.f32.mrf.mxu0
    %v524 = vadd.f32 %v495, %v523
    %525 = vdwg.mxu0
    %526 = vmatpush.msra.mxu0 %v225
    %527 = vmatpush.msra.mxu0 %v221
    %528 = vmatpush.msra.mxu0 %v217
    %529 = vmatpush.msra.mxu0 %v213
    %530 = vmatpush.msra.mxu0 %v209
    %531 = vmatpush.msra.mxu0 %v205
    %532 = vmatpush.msra.mxu0 %v201
    %533 = vmatpush.msra.mxu0 %v197
    %534 = vmatpush.msra.mxu0 %v193
    %535 = vmatpush.msra.mxu0 %v189
    %536 = vmatpush.msra.mxu0 %v185
    %537 = vmatpush.msra.mxu0 %v181
    %538 = vmatpush.msra.mxu0 %v177
    %539 = vmatpush.msra.mxu0 %v173
    %540 = vmatpush.msra.mxu0 %v169
    %541 = vmatpush.msra.mxu0 %v165
    %542 = vmatmul.f32.gmra.mxu0 %v95
    %v543 = vpop.f32.mrf.mxu0
    %v544 = vadd.f32 %v524, %v543
    %545 = vdwg.mxu0
    %546 = vmatpush.msra.mxu0 %v289
    %547 = vmatpush.msra.mxu0 %v285
    %548 = vmatpush.msra.mxu0 %v281
    %549 = vmatpush.msra.mxu0 %v277
    %550 = vmatpush.msra.mxu0 %v273
    %551 = vmatpush.msra.mxu0 %v269
    %552 = vmatpush.msra.mxu0 %v265
    %553 = vmatpush.msra.mxu0 %v261
    %554 = vmatpush.msra.mxu0 %v257
    %555 = vmatpush.msra.mxu0 %v253
    %556 = vmatpush.msra.mxu0 %v249
    %557 = vmatpush.msra.mxu0 %v245
    %558 = vmatpush.msra.mxu0 %v241
    %559 = vmatpush.msra.mxu0 %v237
    %560 = vmatpush.msra.mxu0 %v233
    %561 = vmatpush.msra.mxu0 %v229
    %562 = vmatmul.f32.gmra.mxu0 %v96
    %v563 = vpop.f32.mrf.mxu0
    %v564 = vadd.f32 %v544, %v563
    %565 = vdwg.mxu0
    %566 = vmatpush.msra.mxu0 %v353
    %567 = vmatpush.msra.mxu0 %v349
    %568 = vmatpush.msra.mxu0 %v345
    %569 = vmatpush.msra.mxu0 %v341
    %570 = vmatpush.msra.mxu0 %v337
    %571 = vmatpush.msra.mxu0 %v333
    %572 = vmatpush.msra.mxu0 %v329
    %573 = vmatpush.msra.mxu0 %v325
    %574 = vmatpush.msra.mxu0 %v321
    %575 = vmatpush.msra.mxu0 %v317
    %576 = vmatpush.msra.mxu0 %v313
    %577 = vmatpush.msra.mxu0 %v309
    %578 = vmatpush.msra.mxu0 %v305
    %579 = vmatpush.msra.mxu0 %v301
    %580 = vmatpush.msra.mxu0 %v297
    %581 = vmatpush.msra.mxu0 %v293
    %582 = vmatmul.f32.gmra.mxu0 %v97
    %v583 = vpop.f32.mrf.mxu0
    %v584 = vadd.f32 %v564, %v583
    %585 = vdwg.mxu0
    %586 = vmatpush.msra.mxu0 %v417
    %587 = vmatpush.msra.mxu0 %v413
    %588 = vmatpush.msra.mxu0 %v409
    %589 = vmatpush.msra.mxu0 %v405
    %590 = vmatpush.msra.mxu0 %v401
    %591 = vmatpush.msra.mxu0 %v397
    %592 = vmatpush.msra.mxu0 %v393
    %593 = vmatpush.msra.mxu0 %v389
    %594 = vmatpush.msra.mxu0 %v385
    %595 = vmatpush.msra.mxu0 %v381
    %596 = vmatpush.msra.mxu0 %v377
    %597 = vmatpush.msra.mxu0 %v373
    %598 = vmatpush.msra.mxu0 %v369
    %599 = vmatpush.msra.mxu0 %v365
    %600 = vmatpush.msra.mxu0 %v361
    %601 = vmatpush.msra.mxu0 %v357
    %602 = vmatmul.f32.gmra.mxu0 %v98
    %v603 = vpop.f32.mrf.mxu0
    %v604 = vadd.f32 %v584, %v603
    %605 = vdwg.mxu0
    %606 = vmatpush.msra.mxu0 %v481
    %607 = vmatpush.msra.mxu0 %v477
    %608 = vmatpush.msra.mxu0 %v473
    %609 = vmatpush.msra.mxu0 %v469
    %610 = vmatpush.msra.mxu0 %v465
    %611 = vmatpush.msra.mxu0 %v461
    %612 = vmatpush.msra.mxu0 %v457
    %613 = vmatpush.msra.mxu0 %v453
    %614 = vmatpush.msra.mxu0 %v449
    %615 = vmatpush.msra.mxu0 %v445
    %616 = vmatpush.msra.mxu0 %v441
    %617 = vmatpush.msra.mxu0 %v437
    %618 = vmatpush.msra.mxu0 %v433
    %619 = vmatpush.msra.mxu0 %v429
    %620 = vmatpush.msra.mxu0 %v425
    %621 = vmatpush.msra.mxu0 %v421
    %622 = vmatmul.f32.gmra.mxu0 %v99
    %v623 = vpop.f32.mrf.mxu0
    %v624 = vadd.f32 %v604, %v623
    %625 = vdwg.mxu0
    %626 = vmatpush.msra.mxu0 0.0
    %627 = vmatpush.msra.mxu0 0.0
    %628 = vmatpush.msra.mxu0 0.0
    %629 = vmatpush.msra.mxu0 0.0
    %630 = vmatpush.msra.mxu0 0.0
    %631 = vmatpush.msra.mxu0 0.0
    %632 = vmatpush.msra.mxu0 0.0
    %633 = vmatpush.msra.mxu0 0.0
    %634 = vmatpush.msra.mxu0 0.0
    %635 = vmatpush.msra.mxu0 0.0
    %636 = vmatpush.msra.mxu0 0.0
    %637 = vmatpush.msra.mxu0 0.0
    %638 = vmatpush.msra.mxu0 0.0
    %639 = vmatpush.msra.mxu0 0.0
    %640 = vmatpush.msra.mxu0 %v489
    %641 = vmatpush.msra.mxu0 %v485
    %642 = vmatmul.f32.gmra.mxu0 %v504
    %v643 = vpop.f32.mrf.mxu0
    %v644 = vadd.f32 %v624, %v643
    %645 = vdwg.mxu0
    %646 = vmatpush.msra.mxu0 %v162
    %647 = vmatpush.msra.mxu0 %v158
    %648 = vmatpush.msra.mxu0 %v154
    %649 = vmatpush.msra.mxu0 %v150
    %650 = vmatpush.msra.mxu0 %v146
    %651 = vmatpush.msra.mxu0 %v142
    %652 = vmatpush.msra.mxu0 %v138
    %653 = vmatpush.msra.mxu0 %v134
    %654 = vmatpush.msra.mxu0 %v130
    %655 = vmatpush.msra.mxu0 %v126
    %656 = vmatpush.msra.mxu0 %v122
    %657 = vmatpush.msra.mxu0 %v118
    %658 = vmatpush.msra.mxu0 %v114
    %659 = vmatpush.msra.mxu0 %v110
    %660 = vmatpush.msra.mxu0 %v106
    %661 = vmatpush.msra.mxu0 %v102
    %662 = vmatmul.f32.gmra.mxu0 %v94
    %v663 = vpop.f32.mrf.mxu0
    %v664 = vadd.f32 %v496, %v663
    %665 = vdwg.mxu0
    %666 = vmatpush.msra.mxu0 %v226
    %667 = vmatpush.msra.mxu0 %v222
    %668 = vmatpush.msra.mxu0 %v218
    %669 = vmatpush.msra.mxu0 %v214
    %670 = vmatpush.msra.mxu0 %v210
    %671 = vmatpush.msra.mxu0 %v206
    %672 = vmatpush.msra.mxu0 %v202
    %673 = vmatpush.msra.mxu0 %v198
    %674 = vmatpush.msra.mxu0 %v194
    %675 = vmatpush.msra.mxu0 %v190
    %676 = vmatpush.msra.mxu0 %v186
    %677 = vmatpush.msra.mxu0 %v182
    %678 = vmatpush.msra.mxu0 %v178
    %679 = vmatpush.msra.mxu0 %v174
    %680 = vmatpush.msra.mxu0 %v170
    %681 = vmatpush.msra.mxu0 %v166
    %682 = vmatmul.f32.gmra.mxu0 %v95
    %v683 = vpop.f32.mrf.mxu0
    %v684 = vadd.f32 %v664, %v683
    %685 = vdwg.mxu0
    %686 = vmatpush.msra.mxu0 %v290
    %687 = vmatpush.msra.mxu0 %v286
    %688 = vmatpush.msra.mxu0 %v282
    %689 = vmatpush.msra.mxu0 %v278
    %690 = vmatpush.msra.mxu0 %v274
    %691 = vmatpush.msra.mxu0 %v270
    %692 = vmatpush.msra.mxu0 %v266
    %693 = vmatpush.msra.mxu0 %v262
    %694 = vmatpush.msra.mxu0 %v258
    %695 = vmatpush.msra.mxu0 %v254
    %696 = vmatpush.msra.mxu0 %v250
    %697 = vmatpush.msra.mxu0 %v246
    %698 = vmatpush.msra.mxu0 %v242
    %699 = vmatpush.msra.mxu0 %v238
    %700 = vmatpush.msra.mxu0 %v234
    %701 = vmatpush.msra.mxu0 %v230
    %702 = vmatmul.f32.gmra.mxu0 %v96
    %v703 = vpop.f32.mrf.mxu0
    %v704 = vadd.f32 %v684, %v703
    %705 = vdwg.mxu0
    %706 = vmatpush.msra.mxu0 %v354
    %707 = vmatpush.msra.mxu0 %v350
    %708 = vmatpush.msra.mxu0 %v346
    %709 = vmatpush.msra.mxu0 %v342
    %710 = vmatpush.msra.mxu0 %v338
    %711 = vmatpush.msra.mxu0 %v334
    %712 = vmatpush.msra.mxu0 %v330
    %713 = vmatpush.msra.mxu0 %v326
    %714 = vmatpush.msra.mxu0 %v322
    %715 = vmatpush.msra.mxu0 %v318
    %716 = vmatpush.msra.mxu0 %v314
    %717 = vmatpush.msra.mxu0 %v310
    %718 = vmatpush.msra.mxu0 %v306
    %719 = vmatpush.msra.mxu0 %v302
    %720 = vmatpush.msra.mxu0 %v298
    %721 = vmatpush.msra.mxu0 %v294
    %722 = vmatmul.f32.gmra.mxu0 %v97
    %v723 = vpop.f32.mrf.mxu0
    %v724 = vadd.f32 %v704, %v723
    %725 = vdwg.mxu0
    %726 = vmatpush.msra.mxu0 %v418
    %727 = vmatpush.msra.mxu0 %v414
    %728 = vmatpush.msra.mxu0 %v410
    %729 = vmatpush.msra.mxu0 %v406
    %730 = vmatpush.msra.mxu0 %v402
    %731 = vmatpush.msra.mxu0 %v398
    %732 = vmatpush.msra.mxu0 %v394
    %733 = vmatpush.msra.mxu0 %v390
    %734 = vmatpush.msra.mxu0 %v386
    %735 = vmatpush.msra.mxu0 %v382
    %736 = vmatpush.msra.mxu0 %v378
    %737 = vmatpush.msra.mxu0 %v374
    %738 = vmatpush.msra.mxu0 %v370
    %739 = vmatpush.msra.mxu0 %v366
    %740 = vmatpush.msra.mxu0 %v362
    %741 = vmatpush.msra.mxu0 %v358
    %742 = vmatmul.f32.gmra.mxu0 %v98
    %v743 = vpop.f32.mrf.mxu0
    %v744 = vadd.f32 %v724, %v743
    %745 = vdwg.mxu0
    %746 = vmatpush.msra.mxu0 %v482
    %747 = vmatpush.msra.mxu0 %v478
    %748 = vmatpush.msra.mxu0 %v474
    %749 = vmatpush.msra.mxu0 %v470
    %750 = vmatpush.msra.mxu0 %v466
    %751 = vmatpush.msra.mxu0 %v462
    %752 = vmatpush.msra.mxu0 %v458
    %753 = vmatpush.msra.mxu0 %v454
    %754 = vmatpush.msra.mxu0 %v450
    %755 = vmatpush.msra.mxu0 %v446
    %756 = vmatpush.msra.mxu0 %v442
    %757 = vmatpush.msra.mxu0 %v438
    %758 = vmatpush.msra.mxu0 %v434
    %759 = vmatpush.msra.mxu0 %v430
    %760 = vmatpush.msra.mxu0 %v426
    %761 = vmatpush.msra.mxu0 %v422
    %762 = vmatmul.f32.gmra.mxu0 %v99
    %v763 = vpop.f32.mrf.mxu0
    %v764 = vadd.f32 %v744, %v763
    %765 = vdwg.mxu0
    %766 = vmatpush.msra.mxu0 0.0
    %767 = vmatpush.msra.mxu0 0.0
    %768 = vmatpush.msra.mxu0 0.0
    %769 = vmatpush.msra.mxu0 0.0
    %770 = vmatpush.msra.mxu0 0.0
    %771 = vmatpush.msra.mxu0 0.0
    %772 = vmatpush.msra.mxu0 0.0
    %773 = vmatpush.msra.mxu0 0.0
    %774 = vmatpush.msra.mxu0 0.0
    %775 = vmatpush.msra.mxu0 0.0
    %776 = vmatpush.msra.mxu0 0.0
    %777 = vmatpush.msra.mxu0 0.0
    %778 = vmatpush.msra.mxu0 0.0
    %779 = vmatpush.msra.mxu0 0.0
    %780 = vmatpush.msra.mxu0 %v490
    %781 = vmatpush.msra.mxu0 %v486
    %782 = vmatmul.f32.gmra.mxu0 %v504
    %v783 = vpop.f32.mrf.mxu0
    %v784 = vadd.f32 %v764, %v783
    %785 = vdwg.mxu0
    %786 = vmatpush.msra.mxu0 %v163
    %787 = vmatpush.msra.mxu0 %v159
    %788 = vmatpush.msra.mxu0 %v155
    %789 = vmatpush.msra.mxu0 %v151
    %790 = vmatpush.msra.mxu0 %v147
    %791 = vmatpush.msra.mxu0 %v143
    %792 = vmatpush.msra.mxu0 %v139
    %793 = vmatpush.msra.mxu0 %v135
    %794 = vmatpush.msra.mxu0 %v131
    %795 = vmatpush.msra.mxu0 %v127
    %796 = vmatpush.msra.mxu0 %v123
    %797 = vmatpush.msra.mxu0 %v119
    %798 = vmatpush.msra.mxu0 %v115
    %799 = vmatpush.msra.mxu0 %v111
    %800 = vmatpush.msra.mxu0 %v107
    %801 = vmatpush.msra.mxu0 %v103
    %802 = vmatmul.f32.gmra.mxu0 %v94
    %v803 = vpop.f32.mrf.mxu0
    %v804 = vadd.f32 %v497, %v803
    %805 = vdwg.mxu0
    %806 = vmatpush.msra.mxu0 %v227
    %807 = vmatpush.msra.mxu0 %v223
    %808 = vmatpush.msra.mxu0 %v219
    %809 = vmatpush.msra.mxu0 %v215
    %810 = vmatpush.msra.mxu0 %v211
    %811 = vmatpush.msra.mxu0 %v207
    %812 = vmatpush.msra.mxu0 %v203
    %813 = vmatpush.msra.mxu0 %v199
    %814 = vmatpush.msra.mxu0 %v195
    %815 = vmatpush.msra.mxu0 %v191
    %816 = vmatpush.msra.mxu0 %v187
    %817 = vmatpush.msra.mxu0 %v183
    %818 = vmatpush.msra.mxu0 %v179
    %819 = vmatpush.msra.mxu0 %v175
    %820 = vmatpush.msra.mxu0 %v171
    %821 = vmatpush.msra.mxu0 %v167
    %822 = vmatmul.f32.gmra.mxu0 %v95
    %v823 = vpop.f32.mrf.mxu0
    %v824 = vadd.f32 %v804, %v823
    %825 = vdwg.mxu0
    %826 = vmatpush.msra.mxu0 %v291
    %827 = vmatpush.msra.mxu0 %v287
    %828 = vmatpush.msra.mxu0 %v283
    %829 = vmatpush.msra.mxu0 %v279
    %830 = vmatpush.msra.mxu0 %v275
    %831 = vmatpush.msra.mxu0 %v271
    %832 = vmatpush.msra.mxu0 %v267
    %833 = vmatpush.msra.mxu0 %v263
    %834 = vmatpush.msra.mxu0 %v259
    %835 = vmatpush.msra.mxu0 %v255
    %836 = vmatpush.msra.mxu0 %v251
    %837 = vmatpush.msra.mxu0 %v247
    %838 = vmatpush.msra.mxu0 %v243
    %839 = vmatpush.msra.mxu0 %v239
    %840 = vmatpush.msra.mxu0 %v235
    %841 = vmatpush.msra.mxu0 %v231
    %842 = vmatmul.f32.gmra.mxu0 %v96
    %v843 = vpop.f32.mrf.mxu0
    %v844 = vadd.f32 %v824, %v843
    %845 = vdwg.mxu0
    %846 = vmatpush.msra.mxu0 %v355
    %847 = vmatpush.msra.mxu0 %v351
    %848 = vmatpush.msra.mxu0 %v347
    %849 = vmatpush.msra.mxu0 %v343
    %850 = vmatpush.msra.mxu0 %v339
    %851 = vmatpush.msra.mxu0 %v335
    %852 = vmatpush.msra.mxu0 %v331
    %853 = vmatpush.msra.mxu0 %v327
    %854 = vmatpush.msra.mxu0 %v323
    %855 = vmatpush.msra.mxu0 %v319
    %856 = vmatpush.msra.mxu0 %v315
    %857 = vmatpush.msra.mxu0 %v311
    %858 = vmatpush.msra.mxu0 %v307
    %859 = vmatpush.msra.mxu0 %v303
    %860 = vmatpush.msra.mxu0 %v299
    %861 = vmatpush.msra.mxu0 %v295
    %862 = vmatmul.f32.gmra.mxu0 %v97
    %v863 = vpop.f32.mrf.mxu0
    %v864 = vadd.f32 %v844, %v863
    %865 = vdwg.mxu0
    %866 = vmatpush.msra.mxu0 %v419
    %867 = vmatpush.msra.mxu0 %v415
    %868 = vmatpush.msra.mxu0 %v411
    %869 = vmatpush.msra.mxu0 %v407
    %870 = vmatpush.msra.mxu0 %v403
    %871 = vmatpush.msra.mxu0 %v399
    %872 = vmatpush.msra.mxu0 %v395
    %873 = vmatpush.msra.mxu0 %v391
    %874 = vmatpush.msra.mxu0 %v387
    %875 = vmatpush.msra.mxu0 %v383
    %876 = vmatpush.msra.mxu0 %v379
    %877 = vmatpush.msra.mxu0 %v375
    %878 = vmatpush.msra.mxu0 %v371
    %879 = vmatpush.msra.mxu0 %v367
    %880 = vmatpush.msra.mxu0 %v363
    %881 = vmatpush.msra.mxu0 %v359
    %882 = vmatmul.f32.gmra.mxu0 %v98
    %v883 = vpop.f32.mrf.mxu0
    %v884 = vadd.f32 %v864, %v883
    %885 = vdwg.mxu0
    %886 = vmatpush.msra.mxu0 %v483
    %887 = vmatpush.msra.mxu0 %v479
    %888 = vmatpush.msra.mxu0 %v475
    %889 = vmatpush.msra.mxu0 %v471
    %890 = vmatpush.msra.mxu0 %v467
    %891 = vmatpush.msra.mxu0 %v463
    %892 = vmatpush.msra.mxu0 %v459
    %893 = vmatpush.msra.mxu0 %v455
    %894 = vmatpush.msra.mxu0 %v451
    %895 = vmatpush.msra.mxu0 %v447
    %896 = vmatpush.msra.mxu0 %v443
    %897 = vmatpush.msra.mxu0 %v439
    %898 = vmatpush.msra.mxu0 %v435
    %899 = vmatpush.msra.mxu0 %v431
    %900 = vmatpush.msra.mxu0 %v427
    %901 = vmatpush.msra.mxu0 %v423
    %902 = vmatmul.f32.gmra.mxu0 %v99
    %v903 = vpop.f32.mrf.mxu0
    %v904 = vadd.f32 %v884, %v903
    %905 = vdwg.mxu0
    %906 = vmatpush.msra.mxu0 0.0
    %907 = vmatpush.msra.mxu0 0.0
    %908 = vmatpush.msra.mxu0 0.0
    %909 = vmatpush.msra.mxu0 0.0
    %910 = vmatpush.msra.mxu0 0.0
    %911 = vmatpush.msra.mxu0 0.0
    %912 = vmatpush.msra.mxu0 0.0
    %913 = vmatpush.msra.mxu0 0.0
    %914 = vmatpush.msra.mxu0 0.0
    %915 = vmatpush.msra.mxu0 0.0
    %916 = vmatpush.msra.mxu0 0.0
    %917 = vmatpush.msra.mxu0 0.0
    %918 = vmatpush.msra.mxu0 0.0
    %919 = vmatpush.msra.mxu0 0.0
    %920 = vmatpush.msra.mxu0 %v491
    %921 = vmatpush.msra.mxu0 %v487
    %922 = vmatmul.f32.gmra.mxu0 %v504
    %v923 = vpop.f32.mrf.mxu0
    %v924 = vadd.f32 %v904, %v923
    %925 = vdwg.mxu0
    %926 = vmatpush.msra.mxu0 %v164
    %927 = vmatpush.msra.mxu0 %v160
    %928 = vmatpush.msra.mxu0 %v156
    %929 = vmatpush.msra.mxu0 %v152
    %930 = vmatpush.msra.mxu0 %v148
    %931 = vmatpush.msra.mxu0 %v144
    %932 = vmatpush.msra.mxu0 %v140
    %933 = vmatpush.msra.mxu0 %v136
    %934 = vmatpush.msra.mxu0 %v132
    %935 = vmatpush.msra.mxu0 %v128
    %936 = vmatpush.msra.mxu0 %v124
    %937 = vmatpush.msra.mxu0 %v120
    %938 = vmatpush.msra.mxu0 %v116
    %939 = vmatpush.msra.mxu0 %v112
    %940 = vmatpush.msra.mxu0 %v108
    %941 = vmatpush.msra.mxu0 %v104
    %942 = vmatmul.f32.gmra.mxu0 %v94
    %v943 = vpop.f32.mrf.mxu0
    %v944 = vadd.f32 %v498, %v943
    %945 = vdwg.mxu0
    %946 = vmatpush.msra.mxu0 %v228
    %947 = vmatpush.msra.mxu0 %v224
    %948 = vmatpush.msra.mxu0 %v220
    %949 = vmatpush.msra.mxu0 %v216
    %950 = vmatpush.msra.mxu0 %v212
    %951 = vmatpush.msra.mxu0 %v208
    %952 = vmatpush.msra.mxu0 %v204
    %953 = vmatpush.msra.mxu0 %v200
    %954 = vmatpush.msra.mxu0 %v196
    %955 = vmatpush.msra.mxu0 %v192
    %956 = vmatpush.msra.mxu0 %v188
    %957 = vmatpush.msra.mxu0 %v184
    %958 = vmatpush.msra.mxu0 %v180
    %959 = vmatpush.msra.mxu0 %v176
    %960 = vmatpush.msra.mxu0 %v172
    %961 = vmatpush.msra.mxu0 %v168
    %962 = vmatmul.f32.gmra.mxu0 %v95
    %v963 = vpop.f32.mrf.mxu0
    %v964 = vadd.f32 %v944, %v963
    %965 = vdwg.mxu0
    %966 = vmatpush.msra.mxu0 %v292
    %967 = vmatpush.msra.mxu0 %v288
    %968 = vmatpush.msra.mxu0 %v284
    %969 = vmatpush.msra.mxu0 %v280
    %970 = vmatpush.msra.mxu0 %v276
    %971 = vmatpush.msra.mxu0 %v272
    %972 = vmatpush.msra.mxu0 %v268
    %973 = vmatpush.msra.mxu0 %v264
    %974 = vmatpush.msra.mxu0 %v260
    %975 = vmatpush.msra.mxu0 %v256
    %976 = vmatpush.msra.mxu0 %v252
    %977 = vmatpush.msra.mxu0 %v248
    %978 = vmatpush.msra.mxu0 %v244
    %979 = vmatpush.msra.mxu0 %v240
    %980 = vmatpush.msra.mxu0 %v236
    %981 = vmatpush.msra.mxu0 %v232
    %982 = vmatmul.f32.gmra.mxu0 %v96
    %v983 = vpop.f32.mrf.mxu0
    %v984 = vadd.f32 %v964, %v983
    %985 = vdwg.mxu0
    %986 = vmatpush.msra.mxu0 %v356
    %987 = vmatpush.msra.mxu0 %v352
    %988 = vmatpush.msra.mxu0 %v348
    %989 = vmatpush.msra.mxu0 %v344
    %990 = vmatpush.msra.mxu0 %v340
    %991 = vmatpush.msra.mxu0 %v336
    %992 = vmatpush.msra.mxu0 %v332
    %993 = vmatpush.msra.mxu0 %v328
    %994 = vmatpush.msra.mxu0 %v324
    %995 = vmatpush.msra.mxu0 %v320
    %996 = vmatpush.msra.mxu0 %v316
    %997 = vmatpush.msra.mxu0 %v312
    %998 = vmatpush.msra.mxu0 %v308
    %999 = vmatpush.msra.mxu0 %v304
    %1000 = vmatpush.msra.mxu0 %v300
    %1001 = vmatpush.msra.mxu0 %v296
    %1002 = vmatmul.f32.gmra.mxu0 %v97
    %v1003 = vpop.f32.mrf.mxu0
    %v1004 = vadd.f32 %v984, %v1003
    %1005 = vdwg.mxu0
    %1006 = vmatpush.msra.mxu0 %v420
    %1007 = vmatpush.msra.mxu0 %v416
    %1008 = vmatpush.msra.mxu0 %v412
    %1009 = vmatpush.msra.mxu0 %v408
    %1010 = vmatpush.msra.mxu0 %v404
    %1011 = vmatpush.msra.mxu0 %v400
    %1012 = vmatpush.msra.mxu0 %v396
    %1013 = vmatpush.msra.mxu0 %v392
    %1014 = vmatpush.msra.mxu0 %v388
    %1015 = vmatpush.msra.mxu0 %v384
    %1016 = vmatpush.msra.mxu0 %v380
    %1017 = vmatpush.msra.mxu0 %v376
    %1018 = vmatpush.msra.mxu0 %v372
    %1019 = vmatpush.msra.mxu0 %v368
    %1020 = vmatpush.msra.mxu0 %v364
    %1021 = vmatpush.msra.mxu0 %v360
    %1022 = vmatmul.f32.gmra.mxu0 %v98
    %v1023 = vpop.f32.mrf.mxu0
    %v1024 = vadd.f32 %v1004, %v1023
    %1025 = vdwg.mxu0
    %1026 = vmatpush.msra.mxu0 %v484
    %1027 = vmatpush.msra.mxu0 %v480
    %1028 = vmatpush.msra.mxu0 %v476
    %1029 = vmatpush.msra.mxu0 %v472
    %1030 = vmatpush.msra.mxu0 %v468
    %1031 = vmatpush.msra.mxu0 %v464
    %1032 = vmatpush.msra.mxu0 %v460
    %1033 = vmatpush.msra.mxu0 %v456
    %1034 = vmatpush.msra.mxu0 %v452
    %1035 = vmatpush.msra.mxu0 %v448
    %1036 = vmatpush.msra.mxu0 %v444
    %1037 = vmatpush.msra.mxu0 %v440
    %1038 = vmatpush.msra.mxu0 %v436
    %1039 = vmatpush.msra.mxu0 %v432
    %1040 = vmatpush.msra.mxu0 %v428
    %1041 = vmatpush.msra.mxu0 %v424
    %1042 = vmatmul.f32.gmra.mxu0 %v99
    %v1043 = vpop.f32.mrf.mxu0
    %v1044 = vadd.f32 %v1024, %v1043
    %1045 = vdwg.mxu0
    %1046 = vmatpush.msra.mxu0 0.0
    %1047 = vmatpush.msra.mxu0 0.0
    %1048 = vmatpush.msra.mxu0 0.0
    %1049 = vmatpush.msra.mxu0 0.0
    %1050 = vmatpush.msra.mxu0 0.0
    %1051 = vmatpush.msra.mxu0 0.0
    %1052 = vmatpush.msra.mxu0 0.0
    %1053 = vmatpush.msra.mxu0 0.0
    %1054 = vmatpush.msra.mxu0 0.0
    %1055 = vmatpush.msra.mxu0 0.0
    %1056 = vmatpush.msra.mxu0 0.0
    %1057 = vmatpush.msra.mxu0 0.0
    %1058 = vmatpush.msra.mxu0 0.0
    %1059 = vmatpush.msra.mxu0 0.0
    %1060 = vmatpush.msra.mxu0 %v492
    %1061 = vmatpush.msra.mxu0 %v488
    %1062 = vmatmul.f32.gmra.mxu0 %v504
    %v1063 = vpop.f32.mrf.mxu0
    %v1064 = vadd.f32 %v1044, %v1063
    %1065 = vdwg.mxu0
    %v1066 = vtanh.pop %v644
    %v1067 = vtanh.pop %v784
    %v1068 = vtanh.pop %v924
    %v1069 = vtanh.pop %v1064
    %v1070 = vld [vmem:[%s3] sm:$0xff]
    %v1071 = vld [vmem:[%s3 + $0x8] sm:$0xff]
    %v1072 = vld [vmem:[%s3 + $0x10] sm:$0xff]
    %v1073 = vld [vmem:[%s3 + $0x18] sm:$0xff]
    %v1074 = vld [vmem:[%s3 + $0x20] sm:$0xff]
    %v1075 = vld [vmem:[%s3 + $0x28] sm:$0xff]
    %v1076 = vld [vmem:[%s3 + $0x30] sm:$0xff]
    %v1077 = vld [vmem:[%s3 + $0x38] sm:$0xff]
    %v1078 = vld [vmem:[%s3 + $0x40] sm:$0xff]
    %v1079 = vld [vmem:[%s3 + $0x48] sm:$0xff]
    %v1080 = vld [vmem:[%s3 + $0x50] sm:$0xff]
    %v1081 = vld [vmem:[%s3 + $0x58] sm:$0xff]
    %v1082 = vld [vmem:[%s3 + $0x60] sm:$0xff]
    %v1083 = vld [vmem:[%s3 + $0x68] sm:$0xff]
    %v1084 = vld [vmem:[%s3 + $0x70] sm:$0xff]
    %v1085 = vld [vmem:[%s3 + $0x78] sm:$0xff]
    %v1086 = vld [vmem:[%s3 + $0x80] sm:$0xff]
    %v1087 = vld [vmem:[%s3 + $0x88] sm:$0xff]
    %v1088 = vld [vmem:[%s3 + $0x90] sm:$0xff]
    %v1089 = vld [vmem:[%s3 + $0x98] sm:$0xff]
    %v1090 = vld [vmem:[%s3 + $0xa0] sm:$0xff]
    %v1091 = vld [vmem:[%s3 + $0xa8] sm:$0xff]
    %v1092 = vld [vmem:[%s3 + $0xb0] sm:$0xff]
    %v1093 = vld [vmem:[%s3 + $0xb8] sm:$0xff]
    %v1094 = vld [vmem:[%s3 + $0xc0] sm:$0xff]
    %v1095 = vld [vmem:[%s3 + $0xc8] sm:$0xff]
    %v1096 = vld [vmem:[%s3 + $0xd0] sm:$0xff]
    %v1097 = vld [vmem:[%s3 + $0xd8] sm:$0xff]
    %v1098 = vld [vmem:[%s3 + $0xe0] sm:$0xff]
    %v1099 = vld [vmem:[%s3 + $0xe8] sm:$0xff]
    %v1100 = vld [vmem:[%s3 + $0xf0] sm:$0xff]
    %v1101 = vld [vmem:[%s3 + $0xf8] sm:$0xff]
    %v1102 = vld [vmem:[%s3 + $0x100] sm:$0xff]
    %v1103 = vld [vmem:[%s3 + $0x108] sm:$0xff]
    %v1104 = vld [vmem:[%s3 + $0x110] sm:$0xff]
    %v1105 = vld [vmem:[%s3 + $0x118] sm:$0xff]
    %v1106 = vld [vmem:[%s3 + $0x120] sm:$0xff]
    %v1107 = vld [vmem:[%s3 + $0x128] sm:$0xff]
    %v1108 = vld [vmem:[%s3 + $0x130] sm:$0xff]
    %v1109 = vld [vmem:[%s3 + $0x138] sm:$0xff]
    %v1110 = vld [vmem:[%s3 + $0x140] sm:$0xff]
    %v1111 = vld [vmem:[%s3 + $0x148] sm:$0xff]
    %v1112 = vld [vmem:[%s3 + $0x150] sm:$0xff]
    %v1113 = vld [vmem:[%s3 + $0x158] sm:$0xff]
    %v1114 = vld [vmem:[%s3 + $0x160] sm:$0xff]
    %v1115 = vld [vmem:[%s3 + $0x168] sm:$0xff]
    %v1116 = vld [vmem:[%s3 + $0x170] sm:$0xff]
    %v1117 = vld [vmem:[%s3 + $0x178] sm:$0xff]
    %v1118 = vld [vmem:[%s3 + $0x180] sm:$0xff]
    %v1119 = vld [vmem:[%s3 + $0x188] sm:$0xff]
    %v1120 = vld [vmem:[%s3 + $0x190] sm:$0xff]
    %v1121 = vld [vmem:[%s3 + $0x198] sm:$0xff]
    %v1122 = vld [vmem:[%s3 + $0x1a0] sm:$0xff]
    %v1123 = vld [vmem:[%s3 + $0x1a8] sm:$0xff]
    %v1124 = vld [vmem:[%s3 + $0x1b0] sm:$0xff]
    %v1125 = vld [vmem:[%s3 + $0x1b8] sm:$0xff]
    %v1126 = vld [vmem:[%s3 + $0x1c0] sm:$0xff]
    %v1127 = vld [vmem:[%s3 + $0x1c8] sm:$0xff]
    %v1128 = vld [vmem:[%s3 + $0x1d0] sm:$0xff]
    %v1129 = vld [vmem:[%s3 + $0x1d8] sm:$0xff]
    %v1130 = vld [vmem:[%s3 + $0x1e0] sm:$0xff]
    %v1131 = vld [vmem:[%s3 + $0x1e8] sm:$0xff]
    %v1132 = vld [vmem:[%s3 + $0x1f0] sm:$0xff]
    %v1133 = vld [vmem:[%s3 + $0x1f8] sm:$0xff]
    %v1134 = vld [vmem:[%s3 + $0x200] sm:$0xff]
    %v1135 = vld [vmem:[%s3 + $0x208] sm:$0xff]
    %v1136 = vld [vmem:[%s3 + $0x210] sm:$0xff]
    %v1137 = vld [vmem:[%s3 + $0x218] sm:$0xff]
    %v1138 = vld [vmem:[%s3 + $0x220] sm:$0xff]
    %v1139 = vld [vmem:[%s3 + $0x228] sm:$0xff]
    %v1140 = vld [vmem:[%s3 + $0x230] sm:$0xff]
    %v1141 = vld [vmem:[%s3 + $0x238] sm:$0xff]
    %v1142 = vld [vmem:[%s3 + $0x240] sm:$0xff]
    %v1143 = vld [vmem:[%s3 + $0x248] sm:$0xff]
    %v1144 = vld [vmem:[%s3 + $0x250] sm:$0xff]
    %v1145 = vld [vmem:[%s3 + $0x258] sm:$0xff]
    %v1146 = vld [vmem:[%s3 + $0x260] sm:$0xff]
    %v1147 = vld [vmem:[%s3 + $0x268] sm:$0xff]
    %v1148 = vld [vmem:[%s3 + $0x270] sm:$0xff]
    %v1149 = vld [vmem:[%s3 + $0x278] sm:$0xff]
    %v1150 = vld [vmem:[%s3 + $0x280] sm:$0xff]
    %v1151 = vld [vmem:[%s3 + $0x288] sm:$0xff]
    %v1152 = vld [vmem:[%s3 + $0x290] sm:$0xff]
    %v1153 = vld [vmem:[%s3 + $0x298] sm:$0xff]
    %v1154 = vld [vmem:[%s3 + $0x2a0] sm:$0xff]
    %v1155 = vld [vmem:[%s3 + $0x2a8] sm:$0xff]
    %v1156 = vld [vmem:[%s3 + $0x2b0] sm:$0xff]
    %v1157 = vld [vmem:[%s3 + $0x2b8] sm:$0xff]
    %v1158 = vld [vmem:[%s3 + $0x2c0] sm:$0xff]
    %v1159 = vld [vmem:[%s3 + $0x2c8] sm:$0xff]
    %v1160 = vld [vmem:[%s3 + $0x2d0] sm:$0xff]
    %v1161 = vld [vmem:[%s3 + $0x2d8] sm:$0xff]
    %v1162 = vld [vmem:[%s3 + $0x2e0] sm:$0xff]
    %v1163 = vld [vmem:[%s3 + $0x2e8] sm:$0xff]
    %v1164 = vld [vmem:[%s3 + $0x2f0] sm:$0xff]
    %v1165 = vld [vmem:[%s3 + $0x2f8] sm:$0xff]
    %v1166 = vld [vmem:[%s3 + $0x300] sm:$0xff]
    %v1167 = vld [vmem:[%s3 + $0x308] sm:$0xff]
    %v1168 = vld [vmem:[%s3 + $0x310] sm:$0xff]
    %v1169 = vld [vmem:[%s3 + $0x318] sm:$0xff]
    %v1170 = vld [vmem:[%s3 + $0x320] sm:$0xff]
    %v1171 = vld [vmem:[%s3 + $0x328] sm:$0xff]
    %v1172 = vld [vmem:[%s3 + $0x330] sm:$0xff]
    %v1173 = vld [vmem:[%s3 + $0x338] sm:$0xff]
    %v1174 = vld [vmem:[%s3 + $0x340] sm:$0xff]
    %v1175 = vld [vmem:[%s3 + $0x348] sm:$0xff]
    %v1176 = vld [vmem:[%s3 + $0x350] sm:$0xff]
    %v1177 = vld [vmem:[%s3 + $0x358] sm:$0xff]
    %v1178 = vld [vmem:[%s3 + $0x360] sm:$0xff]
    %v1179 = vld [vmem:[%s3 + $0x368] sm:$0xff]
    %v1180 = vld [vmem:[%s3 + $0x370] sm:$0xff]
    %v1181 = vld [vmem:[%s3 + $0x378] sm:$0xff]
    %v1182 = vld [vmem:[%s3 + $0x380] sm:$0xff]
    %v1183 = vld [vmem:[%s3 + $0x388] sm:$0xff]
    %v1184 = vld [vmem:[%s3 + $0x390] sm:$0xff]
    %v1185 = vld [vmem:[%s3 + $0x398] sm:$0xff]
    %v1186 = vld [vmem:[%s3 + $0x3a0] sm:$0xff]
    %v1187 = vld [vmem:[%s3 + $0x3a8] sm:$0xff]
    %v1188 = vld [vmem:[%s3 + $0x3b0] sm:$0xff]
    %v1189 = vld [vmem:[%s3 + $0x3b8] sm:$0xff]
    %v1190 = vld [vmem:[%s3 + $0x3c0] sm:$0xff]
    %v1191 = vld [vmem:[%s3 + $0x3c8] sm:$0xff]
    %v1192 = vld [vmem:[%s3 + $0x3d0] sm:$0xff]
    %v1193 = vld [vmem:[%s3 + $0x3d8] sm:$0xff]
    %v1194 = vld [vmem:[%s3 + $0x3e0] sm:$0xff]
    %v1195 = vld [vmem:[%s3 + $0x3e8] sm:$0xff]
    %v1196 = vld [vmem:[%s3 + $0x3f0] sm:$0xff]
    %v1197 = vld [vmem:[%s3 + $0x3f8] sm:$0xff]
    %v1198 = vld [vmem:[%s4] sm:$0x3]
    %v1200 = vperm.slane %v1198, 0
    %v1201 = vperm.slane %v1198, 1
    %1204 = vmatpush.msra.mxu0 %v1100
    %1205 = vmatpush.msra.mxu0 %v1098
    %1206 = vmatpush.msra.mxu0 %v1096
    %1207 = vmatpush.msra.mxu0 %v1094
    %1208 = vmatpush.msra.mxu0 %v1092
    %1209 = vmatpush.msra.mxu0 %v1090
    %1210 = vmatpush.msra.mxu0 %v1088
    %1211 = vmatpush.msra.mxu0 %v1086
    %1212 = vmatpush.msra.mxu0 %v1084
    %1213 = vmatpush.msra.mxu0 %v1082
    %1214 = vmatpush.msra.mxu0 %v1080
    %1215 = vmatpush.msra.mxu0 %v1078
    %1216 = vmatpush.msra.mxu0 %v1076
    %1217 = vmatpush.msra.mxu0 %v1074
    %1218 = vmatpush.msra.mxu0 %v1072
    %1219 = vmatpush.msra.mxu0 %v1070
    %1220 = vmatmul.f32.gmra.mxu0 %v1066
    %v1221 = vpop.f32.mrf.mxu0
    %v1222 = vadd.f32 %v1200, %v1221
    %1223 = vdwg.mxu0
    %1224 = vmatpush.msra.mxu0 %v1132
    %1225 = vmatpush.msra.mxu0 %v1130
    %1226 = vmatpush.msra.mxu0 %v1128
    %1227 = vmatpush.msra.mxu0 %v1126
    %1228 = vmatpush.msra.mxu0 %v1124
    %1229 = vmatpush.msra.mxu0 %v1122
    %1230 = vmatpush.msra.mxu0 %v1120
    %1231 = vmatpush.msra.mxu0 %v1118
    %1232 = vmatpush.msra.mxu0 %v1116
    %1233 = vmatpush.msra.mxu0 %v1114
    %1234 = vmatpush.msra.mxu0 %v1112
    %1235 = vmatpush.msra.mxu0 %v1110
    %1236 = vmatpush.msra.mxu0 %v1108
    %1237 = vmatpush.msra.mxu0 %v1106
    %1238 = vmatpush.msra.mxu0 %v1104
    %1239 = vmatpush.msra.mxu0 %v1102
    %1240 = vmatmul.f32.gmra.mxu0 %v1067
    %v1241 = vpop.f32.mrf.mxu0
    %v1242 = vadd.f32 %v1222, %v1241
    %1243 = vdwg.mxu0
    %1244 = vmatpush.msra.mxu0 %v1164
    %1245 = vmatpush.msra.mxu0 %v1162
    %1246 = vmatpush.msra.mxu0 %v1160
    %1247 = vmatpush.msra.mxu0 %v1158
    %1248 = vmatpush.msra.mxu0 %v1156
    %1249 = vmatpush.msra.mxu0 %v1154
    %1250 = vmatpush.msra.mxu0 %v1152
    %1251 = vmatpush.msra.mxu0 %v1150
    %1252 = vmatpush.msra.mxu0 %v1148
    %1253 = vmatpush.msra.mxu0 %v1146
    %1254 = vmatpush.msra.mxu0 %v1144
    %1255 = vmatpush.msra.mxu0 %v1142
    %1256 = vmatpush.msra.mxu0 %v1140
    %1257 = vmatpush.msra.mxu0 %v1138
    %1258 = vmatpush.msra.mxu0 %v1136
    %1259 = vmatpush.msra.mxu0 %v1134
    %1260 = vmatmul.f32.gmra.mxu0 %v1068
    %v1261 = vpop.f32.mrf.mxu0
    %v1262 = vadd.f32 %v1242, %v1261
    %1263 = vdwg.mxu0
    %1264 = vmatpush.msra.mxu0 %v1196
    %1265 = vmatpush.msra.mxu0 %v1194
    %1266 = vmatpush.msra.mxu0 %v1192
    %1267 = vmatpush.msra.mxu0 %v1190
    %1268 = vmatpush.msra.mxu0 %v1188
    %1269 = vmatpush.msra.mxu0 %v1186
    %1270 = vmatpush.msra.mxu0 %v1184
    %1271 = vmatpush.msra.mxu0 %v1182
    %1272 = vmatpush.msra.mxu0 %v1180
    %1273 = vmatpush.msra.mxu0 %v1178
    %1274 = vmatpush.msra.mxu0 %v1176
    %1275 = vmatpush.msra.mxu0 %v1174
    %1276 = vmatpush.msra.mxu0 %v1172
    %1277 = vmatpush.msra.mxu0 %v1170
    %1278 = vmatpush.msra.mxu0 %v1168
    %1279 = vmatpush.msra.mxu0 %v1166
    %1280 = vmatmul.f32.gmra.mxu0 %v1069
    %v1281 = vpop.f32.mrf.mxu0
    %v1282 = vadd.f32 %v1262, %v1281
    %1283 = vdwg.mxu0
    %1284 = vmatpush.msra.mxu0 %v1101
    %1285 = vmatpush.msra.mxu0 %v1099
    %1286 = vmatpush.msra.mxu0 %v1097
    %1287 = vmatpush.msra.mxu0 %v1095
    %1288 = vmatpush.msra.mxu0 %v1093
    %1289 = vmatpush.msra.mxu0 %v1091
    %1290 = vmatpush.msra.mxu0 %v1089
    %1291 = vmatpush.msra.mxu0 %v1087
    %1292 = vmatpush.msra.mxu0 %v1085
    %1293 = vmatpush.msra.mxu0 %v1083
    %1294 = vmatpush.msra.mxu0 %v1081
    %1295 = vmatpush.msra.mxu0 %v1079
    %1296 = vmatpush.msra.mxu0 %v1077
    %1297 = vmatpush.msra.mxu0 %v1075
    %1298 = vmatpush.msra.mxu0 %v1073
    %1299 = vmatpush.msra.mxu0 %v1071
    %1300 = vmatmul.f32.gmra.mxu0 %v1066
    %v1301 = vpop.f32.mrf.mxu0
    %v1302 = vadd.f32 %v1201, %v1301
    %1303 = vdwg.mxu0
    %1304 = vmatpush.msra.mxu0 %v1133
    %1305 = vmatpush.msra.mxu0 %v1131
    %1306 = vmatpush.msra.mxu0 %v1129
    %1307 = vmatpush.msra.mxu0 %v1127
    %1308 = vmatpush.msra.mxu0 %v1125
    %1309 = vmatpush.msra.mxu0 %v1123
    %1310 = vmatpush.msra.mxu0 %v1121
    %1311 = vmatpush.msra.mxu0 %v1119
    %1312 = vmatpush.msra.mxu0 %v1117
    %1313 = vmatpush.msra.mxu0 %v1115
    %1314 = vmatpush.msra.mxu0 %v1113
    %1315 = vmatpush.msra.mxu0 %v1111
    %1316 = vmatpush.msra.mxu0 %v1109
    %1317 = vmatpush.msra.mxu0 %v1107
    %1318 = vmatpush.msra.mxu0 %v1105
    %1319 = vmatpush.msra.mxu0 %v1103
    %1320 = vmatmul.f32.gmra.mxu0 %v1067
    %v1321 = vpop.f32.mrf.mxu0
    %v1322 = vadd.f32 %v1302, %v1321
    %1323 = vdwg.mxu0
    %1324 = vmatpush.msra.mxu0 %v1165
    %1325 = vmatpush.msra.mxu0 %v1163
    %1326 = vmatpush.msra.mxu0 %v1161
    %1327 = vmatpush.msra.mxu0 %v1159
    %1328 = vmatpush.msra.mxu0 %v1157
    %1329 = vmatpush.msra.mxu0 %v1155
    %1330 = vmatpush.msra.mxu0 %v1153
    %1331 = vmatpush.msra.mxu0 %v1151
    %1332 = vmatpush.msra.mxu0 %v1149
    %1333 = vmatpush.msra.mxu0 %v1147
    %1334 = vmatpush.msra.mxu0 %v1145
    %1335 = vmatpush.msra.mxu0 %v1143
    %1336 = vmatpush.msra.mxu0 %v1141
    %1337 = vmatpush.msra.mxu0 %v1139
    %1338 = vmatpush.msra.mxu0 %v1137
    %1339 = vmatpush.msra.mxu0 %v1135
    %1340 = vmatmul.f32.gmra.mxu0 %v1068
    %v1341 = vpop.f32.mrf.mxu0
    %v1342 = vadd.f32 %v1322, %v1341
    %1343 = vdwg.mxu0
    %1344 = vmatpush.msra.mxu0 %v1197
    %1345 = vmatpush.msra.mxu0 %v1195
    %1346 = vmatpush.msra.mxu0 %v1193
    %1347 = vmatpush.msra.mxu0 %v1191
    %1348 = vmatpush.msra.mxu0 %v1189
    %1349 = vmatpush.msra.mxu0 %v1187
    %1350 = vmatpush.msra.mxu0 %v1185
    %1351 = vmatpush.msra.mxu0 %v1183
    %1352 = vmatpush.msra.mxu0 %v1181
    %1353 = vmatpush.msra.mxu0 %v1179
    %1354 = vmatpush.msra.mxu0 %v1177
    %1355 = vmatpush.msra.mxu0 %v1175
    %1356 = vmatpush.msra.mxu0 %v1173
    %1357 = vmatpush.msra.mxu0 %v1171
    %1358 = vmatpush.msra.mxu0 %v1169
    %1359 = vmatpush.msra.mxu0 %v1167
    %1360 = vmatmul.f32.gmra.mxu0 %v1069
    %v1361 = vpop.f32.mrf.mxu0
    %v1362 = vadd.f32 %v1342, %v1361
    %1363 = vdwg.mxu0
    %v1364 = vtanh.pop %v1282
    %v1365 = vtanh.pop %v1362
    %v1366 = vld [vmem:[%s5] sm:$0xff]
    %v1367 = vld [vmem:[%s5 + $0x8] sm:$0xff]
    %v1368 = vld [vmem:[%s5 + $0x10] sm:$0xff]
    %v1369 = vld [vmem:[%s5 + $0x18] sm:$0xff]
    %v1370 = vld [vmem:[%s5 + $0x20] sm:$0xff]
    %v1371 = vld [vmem:[%s5 + $0x28] sm:$0xff]
    %v1372 = vld [vmem:[%s5 + $0x30] sm:$0xff]
    %v1373 = vld [vmem:[%s5 + $0x38] sm:$0xff]
    %v1374 = vld [vmem:[%s5 + $0x40] sm:$0xff]
    %v1375 = vld [vmem:[%s5 + $0x48] sm:$0xff]
    %v1376 = vld [vmem:[%s5 + $0x50] sm:$0xff]
    %v1377 = vld [vmem:[%s5 + $0x58] sm:$0xff]
    %v1378 = vld [vmem:[%s5 + $0x60] sm:$0xff]
    %v1379 = vld [vmem:[%s5 + $0x68] sm:$0xff]
    %v1380 = vld [vmem:[%s5 + $0x70] sm:$0xff]
    %v1381 = vld [vmem:[%s5 + $0x78] sm:$0xff]
    %v1382 = vld [vmem:[%s5 + $0x80] sm:$0xff]
    %v1383 = vld [vmem:[%s5 + $0x88] sm:$0xff]
    %v1384 = vld [vmem:[%s5 + $0x90] sm:$0xff]
    %v1385 = vld [vmem:[%s5 + $0x98] sm:$0xff]
    %v1386 = vld [vmem:[%s5 + $0xa0] sm:$0xff]
    %v1387 = vld [vmem:[%s5 + $0xa8] sm:$0xff]
    %v1388 = vld [vmem:[%s5 + $0xb0] sm:$0xff]
    %v1389 = vld [vmem:[%s5 + $0xb8] sm:$0xff]
    %v1390 = vld [vmem:[%s5 + $0xc0] sm:$0xff]
    %v1391 = vld [vmem:[%s5 + $0xc8] sm:$0xff]
    %v1392 = vld [vmem:[%s5 + $0xd0] sm:$0xff]
    %v1393 = vld [vmem:[%s5 + $0xd8] sm:$0xff]
    %v1394 = vld [vmem:[%s5 + $0xe0] sm:$0xff]
    %v1395 = vld [vmem:[%s5 + $0xe8] sm:$0xff]
    %v1396 = vld [vmem:[%s5 + $0xf0] sm:$0xff]
    %v1397 = vld [vmem:[%s5 + $0xf8] sm:$0xff]
    %v1398 = vld [vmem:[%s6] sm:$0x1]
    %v1400 = vperm.slane %v1398, 0
    %1402 = vmatpush.msra.mxu0 %v1381
    %1403 = vmatpush.msra.mxu0 %v1380
    %1404 = vmatpush.msra.mxu0 %v1379
    %1405 = vmatpush.msra.mxu0 %v1378
    %1406 = vmatpush.msra.mxu0 %v1377
    %1407 = vmatpush.msra.mxu0 %v1376
    %1408 = vmatpush.msra.mxu0 %v1375
    %1409 = vmatpush.msra.mxu0 %v1374
    %1410 = vmatpush.msra.mxu0 %v1373
    %1411 = vmatpush.msra.mxu0 %v1372
    %1412 = vmatpush.msra.mxu0 %v1371
    %1413 = vmatpush.msra.mxu0 %v1370
    %1414 = vmatpush.msra.mxu0 %v1369
    %1415 = vmatpush.msra.mxu0 %v1368
    %1416 = vmatpush.msra.mxu0 %v1367
    %1417 = vmatpush.msra.mxu0 %v1366
    %1418 = vmatmul.f32.gmra.mxu0 %v1364
    %v1419 = vpop.f32.mrf.mxu0
    %v1420 = vadd.f32 %v1400, %v1419
    %1421 = vdwg.mxu0
    %1422 = vmatpush.msra.mxu0 %v1397
    %1423 = vmatpush.msra.mxu0 %v1396
    %1424 = vmatpush.msra.mxu0 %v1395
    %1425 = vmatpush.msra.mxu0 %v1394
    %1426 = vmatpush.msra.mxu0 %v1393
    %1427 = vmatpush.msra.mxu0 %v1392
    %1428 = vmatpush.msra.mxu0 %v1391
    %1429 = vmatpush.msra.mxu0 %v1390
    %1430 = vmatpush.msra.mxu0 %v1389
    %1431 = vmatpush.msra.mxu0 %v1388
    %1432 = vmatpush.msra.mxu0 %v1387
    %1433 = vmatpush.msra.mxu0 %v1386
    %1434 = vmatpush.msra.mxu0 %v1385
    %1435 = vmatpush.msra.mxu0 %v1384
    %1436 = vmatpush.msra.mxu0 %v1383
    %1437 = vmatpush.msra.mxu0 %v1382
    %1438 = vmatmul.f32.gmra.mxu0 %v1365
    %v1439 = vpop.f32.mrf.mxu0
    %v1440 = vadd.f32 %v1420, %v1439
    %1441 = vdwg.mxu0
    %v1442 = vmul.f32 %v1440, %v1440
    %1443 = vadd.xlane.f32.xlu0 %v1442
    %v1444 = vpop.xlane.xlu0 %1443
    %v1445 = vrsqrt.pop %v1444
    %v1446 = vmul.f32 %v1445, %v1444
    %v1447 = vmul.f32 %v1446, %v1445
    %v1448 = vmul.f32 0.5, %v1447
    %v1449 = vsub.f32 1.5, %v1448
    %v1450 = vmul.f32 %v1445, %v1449
    %vm1451 = vweird.f32 %v1444
    %vm1452 = vweird.f32 %v1445
    %vm1453 = vmor %vm1451, %vm1452
    %v1454 = vsel %vm1453, %v1445, %v1450
    %v1455 = vmul.f32 %v1440, %v1454
    %1456 = vst [vmem:[#allocation2] sm:$0xff] %v1455
    %v1457 = vld [vmem:[%s7] sm:$0xff]
    %v1458 = vld [vmem:[%s7 + $0x8] sm:$0xff]
    %v1459 = vld [vmem:[%s7 + $0x10] sm:$0xff]
    %v1460 = vld [vmem:[%s7 + $0x18] sm:$0xff]
    %v1461 = vld [vmem:[%s7 + $0x20] sm:$0xff]
    %v1462 = vld [vmem:[%s7 + $0x28] sm:$0xff]
    %v1463 = vld [vmem:[%s7 + $0x30] sm:$0xff]
    %v1464 = vld [vmem:[%s7 + $0x38] sm:$0xff]
    %v1465 = vld [vmem:[%s7 + $0x40] sm:$0xff]
    %v1466 = vld [vmem:[%s7 + $0x48] sm:$0xff]
    %v1467 = vld [vmem:[%s7 + $0x50] sm:$0xff]
    %v1468 = vld [vmem:[%s7 + $0x58] sm:$0xff]
    %v1469 = vld [vmem:[%s7 + $0x60] sm:$0xff]
    %v1470 = vld [vmem:[%s7 + $0x68] sm:$0xff]
    %v1471 = vld [vmem:[%s7 + $0x70] sm:$0xff]
    %v1472 = vld [vmem:[%s7 + $0x78] sm:$0xff]
    %v1473 = vld [vmem:[%s7 + $0x80] sm:$0xff]
    %v1474 = vld [vmem:[%s7 + $0x88] sm:$0xff]
    %v1475 = vld [vmem:[%s7 + $0x90] sm:$0xff]
    %v1476 = vld [vmem:[%s7 + $0x98] sm:$0xff]
    %v1477 = vld [vmem:[%s7 + $0xa0] sm:$0xff]
    %v1478 = vld [vmem:[%s7 + $0xa8] sm:$0xff]
    %v1479 = vld [vmem:[%s7 + $0xb0] sm:$0xff]
    %v1480 = vld [vmem:[%s7 + $0xb8] sm:$0xff]
    %v1481 = vld [vmem:[%s7 + $0xc0] sm:$0xff]
    %v1482 = vld [vmem:[%s7 + $0xc8] sm:$0xff]
    %v1483 = vld [vmem:[%s7 + $0xd0] sm:$0xff]
    %v1484 = vld [vmem:[%s7 + $0xd8] sm:$0xff]
    %v1485 = vld [vmem:[%s7 + $0xe0] sm:$0xff]
    %v1486 = vld [vmem:[%s7 + $0xe8] sm:$0xff]
    %v1487 = vld [vmem:[%s7 + $0xf0] sm:$0xff]
    %v1488 = vld [vmem:[%s7 + $0xf8] sm:$0xff]
    %v1489 = vld [vmem:[%s8] sm:$0x3]
    %v1491 = vperm.slane %v1489, 0
    %v1492 = vperm.slane %v1489, 1
    %1495 = vmatpush.msra.mxu0 %v1487
    %1496 = vmatpush.msra.mxu0 %v1485
    %1497 = vmatpush.msra.mxu0 %v1483
    %1498 = vmatpush.msra.mxu0 %v1481
    %1499 = vmatpush.msra.mxu0 %v1479
    %1500 = vmatpush.msra.mxu0 %v1477
    %1501 = vmatpush.msra.mxu0 %v1475
    %1502 = vmatpush.msra.mxu0 %v1473
    %1503 = vmatpush.msra.mxu0 %v1471
    %1504 = vmatpush.msra.mxu0 %v1469
    %1505 = vmatpush.msra.mxu0 %v1467
    %1506 = vmatpush.msra.mxu0 %v1465
    %1507 = vmatpush.msra.mxu0 %v1463
    %1508 = vmatpush.msra.mxu0 %v1461
    %1509 = vmatpush.msra.mxu0 %v1459
    %1510 = vmatpush.msra.mxu0 %v1457
    %1511 = vmatmul.f32.gmra.mxu0 %v1455
    %v1512 = vpop.f32.mrf.mxu0
    %v1513 = vadd.f32 %v1491, %v1512
    %1514 = vdwg.mxu0
    %1515 = vmatpush.msra.mxu0 %v1488
    %1516 = vmatpush.msra.mxu0 %v1486
    %1517 = vmatpush.msra.mxu0 %v1484
    %1518 = vmatpush.msra.mxu0 %v1482
    %1519 = vmatpush.msra.mxu0 %v1480
    %1520 = vmatpush.msra.mxu0 %v1478
    %1521 = vmatpush.msra.mxu0 %v1476
    %1522 = vmatpush.msra.mxu0 %v1474
    %1523 = vmatpush.msra.mxu0 %v1472
    %1524 = vmatpush.msra.mxu0 %v1470
    %1525 = vmatpush.msra.mxu0 %v1468
    %1526 = vmatpush.msra.mxu0 %v1466
    %1527 = vmatpush.msra.mxu0 %v1464
    %1528 = vmatpush.msra.mxu0 %v1462
    %1529 = vmatpush.msra.mxu0 %v1460
    %1530 = vmatpush.msra.mxu0 %v1458
    %1531 = vmatmul.f32.gmra.mxu0 %v1455
    %v1532 = vpop.f32.mrf.mxu0
    %v1533 = vadd.f32 %v1492, %v1532
    %1534 = vdwg.mxu0
    %v1535 = vtanh.pop %v1513
    %v1536 = vtanh.pop %v1533
    %v1537 = vld [vmem:[%s9] sm:$0xff]
    %v1538 = vld [vmem:[%s9 + $0x8] sm:$0xff]
    %v1539 = vld [vmem:[%s9 + $0x10] sm:$0xff]
    %v1540 = vld [vmem:[%s9 + $0x18] sm:$0xff]
    %v1541 = vld [vmem:[%s9 + $0x20] sm:$0xff]
    %v1542 = vld [vmem:[%s9 + $0x28] sm:$0xff]
    %v1543 = vld [vmem:[%s9 + $0x30] sm:$0xff]
    %v1544 = vld [vmem:[%s9 + $0x38] sm:$0xff]
    %v1545 = vld [vmem:[%s9 + $0x40] sm:$0xff]
    %v1546 = vld [vmem:[%s9 + $0x48] sm:$0xff]
    %v1547 = vld [vmem:[%s9 + $0x50] sm:$0xff]
    %v1548 = vld [vmem:[%s9 + $0x58] sm:$0xff]
    %v1549 = vld [vmem:[%s9 + $0x60] sm:$0xff]
    %v1550 = vld [vmem:[%s9 + $0x68] sm:$0xff]
    %v1551 = vld [vmem:[%s9 + $0x70] sm:$0xff]
    %v1552 = vld [vmem:[%s9 + $0x78] sm:$0xff]
    %v1553 = vld [vmem:[%s9 + $0x80] sm:$0xff]
    %v1554 = vld [vmem:[%s9 + $0x88] sm:$0xff]
    %v1555 = vld [vmem:[%s9 + $0x90] sm:$0xff]
    %v1556 = vld [vmem:[%s9 + $0x98] sm:$0xff]
    %v1557 = vld [vmem:[%s9 + $0xa0] sm:$0xff]
    %v1558 = vld [vmem:[%s9 + $0xa8] sm:$0xff]
    %v1559 = vld [vmem:[%s9 + $0xb0] sm:$0xff]
    %v1560 = vld [vmem:[%s9 + $0xb8] sm:$0xff]
    %v1561 = vld [vmem:[%s9 + $0xc0] sm:$0xff]
    %v1562 = vld [vmem:[%s9 + $0xc8] sm:$0xff]
    %v1563 = vld [vmem:[%s9 + $0xd0] sm:$0xff]
    %v1564 = vld [vmem:[%s9 + $0xd8] sm:$0xff]
    %v1565 = vld [vmem:[%s9 + $0xe0] sm:$0xff]
    %v1566 = vld [vmem:[%s9 + $0xe8] sm:$0xff]
    %v1567 = vld [vmem:[%s9 + $0xf0] sm:$0xff]
    %v1568 = vld [vmem:[%s9 + $0xf8] sm:$0xff]
    %v1569 = vld [vmem:[%s9 + $0x100] sm:$0xff]
    %v1570 = vld [vmem:[%s9 + $0x108] sm:$0xff]
    %v1571 = vld [vmem:[%s9 + $0x110] sm:$0xff]
    %v1572 = vld [vmem:[%s9 + $0x118] sm:$0xff]
    %v1573 = vld [vmem:[%s9 + $0x120] sm:$0xff]
    %v1574 = vld [vmem:[%s9 + $0x128] sm:$0xff]
    %v1575 = vld [vmem:[%s9 + $0x130] sm:$0xff]
    %v1576 = vld [vmem:[%s9 + $0x138] sm:$0xff]
    %v1577 = vld [vmem:[%s9 + $0x140] sm:$0xff]
    %v1578 = vld [vmem:[%s9 + $0x148] sm:$0xff]
    %v1579 = vld [vmem:[%s9 + $0x150] sm:$0xff]
    %v1580 = vld [vmem:[%s9 + $0x158] sm:$0xff]
    %v1581 = vld [vmem:[%s9 + $0x160] sm:$0xff]
    %v1582 = vld [vmem:[%s9 + $0x168] sm:$0xff]
    %v1583 = vld [vmem:[%s9 + $0x170] sm:$0xff]
    %v1584 = vld [vmem:[%s9 + $0x178] sm:$0xff]
    %v1585 = vld [vmem:[%s9 + $0x180] sm:$0xff]
    %v1586 = vld [vmem:[%s9 + $0x188] sm:$0xff]
    %v1587 = vld [vmem:[%s9 + $0x190] sm:$0xff]
    %v1588 = vld [vmem:[%s9 + $0x198] sm:$0xff]
    %v1589 = vld [vmem:[%s9 + $0x1a0] sm:$0xff]
    %v1590 = vld [vmem:[%s9 + $0x1a8] sm:$0xff]
    %v1591 = vld [vmem:[%s9 + $0x1b0] sm:$0xff]
    %v1592 = vld [vmem:[%s9 + $0x1b8] sm:$0xff]
    %v1593 = vld [vmem:[%s9 + $0x1c0] sm:$0xff]
    %v1594 = vld [vmem:[%s9 + $0x1c8] sm:$0xff]
    %v1595 = vld [vmem:[%s9 + $0x1d0] sm:$0xff]
    %v1596 = vld [vmem:[%s9 + $0x1d8] sm:$0xff]
    %v1597 = vld [vmem:[%s9 + $0x1e0] sm:$0xff]
    %v1598 = vld [vmem:[%s9 + $0x1e8] sm:$0xff]
    %v1599 = vld [vmem:[%s9 + $0x1f0] sm:$0xff]
    %v1600 = vld [vmem:[%s9 + $0x1f8] sm:$0xff]
    %v1601 = vld [vmem:[%s9 + $0x200] sm:$0xff]
    %v1602 = vld [vmem:[%s9 + $0x208] sm:$0xff]
    %v1603 = vld [vmem:[%s9 + $0x210] sm:$0xff]
    %v1604 = vld [vmem:[%s9 + $0x218] sm:$0xff]
    %v1605 = vld [vmem:[%s9 + $0x220] sm:$0xff]
    %v1606 = vld [vmem:[%s9 + $0x228] sm:$0xff]
    %v1607 = vld [vmem:[%s9 + $0x230] sm:$0xff]
    %v1608 = vld [vmem:[%s9 + $0x238] sm:$0xff]
    %v1609 = vld [vmem:[%s9 + $0x240] sm:$0xff]
    %v1610 = vld [vmem:[%s9 + $0x248] sm:$0xff]
    %v1611 = vld [vmem:[%s9 + $0x250] sm:$0xff]
    %v1612 = vld [vmem:[%s9 + $0x258] sm:$0xff]
    %v1613 = vld [vmem:[%s9 + $0x260] sm:$0xff]
    %v1614 = vld [vmem:[%s9 + $0x268] sm:$0xff]
    %v1615 = vld [vmem:[%s9 + $0x270] sm:$0xff]
    %v1616 = vld [vmem:[%s9 + $0x278] sm:$0xff]
    %v1617 = vld [vmem:[%s9 + $0x280] sm:$0xff]
    %v1618 = vld [vmem:[%s9 + $0x288] sm:$0xff]
    %v1619 = vld [vmem:[%s9 + $0x290] sm:$0xff]
    %v1620 = vld [vmem:[%s9 + $0x298] sm:$0xff]
    %v1621 = vld [vmem:[%s9 + $0x2a0] sm:$0xff]
    %v1622 = vld [vmem:[%s9 + $0x2a8] sm:$0xff]
    %v1623 = vld [vmem:[%s9 + $0x2b0] sm:$0xff]
    %v1624 = vld [vmem:[%s9 + $0x2b8] sm:$0xff]
    %v1625 = vld [vmem:[%s9 + $0x2c0] sm:$0xff]
    %v1626 = vld [vmem:[%s9 + $0x2c8] sm:$0xff]
    %v1627 = vld [vmem:[%s9 + $0x2d0] sm:$0xff]
    %v1628 = vld [vmem:[%s9 + $0x2d8] sm:$0xff]
    %v1629 = vld [vmem:[%s9 + $0x2e0] sm:$0xff]
    %v1630 = vld [vmem:[%s9 + $0x2e8] sm:$0xff]
    %v1631 = vld [vmem:[%s9 + $0x2f0] sm:$0xff]
    %v1632 = vld [vmem:[%s9 + $0x2f8] sm:$0xff]
    %v1633 = vld [vmem:[%s9 + $0x300] sm:$0xff]
    %v1634 = vld [vmem:[%s9 + $0x308] sm:$0xff]
    %v1635 = vld [vmem:[%s9 + $0x310] sm:$0xff]
    %v1636 = vld [vmem:[%s9 + $0x318] sm:$0xff]
    %v1637 = vld [vmem:[%s9 + $0x320] sm:$0xff]
    %v1638 = vld [vmem:[%s9 + $0x328] sm:$0xff]
    %v1639 = vld [vmem:[%s9 + $0x330] sm:$0xff]
    %v1640 = vld [vmem:[%s9 + $0x338] sm:$0xff]
    %v1641 = vld [vmem:[%s9 + $0x340] sm:$0xff]
    %v1642 = vld [vmem:[%s9 + $0x348] sm:$0xff]
    %v1643 = vld [vmem:[%s9 + $0x350] sm:$0xff]
    %v1644 = vld [vmem:[%s9 + $0x358] sm:$0xff]
    %v1645 = vld [vmem:[%s9 + $0x360] sm:$0xff]
    %v1646 = vld [vmem:[%s9 + $0x368] sm:$0xff]
    %v1647 = vld [vmem:[%s9 + $0x370] sm:$0xff]
    %v1648 = vld [vmem:[%s9 + $0x378] sm:$0xff]
    %v1649 = vld [vmem:[%s9 + $0x380] sm:$0xff]
    %v1650 = vld [vmem:[%s9 + $0x388] sm:$0xff]
    %v1651 = vld [vmem:[%s9 + $0x390] sm:$0xff]
    %v1652 = vld [vmem:[%s9 + $0x398] sm:$0xff]
    %v1653 = vld [vmem:[%s9 + $0x3a0] sm:$0xff]
    %v1654 = vld [vmem:[%s9 + $0x3a8] sm:$0xff]
    %v1655 = vld [vmem:[%s9 + $0x3b0] sm:$0xff]
    %v1656 = vld [vmem:[%s9 + $0x3b8] sm:$0xff]
    %v1657 = vld [vmem:[%s9 + $0x3c0] sm:$0xff]
    %v1658 = vld [vmem:[%s9 + $0x3c8] sm:$0xff]
    %v1659 = vld [vmem:[%s9 + $0x3d0] sm:$0xff]
    %v1660 = vld [vmem:[%s9 + $0x3d8] sm:$0xff]
    %v1661 = vld [vmem:[%s9 + $0x3e0] sm:$0xff]
    %v1662 = vld [vmem:[%s9 + $0x3e8] sm:$0xff]
    %v1663 = vld [vmem:[%s9 + $0x3f0] sm:$0xff]
    %v1664 = vld [vmem:[%s9 + $0x3f8] sm:$0xff]
    %v1665 = vld [vmem:[%s10] sm:$0xf]
    %v1667 = vperm.slane %v1665, 0
    %v1668 = vperm.slane %v1665, 1
    %v1669 = vperm.slane %v1665, 2
    %v1670 = vperm.slane %v1665, 3
    %1675 = vmatpush.msra.mxu0 %v1597
    %1676 = vmatpush.msra.mxu0 %v1593
    %1677 = vmatpush.msra.mxu0 %v1589
    %1678 = vmatpush.msra.mxu0 %v1585
    %1679 = vmatpush.msra.mxu0 %v1581
    %1680 = vmatpush.msra.mxu0 %v1577
    %1681 = vmatpush.msra.mxu0 %v1573
    %1682 = vmatpush.msra.mxu0 %v1569
    %1683 = vmatpush.msra.mxu0 %v1565
    %1684 = vmatpush.msra.mxu0 %v1561
    %1685 = vmatpush.msra.mxu0 %v1557
    %1686 = vmatpush.msra.mxu0 %v1553
    %1687 = vmatpush.msra.mxu0 %v1549
    %1688 = vmatpush.msra.mxu0 %v1545
    %1689 = vmatpush.msra.mxu0 %v1541
    %1690 = vmatpush.msra.mxu0 %v1537
    %1691 = vmatmul.f32.gmra.mxu0 %v1535
    %v1692 = vpop.f32.mrf.mxu0
    %v1693 = vadd.f32 %v1667, %v1692
    %1694 = vdwg.mxu0
    %1695 = vmatpush.msra.mxu0 %v1661
    %1696 = vmatpush.msra.mxu0 %v1657
    %1697 = vmatpush.msra.mxu0 %v1653
    %1698 = vmatpush.msra.mxu0 %v1649
    %1699 = vmatpush.msra.mxu0 %v1645
    %1700 = vmatpush.msra.mxu0 %v1641
    %1701 = vmatpush.msra.mxu0 %v1637
    %1702 = vmatpush.msra.mxu0 %v1633
    %1703 = vmatpush.msra.mxu0 %v1629
    %1704 = vmatpush.msra.mxu0 %v1625
    %1705 = vmatpush.msra.mxu0 %v1621
    %1706 = vmatpush.msra.mxu0 %v1617
    %1707 = vmatpush.msra.mxu0 %v1613
    %1708 = vmatpush.msra.mxu0 %v1609
    %1709 = vmatpush.msra.mxu0 %v1605
    %1710 = vmatpush.msra.mxu0 %v1601
    %1711 = vmatmul.f32.gmra.mxu0 %v1536
    %v1712 = vpop.f32.mrf.mxu0
    %v1713 = vadd.f32 %v1693, %v1712
    %1714 = vdwg.mxu0
    %1715 = vmatpush.msra.mxu0 %v1598
    %1716 = vmatpush.msra.mxu0 %v1594
    %1717 = vmatpush.msra.mxu0 %v1590
    %1718 = vmatpush.msra.mxu0 %v1586
    %1719 = vmatpush.msra.mxu0 %v1582
    %1720 = vmatpush.msra.mxu0 %v1578
    %1721 = vmatpush.msra.mxu0 %v1574
    %1722 = vmatpush.msra.mxu0 %v1570
    %1723 = vmatpush.msra.mxu0 %v1566
    %1724 = vmatpush.msra.mxu0 %v1562
    %1725 = vmatpush.msra.mxu0 %v1558
    %1726 = vmatpush.msra.mxu0 %v1554
    %1727 = vmatpush.msra.mxu0 %v1550
    %1728 = vmatpush.msra.mxu0 %v1546
    %1729 = vmatpush.msra.mxu0 %v1542
    %1730 = vmatpush.msra.mxu0 %v1538
    %1731 = vmatmul.f32.gmra.mxu0 %v1535
    %v1732 = vpop.f32.mrf.mxu0
    %v1733 = vadd.f32 %v1668, %v1732
    %1734 = vdwg.mxu0
    %1735 = vmatpush.msra.mxu0 %v1662
    %1736 = vmatpush.msra.mxu0 %v1658
    %1737 = vmatpush.msra.mxu0 %v1654
    %1738 = vmatpush.msra.mxu0 %v1650
    %1739 = vmatpush.msra.mxu0 %v1646
    %1740 = vmatpush.msra.mxu0 %v1642
    %1741 = vmatpush.msra.mxu0 %v1638
    %1742 = vmatpush.msra.mxu0 %v1634
    %1743 = vmatpush.msra.mxu0 %v1630
    %1744 = vmatpush.msra.mxu0 %v1626
    %1745 = vmatpush.msra.mxu0 %v1622
    %1746 = vmatpush.msra.mxu0 %v1618
    %1747 = vmatpush.msra.mxu0 %v1614
    %1748 = vmatpush.msra.mxu0 %v1610
    %1749 = vmatpush.msra.mxu0 %v1606
    %1750 = vmatpush.msra.mxu0 %v1602
    %1751 = vmatmul.f32.gmra.mxu0 %v1536
    %v1752 = vpop.f32.mrf.mxu0
    %v1753 = vadd.f32 %v1733, %v1752
    %1754 = vdwg.mxu0
    %1755 = vmatpush.msra.mxu0 %v1599
    %1756 = vmatpush.msra.mxu0 %v1595
    %1757 = vmatpush.msra.mxu0 %v1591
    %1758 = vmatpush.msra.mxu0 %v1587
    %1759 = vmatpush.msra.mxu0 %v1583
    %1760 = vmatpush.msra.mxu0 %v1579
    %1761 = vmatpush.msra.mxu0 %v1575
    %1762 = vmatpush.msra.mxu0 %v1571
    %1763 = vmatpush.msra.mxu0 %v1567
    %1764 = vmatpush.msra.mxu0 %v1563
    %1765 = vmatpush.msra.mxu0 %v1559
    %1766 = vmatpush.msra.mxu0 %v1555
    %1767 = vmatpush.msra.mxu0 %v1551
    %1768 = vmatpush.msra.mxu0 %v1547
    %1769 = vmatpush.msra.mxu0 %v1543
    %1770 = vmatpush.msra.mxu0 %v1539
    %1771 = vmatmul.f32.gmra.mxu0 %v1535
    %v1772 = vpop.f32.mrf.mxu0
    %v1773 = vadd.f32 %v1669, %v1772
    %1774 = vdwg.mxu0
    %1775 = vmatpush.msra.mxu0 %v1663
    %1776 = vmatpush.msra.mxu0 %v1659
    %1777 = vmatpush.msra.mxu0 %v1655
    %1778 = vmatpush.msra.mxu0 %v1651
    %1779 = vmatpush.msra.mxu0 %v1647
    %1780 = vmatpush.msra.mxu0 %v1643
    %1781 = vmatpush.msra.mxu0 %v1639
    %1782 = vmatpush.msra.mxu0 %v1635
    %1783 = vmatpush.msra.mxu0 %v1631
    %1784 = vmatpush.msra.mxu0 %v1627
    %1785 = vmatpush.msra.mxu0 %v1623
    %1786 = vmatpush.msra.mxu0 %v1619
    %1787 = vmatpush.msra.mxu0 %v1615
    %1788 = vmatpush.msra.mxu0 %v1611
    %1789 = vmatpush.msra.mxu0 %v1607
    %1790 = vmatpush.msra.mxu0 %v1603
    %1791 = vmatmul.f32.gmra.mxu0 %v1536
    %v1792 = vpop.f32.mrf.mxu0
    %v1793 = vadd.f32 %v1773, %v1792
    %1794 = vdwg.mxu0
    %1795 = vmatpush.msra.mxu0 %v1600
    %1796 = vmatpush.msra.mxu0 %v1596
    %1797 = vmatpush.msra.mxu0 %v1592
    %1798 = vmatpush.msra.mxu0 %v1588
    %1799 = vmatpush.msra.mxu0 %v1584
    %1800 = vmatpush.msra.mxu0 %v1580
    %1801 = vmatpush.msra.mxu0 %v1576
    %1802 = vmatpush.msra.mxu0 %v1572
    %1803 = vmatpush.msra.mxu0 %v1568
    %1804 = vmatpush.msra.mxu0 %v1564
    %1805 = vmatpush.msra.mxu0 %v1560
    %1806 = vmatpush.msra.mxu0 %v1556
    %1807 = vmatpush.msra.mxu0 %v1552
    %1808 = vmatpush.msra.mxu0 %v1548
    %1809 = vmatpush.msra.mxu0 %v1544
    %1810 = vmatpush.msra.mxu0 %v1540
    %1811 = vmatmul.f32.gmra.mxu0 %v1535
    %v1812 = vpop.f32.mrf.mxu0
    %v1813 = vadd.f32 %v1670, %v1812
    %1814 = vdwg.mxu0
    %1815 = vmatpush.msra.mxu0 %v1664
    %1816 = vmatpush.msra.mxu0 %v1660
    %1817 = vmatpush.msra.mxu0 %v1656
    %1818 = vmatpush.msra.mxu0 %v1652
    %1819 = vmatpush.msra.mxu0 %v1648
    %1820 = vmatpush.msra.mxu0 %v1644
    %1821 = vmatpush.msra.mxu0 %v1640
    %1822 = vmatpush.msra.mxu0 %v1636
    %1823 = vmatpush.msra.mxu0 %v1632
    %1824 = vmatpush.msra.mxu0 %v1628
    %1825 = vmatpush.msra.mxu0 %v1624
    %1826 = vmatpush.msra.mxu0 %v1620
    %1827 = vmatpush.msra.mxu0 %v1616
    %1828 = vmatpush.msra.mxu0 %v1612
    %1829 = vmatpush.msra.mxu0 %v1608
    %1830 = vmatpush.msra.mxu0 %v1604
    %1831 = vmatmul.f32.gmra.mxu0 %v1536
    %v1832 = vpop.f32.mrf.mxu0
    %v1833 = vadd.f32 %v1813, %v1832
    %1834 = vdwg.mxu0
    %v1835 = vtanh.pop %v1713
    %v1836 = vtanh.pop %v1753
    %v1837 = vtanh.pop %v1793
    %v1838 = vtanh.pop %v1833
    %v1839 = vld [vmem:[%s11] sm:$0xff]
    %v1840 = vld [vmem:[%s11 + $0x8] sm:$0xff]
    %v1841 = vld [vmem:[%s11 + $0x10] sm:$0xff]
    %v1842 = vld [vmem:[%s11 + $0x18] sm:$0xff]
    %v1843 = vld [vmem:[%s11 + $0x20] sm:$0xff]
    %v1844 = vld [vmem:[%s11 + $0x28] sm:$0xff]
    %v1845 = vld [vmem:[%s11 + $0x30] sm:$0xff]
    %v1846 = vld [vmem:[%s11 + $0x38] sm:$0xff]
    %v1847 = vld [vmem:[%s11 + $0x40] sm:$0xff]
    %v1848 = vld [vmem:[%s11 + $0x48] sm:$0xff]
    %v1849 = vld [vmem:[%s11 + $0x50] sm:$0xff]
    %v1850 = vld [vmem:[%s11 + $0x58] sm:$0xff]
    %v1851 = vld [vmem:[%s11 + $0x60] sm:$0xff]
    %v1852 = vld [vmem:[%s11 + $0x68] sm:$0xff]
    %v1853 = vld [vmem:[%s11 + $0x70] sm:$0xff]
    %v1854 = vld [vmem:[%s11 + $0x78] sm:$0xff]
    %v1855 = vld [vmem:[%s11 + $0x80] sm:$0xff]
    %v1856 = vld [vmem:[%s11 + $0x88] sm:$0xff]
    %v1857 = vld [vmem:[%s11 + $0x90] sm:$0xff]
    %v1858 = vld [vmem:[%s11 + $0x98] sm:$0xff]
    %v1859 = vld [vmem:[%s11 + $0xa0] sm:$0xff]
    %v1860 = vld [vmem:[%s11 + $0xa8] sm:$0xff]
    %v1861 = vld [vmem:[%s11 + $0xb0] sm:$0xff]
    %v1862 = vld [vmem:[%s11 + $0xb8] sm:$0xff]
    %v1863 = vld [vmem:[%s11 + $0xc0] sm:$0xff]
    %v1864 = vld [vmem:[%s11 + $0xc8] sm:$0xff]
    %v1865 = vld [vmem:[%s11 + $0xd0] sm:$0xff]
    %v1866 = vld [vmem:[%s11 + $0xd8] sm:$0xff]
    %v1867 = vld [vmem:[%s11 + $0xe0] sm:$0xff]
    %v1868 = vld [vmem:[%s11 + $0xe8] sm:$0xff]
    %v1869 = vld [vmem:[%s11 + $0xf0] sm:$0xff]
    %v1870 = vld [vmem:[%s11 + $0xf8] sm:$0xff]
    %v1871 = vld [vmem:[%s11 + $0x100] sm:$0xff]
    %v1872 = vld [vmem:[%s11 + $0x108] sm:$0xff]
    %v1873 = vld [vmem:[%s11 + $0x110] sm:$0xff]
    %v1874 = vld [vmem:[%s11 + $0x118] sm:$0xff]
    %v1875 = vld [vmem:[%s11 + $0x120] sm:$0xff]
    %v1876 = vld [vmem:[%s11 + $0x128] sm:$0xff]
    %v1877 = vld [vmem:[%s11 + $0x130] sm:$0xff]
    %v1878 = vld [vmem:[%s11 + $0x138] sm:$0xff]
    %v1879 = vld [vmem:[%s11 + $0x140] sm:$0xff]
    %v1880 = vld [vmem:[%s11 + $0x148] sm:$0xff]
    %v1881 = vld [vmem:[%s11 + $0x150] sm:$0xff]
    %v1882 = vld [vmem:[%s11 + $0x158] sm:$0xff]
    %v1883 = vld [vmem:[%s11 + $0x160] sm:$0xff]
    %v1884 = vld [vmem:[%s11 + $0x168] sm:$0xff]
    %v1885 = vld [vmem:[%s11 + $0x170] sm:$0xff]
    %v1886 = vld [vmem:[%s11 + $0x178] sm:$0xff]
    %v1887 = vld [vmem:[%s11 + $0x180] sm:$0xff]
    %v1888 = vld [vmem:[%s11 + $0x188] sm:$0xff]
    %v1889 = vld [vmem:[%s11 + $0x190] sm:$0xff]
    %v1890 = vld [vmem:[%s11 + $0x198] sm:$0xff]
    %v1891 = vld [vmem:[%s11 + $0x1a0] sm:$0xff]
    %v1892 = vld [vmem:[%s11 + $0x1a8] sm:$0xff]
    %v1893 = vld [vmem:[%s11 + $0x1b0] sm:$0xff]
    %v1894 = vld [vmem:[%s11 + $0x1b8] sm:$0xff]
    %v1895 = vld [vmem:[%s11 + $0x1c0] sm:$0xff]
    %v1896 = vld [vmem:[%s11 + $0x1c8] sm:$0xff]
    %v1897 = vld [vmem:[%s11 + $0x1d0] sm:$0xff]
    %v1898 = vld [vmem:[%s11 + $0x1d8] sm:$0xff]
    %v1899 = vld [vmem:[%s11 + $0x1e0] sm:$0xff]
    %v1900 = vld [vmem:[%s11 + $0x1e8] sm:$0xff]
    %v1901 = vld [vmem:[%s11 + $0x1f0] sm:$0xff]
    %v1902 = vld [vmem:[%s11 + $0x1f8] sm:$0xff]
    %v1903 = vld [vmem:[%s11 + $0x200] sm:$0xff]
    %v1904 = vld [vmem:[%s11 + $0x208] sm:$0xff]
    %v1905 = vld [vmem:[%s11 + $0x210] sm:$0xff]
    %v1906 = vld [vmem:[%s11 + $0x218] sm:$0xff]
    %v1907 = vld [vmem:[%s11 + $0x220] sm:$0xff]
    %v1908 = vld [vmem:[%s11 + $0x228] sm:$0xff]
    %v1909 = vld [vmem:[%s11 + $0x230] sm:$0xff]
    %v1910 = vld [vmem:[%s11 + $0x238] sm:$0xff]
    %v1911 = vld [vmem:[%s11 + $0x240] sm:$0xff]
    %v1912 = vld [vmem:[%s11 + $0x248] sm:$0xff]
    %v1913 = vld [vmem:[%s11 + $0x250] sm:$0xff]
    %v1914 = vld [vmem:[%s11 + $0x258] sm:$0xff]
    %v1915 = vld [vmem:[%s11 + $0x260] sm:$0xff]
    %v1916 = vld [vmem:[%s11 + $0x268] sm:$0xff]
    %v1917 = vld [vmem:[%s11 + $0x270] sm:$0xff]
    %v1918 = vld [vmem:[%s11 + $0x278] sm:$0xff]
    %v1919 = vld [vmem:[%s11 + $0x280] sm:$0xff]
    %v1920 = vld [vmem:[%s11 + $0x288] sm:$0xff]
    %v1921 = vld [vmem:[%s11 + $0x290] sm:$0xff]
    %v1922 = vld [vmem:[%s11 + $0x298] sm:$0xff]
    %v1923 = vld [vmem:[%s11 + $0x2a0] sm:$0xff]
    %v1924 = vld [vmem:[%s11 + $0x2a8] sm:$0xff]
    %v1925 = vld [vmem:[%s11 + $0x2b0] sm:$0xff]
    %v1926 = vld [vmem:[%s11 + $0x2b8] sm:$0xff]
    %v1927 = vld [vmem:[%s11 + $0x2c0] sm:$0xff]
    %v1928 = vld [vmem:[%s11 + $0x2c8] sm:$0xff]
    %v1929 = vld [vmem:[%s11 + $0x2d0] sm:$0xff]
    %v1930 = vld [vmem:[%s11 + $0x2d8] sm:$0xff]
    %v1931 = vld [vmem:[%s11 + $0x2e0] sm:$0xff]
    %v1932 = vld [vmem:[%s11 + $0x2e8] sm:$0xff]
    %v1933 = vld [vmem:[%s11 + $0x2f0] sm:$0xff]
    %v1934 = vld [vmem:[%s11 + $0x2f8] sm:$0xff]
    %v1935 = vld [vmem:[%s11 + $0x300] sm:$0xff]
    %v1936 = vld [vmem:[%s11 + $0x308] sm:$0xff]
    %v1937 = vld [vmem:[%s11 + $0x310] sm:$0xff]
    %v1938 = vld [vmem:[%s11 + $0x318] sm:$0xff]
    %v1939 = vld [vmem:[%s11 + $0x320] sm:$0xff]
    %v1940 = vld [vmem:[%s11 + $0x328] sm:$0xff]
    %v1941 = vld [vmem:[%s11 + $0x330] sm:$0xff]
    %v1942 = vld [vmem:[%s11 + $0x338] sm:$0xff]
    %v1943 = vld [vmem:[%s11 + $0x340] sm:$0xff]
    %v1944 = vld [vmem:[%s11 + $0x348] sm:$0xff]
    %v1945 = vld [vmem:[%s11 + $0x350] sm:$0xff]
    %v1946 = vld [vmem:[%s11 + $0x358] sm:$0xff]
    %v1947 = vld [vmem:[%s11 + $0x360] sm:$0xff]
    %v1948 = vld [vmem:[%s11 + $0x368] sm:$0xff]
    %v1949 = vld [vmem:[%s11 + $0x370] sm:$0xff]
    %v1950 = vld [vmem:[%s11 + $0x378] sm:$0xff]
    %v1951 = vld [vmem:[%s11 + $0x380] sm:$0xff]
    %v1952 = vld [vmem:[%s11 + $0x388] sm:$0xff]
    %v1953 = vld [vmem:[%s11 + $0x390] sm:$0xff]
    %v1954 = vld [vmem:[%s11 + $0x398] sm:$0xff]
    %v1955 = vld [vmem:[%s11 + $0x3a0] sm:$0xff]
    %v1956 = vld [vmem:[%s11 + $0x3a8] sm:$0xff]
    %v1957 = vld [vmem:[%s11 + $0x3b0] sm:$0xff]
    %v1958 = vld [vmem:[%s11 + $0x3b8] sm:$0xff]
    %v1959 = vld [vmem:[%s11 + $0x3c0] sm:$0xff]
    %v1960 = vld [vmem:[%s11 + $0x3c8] sm:$0xff]
    %v1961 = vld [vmem:[%s11 + $0x3d0] sm:$0xff]
    %v1962 = vld [vmem:[%s11 + $0x3d8] sm:$0xff]
    %v1963 = vld [vmem:[%s11 + $0x3e0] sm:$0xff]
    %v1964 = vld [vmem:[%s11 + $0x3e8] sm:$0xff]
    %v1965 = vld [vmem:[%s11 + $0x3f0] sm:$0xff]
    %v1966 = vld [vmem:[%s11 + $0x3f8] sm:$0xff]
    %v1967 = vld [vmem:[%s11 + $0x400] sm:$0xff]
    %v1968 = vld [vmem:[%s11 + $0x408] sm:$0xff]
    %v1969 = vld [vmem:[%s11 + $0x410] sm:$0xff]
    %v1970 = vld [vmem:[%s11 + $0x418] sm:$0xff]
    %v1971 = vld [vmem:[%s11 + $0x420] sm:$0xff]
    %v1972 = vld [vmem:[%s11 + $0x428] sm:$0xff]
    %v1973 = vld [vmem:[%s11 + $0x430] sm:$0xff]
    %v1974 = vld [vmem:[%s11 + $0x438] sm:$0xff]
    %v1975 = vld [vmem:[%s11 + $0x440] sm:$0xff]
    %v1976 = vld [vmem:[%s11 + $0x448] sm:$0xff]
    %v1977 = vld [vmem:[%s11 + $0x450] sm:$0xff]
    %v1978 = vld [vmem:[%s11 + $0x458] sm:$0xff]
    %v1979 = vld [vmem:[%s11 + $0x460] sm:$0xff]
    %v1980 = vld [vmem:[%s11 + $0x468] sm:$0xff]
    %v1981 = vld [vmem:[%s11 + $0x470] sm:$0xff]
    %v1982 = vld [vmem:[%s11 + $0x478] sm:$0xff]
    %v1983 = vld [vmem:[%s11 + $0x480] sm:$0xff]
    %v1984 = vld [vmem:[%s11 + $0x488] sm:$0xff]
    %v1985 = vld [vmem:[%s11 + $0x490] sm:$0xff]
    %v1986 = vld [vmem:[%s11 + $0x498] sm:$0xff]
    %v1987 = vld [vmem:[%s11 + $0x4a0] sm:$0xff]
    %v1988 = vld [vmem:[%s11 + $0x4a8] sm:$0xff]
    %v1989 = vld [vmem:[%s11 + $0x4b0] sm:$0xff]
    %v1990 = vld [vmem:[%s11 + $0x4b8] sm:$0xff]
    %v1991 = vld [vmem:[%s11 + $0x4c0] sm:$0xff]
    %v1992 = vld [vmem:[%s11 + $0x4c8] sm:$0xff]
    %v1993 = vld [vmem:[%s11 + $0x4d0] sm:$0xff]
    %v1994 = vld [vmem:[%s11 + $0x4d8] sm:$0xff]
    %v1995 = vld [vmem:[%s11 + $0x4e0] sm:$0xff]
    %v1996 = vld [vmem:[%s11 + $0x4e8] sm:$0xff]
    %v1997 = vld [vmem:[%s11 + $0x4f0] sm:$0xff]
    %v1998 = vld [vmem:[%s11 + $0x4f8] sm:$0xff]
    %v1999 = vld [vmem:[%s11 + $0x500] sm:$0xff]
    %v2000 = vld [vmem:[%s11 + $0x508] sm:$0xff]
    %v2001 = vld [vmem:[%s11 + $0x510] sm:$0xff]
    %v2002 = vld [vmem:[%s11 + $0x518] sm:$0xff]
    %v2003 = vld [vmem:[%s11 + $0x520] sm:$0xff]
    %v2004 = vld [vmem:[%s11 + $0x528] sm:$0xff]
    %v2005 = vld [vmem:[%s11 + $0x530] sm:$0xff]
    %v2006 = vld [vmem:[%s11 + $0x538] sm:$0xff]
    %v2007 = vld [vmem:[%s11 + $0x540] sm:$0xff]
    %v2008 = vld [vmem:[%s11 + $0x548] sm:$0xff]
    %v2009 = vld [vmem:[%s11 + $0x550] sm:$0xff]
    %v2010 = vld [vmem:[%s11 + $0x558] sm:$0xff]
    %v2011 = vld [vmem:[%s11 + $0x560] sm:$0xff]
    %v2012 = vld [vmem:[%s11 + $0x568] sm:$0xff]
    %v2013 = vld [vmem:[%s11 + $0x570] sm:$0xff]
    %v2014 = vld [vmem:[%s11 + $0x578] sm:$0xff]
    %v2015 = vld [vmem:[%s11 + $0x580] sm:$0xff]
    %v2016 = vld [vmem:[%s11 + $0x588] sm:$0xff]
    %v2017 = vld [vmem:[%s11 + $0x590] sm:$0xff]
    %v2018 = vld [vmem:[%s11 + $0x598] sm:$0xff]
    %v2019 = vld [vmem:[%s11 + $0x5a0] sm:$0xff]
    %v2020 = vld [vmem:[%s11 + $0x5a8] sm:$0xff]
    %v2021 = vld [vmem:[%s11 + $0x5b0] sm:$0xff]
    %v2022 = vld [vmem:[%s11 + $0x5b8] sm:$0xff]
    %v2023 = vld [vmem:[%s11 + $0x5c0] sm:$0xff]
    %v2024 = vld [vmem:[%s11 + $0x5c8] sm:$0xff]
    %v2025 = vld [vmem:[%s11 + $0x5d0] sm:$0xff]
    %v2026 = vld [vmem:[%s11 + $0x5d8] sm:$0xff]
    %v2027 = vld [vmem:[%s11 + $0x5e0] sm:$0xff]
    %v2028 = vld [vmem:[%s11 + $0x5e8] sm:$0xff]
    %v2029 = vld [vmem:[%s11 + $0x5f0] sm:$0xff]
    %v2030 = vld [vmem:[%s11 + $0x5f8] sm:$0xff]
    %v2031 = vld [vmem:[%s11 + $0x600] sm:$0xff]
    %v2032 = vld [vmem:[%s11 + $0x608] sm:$0xff]
    %v2033 = vld [vmem:[%s11 + $0x610] sm:$0xff]
    %v2034 = vld [vmem:[%s11 + $0x618] sm:$0xff]
    %v2035 = vld [vmem:[%s11 + $0x620] sm:$0xff]
    %v2036 = vld [vmem:[%s11 + $0x628] sm:$0xff]
    %v2037 = vld [vmem:[%s11 + $0x630] sm:$0xff]
    %v2038 = vld [vmem:[%s11 + $0x638] sm:$0xff]
    %v2039 = vld [vmem:[%s11 + $0x640] sm:$0xff]
    %v2040 = vld [vmem:[%s11 + $0x648] sm:$0xff]
    %v2041 = vld [vmem:[%s11 + $0x650] sm:$0xff]
    %v2042 = vld [vmem:[%s11 + $0x658] sm:$0xff]
    %v2043 = vld [vmem:[%s11 + $0x660] sm:$0xff]
    %v2044 = vld [vmem:[%s11 + $0x668] sm:$0xff]
    %v2045 = vld [vmem:[%s11 + $0x670] sm:$0xff]
    %v2046 = vld [vmem:[%s11 + $0x678] sm:$0xff]
    %v2047 = vld [vmem:[%s11 + $0x680] sm:$0xff]
    %v2048 = vld [vmem:[%s11 + $0x688] sm:$0xff]
    %v2049 = vld [vmem:[%s11 + $0x690] sm:$0xff]
    %v2050 = vld [vmem:[%s11 + $0x698] sm:$0xff]
    %v2051 = vld [vmem:[%s11 + $0x6a0] sm:$0xff]
    %v2052 = vld [vmem:[%s11 + $0x6a8] sm:$0xff]
    %v2053 = vld [vmem:[%s11 + $0x6b0] sm:$0xff]
    %v2054 = vld [vmem:[%s11 + $0x6b8] sm:$0xff]
    %v2055 = vld [vmem:[%s11 + $0x6c0] sm:$0xff]
    %v2056 = vld [vmem:[%s11 + $0x6c8] sm:$0xff]
    %v2057 = vld [vmem:[%s11 + $0x6d0] sm:$0xff]
    %v2058 = vld [vmem:[%s11 + $0x6d8] sm:$0xff]
    %v2059 = vld [vmem:[%s11 + $0x6e0] sm:$0xff]
    %v2060 = vld [vmem:[%s11 + $0x6e8] sm:$0xff]
    %v2061 = vld [vmem:[%s11 + $0x6f0] sm:$0xff]
    %v2062 = vld [vmem:[%s11 + $0x6f8] sm:$0xff]
    %v2063 = vld [vmem:[%s11 + $0x700] sm:$0xff]
    %v2064 = vld [vmem:[%s11 + $0x708] sm:$0xff]
    %v2065 = vld [vmem:[%s11 + $0x710] sm:$0xff]
    %v2066 = vld [vmem:[%s11 + $0x718] sm:$0xff]
    %v2067 = vld [vmem:[%s11 + $0x720] sm:$0xff]
    %v2068 = vld [vmem:[%s11 + $0x728] sm:$0xff]
    %v2069 = vld [vmem:[%s11 + $0x730] sm:$0xff]
    %v2070 = vld [vmem:[%s11 + $0x738] sm:$0xff]
    %v2071 = vld [vmem:[%s11 + $0x740] sm:$0xff]
    %v2072 = vld [vmem:[%s11 + $0x748] sm:$0xff]
    %v2073 = vld [vmem:[%s11 + $0x750] sm:$0xff]
    %v2074 = vld [vmem:[%s11 + $0x758] sm:$0xff]
    %v2075 = vld [vmem:[%s11 + $0x760] sm:$0xff]
    %v2076 = vld [vmem:[%s11 + $0x768] sm:$0xff]
    %v2077 = vld [vmem:[%s11 + $0x770] sm:$0xff]
    %v2078 = vld [vmem:[%s11 + $0x778] sm:$0xff]
    %v2079 = vld [vmem:[%s11 + $0x780] sm:$0xff]
    %v2080 = vld [vmem:[%s11 + $0x788] sm:$0xff]
    %v2081 = vld [vmem:[%s11 + $0x790] sm:$0xff]
    %v2082 = vld [vmem:[%s11 + $0x798] sm:$0xff]
    %v2083 = vld [vmem:[%s11 + $0x7a0] sm:$0xff]
    %v2084 = vld [vmem:[%s11 + $0x7a8] sm:$0xff]
    %v2085 = vld [vmem:[%s11 + $0x7b0] sm:$0xff]
    %v2086 = vld [vmem:[%s11 + $0x7b8] sm:$0xff]
    %v2087 = vld [vmem:[%s11 + $0x7c0] sm:$0xff]
    %v2088 = vld [vmem:[%s11 + $0x7c8] sm:$0xff]
    %v2089 = vld [vmem:[%s11 + $0x7d0] sm:$0xff]
    %v2090 = vld [vmem:[%s11 + $0x7d8] sm:$0xff]
    %v2091 = vld [vmem:[%s11 + $0x7e0] sm:$0xff]
    %v2092 = vld [vmem:[%s11 + $0x7e8] sm:$0xff]
    %v2093 = vld [vmem:[%s11 + $0x7f0] sm:$0xff]
    %v2094 = vld [vmem:[%s11 + $0x7f8] sm:$0xff]
    %v2095 = vld [vmem:[%s11 + $0x800] sm:$0xff]
    %v2096 = vld [vmem:[%s11 + $0x808] sm:$0xff]
    %v2097 = vld [vmem:[%s11 + $0x810] sm:$0xff]
    %v2098 = vld [vmem:[%s11 + $0x818] sm:$0xff]
    %v2099 = vld [vmem:[%s11 + $0x820] sm:$0xff]
    %v2100 = vld [vmem:[%s11 + $0x828] sm:$0xff]
    %v2101 = vld [vmem:[%s11 + $0x830] sm:$0xff]
    %v2102 = vld [vmem:[%s11 + $0x838] sm:$0xff]
    %v2103 = vld [vmem:[%s11 + $0x840] sm:$0xff]
    %v2104 = vld [vmem:[%s11 + $0x848] sm:$0xff]
    %v2105 = vld [vmem:[%s11 + $0x850] sm:$0xff]
    %v2106 = vld [vmem:[%s11 + $0x858] sm:$0xff]
    %v2107 = vld [vmem:[%s11 + $0x860] sm:$0xff]
    %v2108 = vld [vmem:[%s11 + $0x868] sm:$0xff]
    %v2109 = vld [vmem:[%s11 + $0x870] sm:$0xff]
    %v2110 = vld [vmem:[%s11 + $0x878] sm:$0xff]
    %v2111 = vld [vmem:[%s11 + $0x880] sm:$0xff]
    %v2112 = vld [vmem:[%s11 + $0x888] sm:$0xff]
    %v2113 = vld [vmem:[%s11 + $0x890] sm:$0xff]
    %v2114 = vld [vmem:[%s11 + $0x898] sm:$0xff]
    %v2115 = vld [vmem:[%s11 + $0x8a0] sm:$0xff]
    %v2116 = vld [vmem:[%s11 + $0x8a8] sm:$0xff]
    %v2117 = vld [vmem:[%s11 + $0x8b0] sm:$0xff]
    %v2118 = vld [vmem:[%s11 + $0x8b8] sm:$0xff]
    %v2119 = vld [vmem:[%s11 + $0x8c0] sm:$0xff]
    %v2120 = vld [vmem:[%s11 + $0x8c8] sm:$0xff]
    %v2121 = vld [vmem:[%s11 + $0x8d0] sm:$0xff]
    %v2122 = vld [vmem:[%s11 + $0x8d8] sm:$0xff]
    %v2123 = vld [vmem:[%s11 + $0x8e0] sm:$0xff]
    %v2124 = vld [vmem:[%s11 + $0x8e8] sm:$0xff]
    %v2125 = vld [vmem:[%s11 + $0x8f0] sm:$0xff]
    %v2126 = vld [vmem:[%s11 + $0x8f8] sm:$0xff]
    %v2127 = vld [vmem:[%s11 + $0x900] sm:$0xff]
    %v2128 = vld [vmem:[%s11 + $0x908] sm:$0xff]
    %v2129 = vld [vmem:[%s11 + $0x910] sm:$0xff]
    %v2130 = vld [vmem:[%s11 + $0x918] sm:$0xff]
    %v2131 = vld [vmem:[%s11 + $0x920] sm:$0xff]
    %v2132 = vld [vmem:[%s11 + $0x928] sm:$0xff]
    %v2133 = vld [vmem:[%s11 + $0x930] sm:$0xff]
    %v2134 = vld [vmem:[%s11 + $0x938] sm:$0xff]
    %v2135 = vld [vmem:[%s11 + $0x940] sm:$0xff]
    %v2136 = vld [vmem:[%s11 + $0x948] sm:$0xff]
    %v2137 = vld [vmem:[%s11 + $0x950] sm:$0xff]
    %v2138 = vld [vmem:[%s11 + $0x958] sm:$0xff]
    %v2139 = vld [vmem:[%s11 + $0x960] sm:$0xff]
    %v2140 = vld [vmem:[%s11 + $0x968] sm:$0xff]
    %v2141 = vld [vmem:[%s11 + $0x970] sm:$0xff]
    %v2142 = vld [vmem:[%s11 + $0x978] sm:$0xff]
    %v2143 = vld [vmem:[%s11 + $0x980] sm:$0xff]
    %v2144 = vld [vmem:[%s11 + $0x988] sm:$0xff]
    %v2145 = vld [vmem:[%s11 + $0x990] sm:$0xff]
    %v2146 = vld [vmem:[%s11 + $0x998] sm:$0xff]
    %v2147 = vld [vmem:[%s11 + $0x9a0] sm:$0xff]
    %v2148 = vld [vmem:[%s11 + $0x9a8] sm:$0xff]
    %v2149 = vld [vmem:[%s11 + $0x9b0] sm:$0xff]
    %v2150 = vld [vmem:[%s11 + $0x9b8] sm:$0xff]
    %v2151 = vld [vmem:[%s11 + $0x9c0] sm:$0xff]
    %v2152 = vld [vmem:[%s11 + $0x9c8] sm:$0xff]
    %v2153 = vld [vmem:[%s11 + $0x9d0] sm:$0xff]
    %v2154 = vld [vmem:[%s11 + $0x9d8] sm:$0xff]
    %v2155 = vld [vmem:[%s11 + $0x9e0] sm:$0xff]
    %v2156 = vld [vmem:[%s11 + $0x9e8] sm:$0xff]
    %v2157 = vld [vmem:[%s11 + $0x9f0] sm:$0xff]
    %v2158 = vld [vmem:[%s11 + $0x9f8] sm:$0xff]
    %v2159 = vld [vmem:[%s11 + $0xa00] sm:$0xff]
    %v2160 = vld [vmem:[%s11 + $0xa08] sm:$0xff]
    %v2161 = vld [vmem:[%s11 + $0xa10] sm:$0xff]
    %v2162 = vld [vmem:[%s11 + $0xa18] sm:$0xff]
    %v2163 = vld [vmem:[%s11 + $0xa20] sm:$0xff]
    %v2164 = vld [vmem:[%s11 + $0xa28] sm:$0xff]
    %v2165 = vld [vmem:[%s11 + $0xa30] sm:$0xff]
    %v2166 = vld [vmem:[%s11 + $0xa38] sm:$0xff]
    %v2167 = vld [vmem:[%s11 + $0xa40] sm:$0xff]
    %v2168 = vld [vmem:[%s11 + $0xa48] sm:$0xff]
    %v2169 = vld [vmem:[%s11 + $0xa50] sm:$0xff]
    %v2170 = vld [vmem:[%s11 + $0xa58] sm:$0xff]
    %v2171 = vld [vmem:[%s11 + $0xa60] sm:$0xff]
    %v2172 = vld [vmem:[%s11 + $0xa68] sm:$0xff]
    %v2173 = vld [vmem:[%s11 + $0xa70] sm:$0xff]
    %v2174 = vld [vmem:[%s11 + $0xa78] sm:$0xff]
    %v2175 = vld [vmem:[%s11 + $0xa80] sm:$0xff]
    %v2176 = vld [vmem:[%s11 + $0xa88] sm:$0xff]
    %v2177 = vld [vmem:[%s11 + $0xa90] sm:$0xff]
    %v2178 = vld [vmem:[%s11 + $0xa98] sm:$0xff]
    %v2179 = vld [vmem:[%s11 + $0xaa0] sm:$0xff]
    %v2180 = vld [vmem:[%s11 + $0xaa8] sm:$0xff]
    %v2181 = vld [vmem:[%s11 + $0xab0] sm:$0xff]
    %v2182 = vld [vmem:[%s11 + $0xab8] sm:$0xff]
    %v2183 = vld [vmem:[%s11 + $0xac0] sm:$0xff]
    %v2184 = vld [vmem:[%s11 + $0xac8] sm:$0xff]
    %v2185 = vld [vmem:[%s11 + $0xad0] sm:$0xff]
    %v2186 = vld [vmem:[%s11 + $0xad8] sm:$0xff]
    %v2187 = vld [vmem:[%s11 + $0xae0] sm:$0xff]
    %v2188 = vld [vmem:[%s11 + $0xae8] sm:$0xff]
    %v2189 = vld [vmem:[%s11 + $0xaf0] sm:$0xff]
    %v2190 = vld [vmem:[%s11 + $0xaf8] sm:$0xff]
    %v2191 = vld [vmem:[%s11 + $0xb00] sm:$0xff]
    %v2192 = vld [vmem:[%s11 + $0xb08] sm:$0xff]
    %v2193 = vld [vmem:[%s11 + $0xb10] sm:$0xff]
    %v2194 = vld [vmem:[%s11 + $0xb18] sm:$0xff]
    %v2195 = vld [vmem:[%s11 + $0xb20] sm:$0xff]
    %v2196 = vld [vmem:[%s11 + $0xb28] sm:$0xff]
    %v2197 = vld [vmem:[%s11 + $0xb30] sm:$0xff]
    %v2198 = vld [vmem:[%s11 + $0xb38] sm:$0xff]
    %v2199 = vld [vmem:[%s11 + $0xb40] sm:$0xff]
    %v2200 = vld [vmem:[%s11 + $0xb48] sm:$0xff]
    %v2201 = vld [vmem:[%s11 + $0xb50] sm:$0xff]
    %v2202 = vld [vmem:[%s11 + $0xb58] sm:$0xff]
    %v2203 = vld [vmem:[%s11 + $0xb60] sm:$0xff]
    %v2204 = vld [vmem:[%s11 + $0xb68] sm:$0xff]
    %v2205 = vld [vmem:[%s11 + $0xb70] sm:$0xff]
    %v2206 = vld [vmem:[%s11 + $0xb78] sm:$0xff]
    %v2207 = vld [vmem:[%s11 + $0xb80] sm:$0xff]
    %v2208 = vld [vmem:[%s11 + $0xb88] sm:$0xff]
    %v2209 = vld [vmem:[%s11 + $0xb90] sm:$0xff]
    %v2210 = vld [vmem:[%s11 + $0xb98] sm:$0xff]
    %v2211 = vld [vmem:[%s11 + $0xba0] sm:$0xff]
    %v2212 = vld [vmem:[%s11 + $0xba8] sm:$0xff]
    %v2213 = vld [vmem:[%s11 + $0xbb0] sm:$0xff]
    %v2214 = vld [vmem:[%s11 + $0xbb8] sm:$0xff]
    %v2215 = vld [vmem:[%s11 + $0xbc0] sm:$0xff]
    %v2216 = vld [vmem:[%s11 + $0xbc8] sm:$0xff]
    %v2217 = vld [vmem:[%s11 + $0xbd0] sm:$0xff]
    %v2218 = vld [vmem:[%s11 + $0xbd8] sm:$0xff]
    %v2219 = vld [vmem:[%s11 + $0xbe0] sm:$0xff]
    %v2220 = vld [vmem:[%s11 + $0xbe8] sm:$0xff]
    %v2221 = vld [vmem:[%s11 + $0xbf0] sm:$0xff]
    %v2222 = vld [vmem:[%s11 + $0xbf8] sm:$0xff]
    %v2223 = vld [vmem:[%s11 + $0xc00] sm:$0xff]
    %v2224 = vld [vmem:[%s11 + $0xc08] sm:$0xff]
    %v2225 = vld [vmem:[%s11 + $0xc10] sm:$0xff]
    %v2226 = vld [vmem:[%s11 + $0xc18] sm:$0xff]
    %v2227 = vld [vmem:[%s11 + $0xc20] sm:$0xff]
    %v2228 = vld [vmem:[%s11 + $0xc28] sm:$0xff]
    %v2229 = vld [vmem:[%s11 + $0xc30] sm:$0xff]
    %v2230 = vld [vmem:[%s11 + $0xc38] sm:$0xff]
    %v2231 = vld [vmem:[%s11 + $0xc40] sm:$0xff]
    %v2232 = vld [vmem:[%s11 + $0xc48] sm:$0xff]
    %v2233 = vld [vmem:[%s11 + $0xc50] sm:$0xff]
    %v2234 = vld [vmem:[%s11 + $0xc58] sm:$0xff]
    %v2235 = vld [vmem:[%s11 + $0xc60] sm:$0xff]
    %v2236 = vld [vmem:[%s11 + $0xc68] sm:$0xff]
    %v2237 = vld [vmem:[%s11 + $0xc70] sm:$0xff]
    %v2238 = vld [vmem:[%s11 + $0xc78] sm:$0xff]
    %v2239 = vld [vmem:[%s11 + $0xc80] sm:$0xff]
    %v2240 = vld [vmem:[%s11 + $0xc88] sm:$0xff]
    %v2241 = vld [vmem:[%s11 + $0xc90] sm:$0xff]
    %v2242 = vld [vmem:[%s11 + $0xc98] sm:$0xff]
    %v2243 = vld [vmem:[%s11 + $0xca0] sm:$0xff]
    %v2244 = vld [vmem:[%s11 + $0xca8] sm:$0xff]
    %v2245 = vld [vmem:[%s11 + $0xcb0] sm:$0xff]
    %v2246 = vld [vmem:[%s11 + $0xcb8] sm:$0xff]
    %v2247 = vld [vmem:[%s11 + $0xcc0] sm:$0xff]
    %v2248 = vld [vmem:[%s11 + $0xcc8] sm:$0xff]
    %v2249 = vld [vmem:[%s11 + $0xcd0] sm:$0xff]
    %v2250 = vld [vmem:[%s11 + $0xcd8] sm:$0xff]
    %v2251 = vld [vmem:[%s11 + $0xce0] sm:$0xff]
    %v2252 = vld [vmem:[%s11 + $0xce8] sm:$0xff]
    %v2253 = vld [vmem:[%s11 + $0xcf0] sm:$0xff]
    %v2254 = vld [vmem:[%s11 + $0xcf8] sm:$0xff]
    %v2255 = vld [vmem:[%s11 + $0xd00] sm:$0xff]
    %v2256 = vld [vmem:[%s11 + $0xd08] sm:$0xff]
    %v2257 = vld [vmem:[%s11 + $0xd10] sm:$0xff]
    %v2258 = vld [vmem:[%s11 + $0xd18] sm:$0xff]
    %v2259 = vld [vmem:[%s11 + $0xd20] sm:$0xff]
    %v2260 = vld [vmem:[%s11 + $0xd28] sm:$0xff]
    %v2261 = vld [vmem:[%s11 + $0xd30] sm:$0xff]
    %v2262 = vld [vmem:[%s11 + $0xd38] sm:$0xff]
    %v2263 = vld [vmem:[%s11 + $0xd40] sm:$0xff]
    %v2264 = vld [vmem:[%s11 + $0xd48] sm:$0xff]
    %v2265 = vld [vmem:[%s11 + $0xd50] sm:$0xff]
    %v2266 = vld [vmem:[%s11 + $0xd58] sm:$0xff]
    %v2267 = vld [vmem:[%s11 + $0xd60] sm:$0xff]
    %v2268 = vld [vmem:[%s11 + $0xd68] sm:$0xff]
    %v2269 = vld [vmem:[%s11 + $0xd70] sm:$0xff]
    %v2270 = vld [vmem:[%s11 + $0xd78] sm:$0xff]
    %v2271 = vld [vmem:[%s11 + $0xd80] sm:$0xff]
    %v2272 = vld [vmem:[%s11 + $0xd88] sm:$0xff]
    %v2273 = vld [vmem:[%s11 + $0xd90] sm:$0xff]
    %v2274 = vld [vmem:[%s11 + $0xd98] sm:$0xff]
    %v2275 = vld [vmem:[%s11 + $0xda0] sm:$0xff]
    %v2276 = vld [vmem:[%s11 + $0xda8] sm:$0xff]
    %v2277 = vld [vmem:[%s11 + $0xdb0] sm:$0xff]
    %v2278 = vld [vmem:[%s11 + $0xdb8] sm:$0xff]
    %v2279 = vld [vmem:[%s11 + $0xdc0] sm:$0xff]
    %v2280 = vld [vmem:[%s11 + $0xdc8] sm:$0xff]
    %v2281 = vld [vmem:[%s11 + $0xdd0] sm:$0xff]
    %v2282 = vld [vmem:[%s11 + $0xdd8] sm:$0xff]
    %v2283 = vld [vmem:[%s11 + $0xde0] sm:$0xff]
    %v2284 = vld [vmem:[%s11 + $0xde8] sm:$0xff]
    %v2285 = vld [vmem:[%s11 + $0xdf0] sm:$0xff]
    %v2286 = vld [vmem:[%s11 + $0xdf8] sm:$0xff]
    %v2287 = vld [vmem:[%s12] sm:$0x7f]
    %v2289 = vperm.slane %v2287, 0
    %v2290 = vperm.slane %v2287, 1
    %v2291 = vperm.slane %v2287, 2
    %v2292 = vperm.slane %v2287, 3
    %v2293 = vperm.slane %v2287, 4
    %v2294 = vperm.slane %v2287, 5
    %v2295 = vperm.slane %v2287, 6
    %2303 = vmatpush.msra.mxu0 %v1944
    %2304 = vmatpush.msra.mxu0 %v1937
    %2305 = vmatpush.msra.mxu0 %v1930
    %2306 = vmatpush.msra.mxu0 %v1923
    %2307 = vmatpush.msra.mxu0 %v1916
    %2308 = vmatpush.msra.mxu0 %v1909
    %2309 = vmatpush.msra.mxu0 %v1902
    %2310 = vmatpush.msra.mxu0 %v1895
    %2311 = vmatpush.msra.mxu0 %v1888
    %2312 = vmatpush.msra.mxu0 %v1881
    %2313 = vmatpush.msra.mxu0 %v1874
    %2314 = vmatpush.msra.mxu0 %v1867
    %2315 = vmatpush.msra.mxu0 %v1860
    %2316 = vmatpush.msra.mxu0 %v1853
    %2317 = vmatpush.msra.mxu0 %v1846
    %2318 = vmatpush.msra.mxu0 %v1839
    %2319 = vmatmul.f32.gmra.mxu0 %v1835
    %v2320 = vpop.f32.mrf.mxu0
    %v2321 = vadd.f32 %v2289, %v2320
    %2322 = vdwg.mxu0
    %2323 = vmatpush.msra.mxu0 %v2056
    %2324 = vmatpush.msra.mxu0 %v2049
    %2325 = vmatpush.msra.mxu0 %v2042
    %2326 = vmatpush.msra.mxu0 %v2035
    %2327 = vmatpush.msra.mxu0 %v2028
    %2328 = vmatpush.msra.mxu0 %v2021
    %2329 = vmatpush.msra.mxu0 %v2014
    %2330 = vmatpush.msra.mxu0 %v2007
    %2331 = vmatpush.msra.mxu0 %v2000
    %2332 = vmatpush.msra.mxu0 %v1993
    %2333 = vmatpush.msra.mxu0 %v1986
    %2334 = vmatpush.msra.mxu0 %v1979
    %2335 = vmatpush.msra.mxu0 %v1972
    %2336 = vmatpush.msra.mxu0 %v1965
    %2337 = vmatpush.msra.mxu0 %v1958
    %2338 = vmatpush.msra.mxu0 %v1951
    %2339 = vmatmul.f32.gmra.mxu0 %v1836
    %v2340 = vpop.f32.mrf.mxu0
    %v2341 = vadd.f32 %v2321, %v2340
    %2342 = vdwg.mxu0
    %2343 = vmatpush.msra.mxu0 %v2168
    %2344 = vmatpush.msra.mxu0 %v2161
    %2345 = vmatpush.msra.mxu0 %v2154
    %2346 = vmatpush.msra.mxu0 %v2147
    %2347 = vmatpush.msra.mxu0 %v2140
    %2348 = vmatpush.msra.mxu0 %v2133
    %2349 = vmatpush.msra.mxu0 %v2126
    %2350 = vmatpush.msra.mxu0 %v2119
    %2351 = vmatpush.msra.mxu0 %v2112
    %2352 = vmatpush.msra.mxu0 %v2105
    %2353 = vmatpush.msra.mxu0 %v2098
    %2354 = vmatpush.msra.mxu0 %v2091
    %2355 = vmatpush.msra.mxu0 %v2084
    %2356 = vmatpush.msra.mxu0 %v2077
    %2357 = vmatpush.msra.mxu0 %v2070
    %2358 = vmatpush.msra.mxu0 %v2063
    %2359 = vmatmul.f32.gmra.mxu0 %v1837
    %v2360 = vpop.f32.mrf.mxu0
    %v2361 = vadd.f32 %v2341, %v2360
    %2362 = vdwg.mxu0
    %2363 = vmatpush.msra.mxu0 %v2280
    %2364 = vmatpush.msra.mxu0 %v2273
    %2365 = vmatpush.msra.mxu0 %v2266
    %2366 = vmatpush.msra.mxu0 %v2259
    %2367 = vmatpush.msra.mxu0 %v2252
    %2368 = vmatpush.msra.mxu0 %v2245
    %2369 = vmatpush.msra.mxu0 %v2238
    %2370 = vmatpush.msra.mxu0 %v2231
    %2371 = vmatpush.msra.mxu0 %v2224
    %2372 = vmatpush.msra.mxu0 %v2217
    %2373 = vmatpush.msra.mxu0 %v2210
    %2374 = vmatpush.msra.mxu0 %v2203
    %2375 = vmatpush.msra.mxu0 %v2196
    %2376 = vmatpush.msra.mxu0 %v2189
    %2377 = vmatpush.msra.mxu0 %v2182
    %2378 = vmatpush.msra.mxu0 %v2175
    %2379 = vmatmul.f32.gmra.mxu0 %v1838
    %v2380 = vpop.f32.mrf.mxu0
    %v2381 = vadd.f32 %v2361, %v2380
    %2382 = vdwg.mxu0
    %2383 = vmatpush.msra.mxu0 %v1945
    %2384 = vmatpush.msra.mxu0 %v1938
    %2385 = vmatpush.msra.mxu0 %v1931
    %2386 = vmatpush.msra.mxu0 %v1924
    %2387 = vmatpush.msra.mxu0 %v1917
    %2388 = vmatpush.msra.mxu0 %v1910
    %2389 = vmatpush.msra.mxu0 %v1903
    %2390 = vmatpush.msra.mxu0 %v1896
    %2391 = vmatpush.msra.mxu0 %v1889
    %2392 = vmatpush.msra.mxu0 %v1882
    %2393 = vmatpush.msra.mxu0 %v1875
    %2394 = vmatpush.msra.mxu0 %v1868
    %2395 = vmatpush.msra.mxu0 %v1861
    %2396 = vmatpush.msra.mxu0 %v1854
    %2397 = vmatpush.msra.mxu0 %v1847
    %2398 = vmatpush.msra.mxu0 %v1840
    %2399 = vmatmul.f32.gmra.mxu0 %v1835
    %v2400 = vpop.f32.mrf.mxu0
    %v2401 = vadd.f32 %v2290, %v2400
    %2402 = vdwg.mxu0
    %2403 = vmatpush.msra.mxu0 %v2057
    %2404 = vmatpush.msra.mxu0 %v2050
    %2405 = vmatpush.msra.mxu0 %v2043
    %2406 = vmatpush.msra.mxu0 %v2036
    %2407 = vmatpush.msra.mxu0 %v2029
    %2408 = vmatpush.msra.mxu0 %v2022
    %2409 = vmatpush.msra.mxu0 %v2015
    %2410 = vmatpush.msra.mxu0 %v2008
    %2411 = vmatpush.msra.mxu0 %v2001
    %2412 = vmatpush.msra.mxu0 %v1994
    %2413 = vmatpush.msra.mxu0 %v1987
    %2414 = vmatpush.msra.mxu0 %v1980
    %2415 = vmatpush.msra.mxu0 %v1973
    %2416 = vmatpush.msra.mxu0 %v1966
    %2417 = vmatpush.msra.mxu0 %v1959
    %2418 = vmatpush.msra.mxu0 %v1952
    %2419 = vmatmul.f32.gmra.mxu0 %v1836
    %v2420 = vpop.f32.mrf.mxu0
    %v2421 = vadd.f32 %v2401, %v2420
    %2422 = vdwg.mxu0
    %2423 = vmatpush.msra.mxu0 %v2169
    %2424 = vmatpush.msra.mxu0 %v2162
    %2425 = vmatpush.msra.mxu0 %v2155
    %2426 = vmatpush.msra.mxu0 %v2148
    %2427 = vmatpush.msra.mxu0 %v2141
    %2428 = vmatpush.msra.mxu0 %v2134
    %2429 = vmatpush.msra.mxu0 %v2127
    %2430 = vmatpush.msra.mxu0 %v2120
    %2431 = vmatpush.msra.mxu0 %v2113
    %2432 = vmatpush.msra.mxu0 %v2106
    %2433 = vmatpush.msra.mxu0 %v2099
    %2434 = vmatpush.msra.mxu0 %v2092
    %2435 = vmatpush.msra.mxu0 %v2085
    %2436 = vmatpush.msra.mxu0 %v2078
    %2437 = vmatpush.msra.mxu0 %v2071
    %2438 = vmatpush.msra.mxu0 %v2064
    %2439 = vmatmul.f32.gmra.mxu0 %v1837
    %v2440 = vpop.f32.mrf.mxu0
    %v2441 = vadd.f32 %v2421, %v2440
    %2442 = vdwg.mxu0
    %2443 = vmatpush.msra.mxu0 %v2281
    %2444 = vmatpush.msra.mxu0 %v2274
    %2445 = vmatpush.msra.mxu0 %v2267
    %2446 = vmatpush.msra.mxu0 %v2260
    %2447 = vmatpush.msra.mxu0 %v2253
    %2448 = vmatpush.msra.mxu0 %v2246
    %2449 = vmatpush.msra.mxu0 %v2239
    %2450 = vmatpush.msra.mxu0 %v2232
    %2451 = vmatpush.msra.mxu0 %v2225
    %2452 = vmatpush.msra.mxu0 %v2218
    %2453 = vmatpush.msra.mxu0 %v2211
    %2454 = vmatpush.msra.mxu0 %v2204
    %2455 = vmatpush.msra.mxu0 %v2197
    %2456 = vmatpush.msra.mxu0 %v2190
    %2457 = vmatpush.msra.mxu0 %v2183
    %2458 = vmatpush.msra.mxu0 %v2176
    %2459 = vmatmul.f32.gmra.mxu0 %v1838
    %v2460 = vpop.f32.mrf.mxu0
    %v2461 = vadd.f32 %v2441, %v2460
    %2462 = vdwg.mxu0
    %2463 = vmatpush.msra.mxu0 %v1946
    %2464 = vmatpush.msra.mxu0 %v1939
    %2465 = vmatpush.msra.mxu0 %v1932
    %2466 = vmatpush.msra.mxu0 %v1925
    %2467 = vmatpush.msra.mxu0 %v1918
    %2468 = vmatpush.msra.mxu0 %v1911
    %2469 = vmatpush.msra.mxu0 %v1904
    %2470 = vmatpush.msra.mxu0 %v1897
    %2471 = vmatpush.msra.mxu0 %v1890
    %2472 = vmatpush.msra.mxu0 %v1883
    %2473 = vmatpush.msra.mxu0 %v1876
    %2474 = vmatpush.msra.mxu0 %v1869
    %2475 = vmatpush.msra.mxu0 %v1862
    %2476 = vmatpush.msra.mxu0 %v1855
    %2477 = vmatpush.msra.mxu0 %v1848
    %2478 = vmatpush.msra.mxu0 %v1841
    %2479 = vmatmul.f32.gmra.mxu0 %v1835
    %v2480 = vpop.f32.mrf.mxu0
    %v2481 = vadd.f32 %v2291, %v2480
    %2482 = vdwg.mxu0
    %2483 = vmatpush.msra.mxu0 %v2058
    %2484 = vmatpush.msra.mxu0 %v2051
    %2485 = vmatpush.msra.mxu0 %v2044
    %2486 = vmatpush.msra.mxu0 %v2037
    %2487 = vmatpush.msra.mxu0 %v2030
    %2488 = vmatpush.msra.mxu0 %v2023
    %2489 = vmatpush.msra.mxu0 %v2016
    %2490 = vmatpush.msra.mxu0 %v2009
    %2491 = vmatpush.msra.mxu0 %v2002
    %2492 = vmatpush.msra.mxu0 %v1995
    %2493 = vmatpush.msra.mxu0 %v1988
    %2494 = vmatpush.msra.mxu0 %v1981
    %2495 = vmatpush.msra.mxu0 %v1974
    %2496 = vmatpush.msra.mxu0 %v1967
    %2497 = vmatpush.msra.mxu0 %v1960
    %2498 = vmatpush.msra.mxu0 %v1953
    %2499 = vmatmul.f32.gmra.mxu0 %v1836
    %v2500 = vpop.f32.mrf.mxu0
    %v2501 = vadd.f32 %v2481, %v2500
    %2502 = vdwg.mxu0
    %2503 = vmatpush.msra.mxu0 %v2170
    %2504 = vmatpush.msra.mxu0 %v2163
    %2505 = vmatpush.msra.mxu0 %v2156
    %2506 = vmatpush.msra.mxu0 %v2149
    %2507 = vmatpush.msra.mxu0 %v2142
    %2508 = vmatpush.msra.mxu0 %v2135
    %2509 = vmatpush.msra.mxu0 %v2128
    %2510 = vmatpush.msra.mxu0 %v2121
    %2511 = vmatpush.msra.mxu0 %v2114
    %2512 = vmatpush.msra.mxu0 %v2107
    %2513 = vmatpush.msra.mxu0 %v2100
    %2514 = vmatpush.msra.mxu0 %v2093
    %2515 = vmatpush.msra.mxu0 %v2086
    %2516 = vmatpush.msra.mxu0 %v2079
    %2517 = vmatpush.msra.mxu0 %v2072
    %2518 = vmatpush.msra.mxu0 %v2065
    %2519 = vmatmul.f32.gmra.mxu0 %v1837
    %v2520 = vpop.f32.mrf.mxu0
    %v2521 = vadd.f32 %v2501, %v2520
    %2522 = vdwg.mxu0
    %2523 = vmatpush.msra.mxu0 %v2282
    %2524 = vmatpush.msra.mxu0 %v2275
    %2525 = vmatpush.msra.mxu0 %v2268
    %2526 = vmatpush.msra.mxu0 %v2261
    %2527 = vmatpush.msra.mxu0 %v2254
    %2528 = vmatpush.msra.mxu0 %v2247
    %2529 = vmatpush.msra.mxu0 %v2240
    %2530 = vmatpush.msra.mxu0 %v2233
    %2531 = vmatpush.msra.mxu0 %v2226
    %2532 = vmatpush.msra.mxu0 %v2219
    %2533 = vmatpush.msra.mxu0 %v2212
    %2534 = vmatpush.msra.mxu0 %v2205
    %2535 = vmatpush.msra.mxu0 %v2198
    %2536 = vmatpush.msra.mxu0 %v2191
    %2537 = vmatpush.msra.mxu0 %v2184
    %2538 = vmatpush.msra.mxu0 %v2177
    %2539 = vmatmul.f32.gmra.mxu0 %v1838
    %v2540 = vpop.f32.mrf.mxu0
    %v2541 = vadd.f32 %v2521, %v2540
    %2542 = vdwg.mxu0
    %2543 = vmatpush.msra.mxu0 %v1947
    %2544 = vmatpush.msra.mxu0 %v1940
    %2545 = vmatpush.msra.mxu0 %v1933
    %2546 = vmatpush.msra.mxu0 %v1926
    %2547 = vmatpush.msra.mxu0 %v1919
    %2548 = vmatpush.msra.mxu0 %v1912
    %2549 = vmatpush.msra.mxu0 %v1905
    %2550 = vmatpush.msra.mxu0 %v1898
    %2551 = vmatpush.msra.mxu0 %v1891
    %2552 = vmatpush.msra.mxu0 %v1884
    %2553 = vmatpush.msra.mxu0 %v1877
    %2554 = vmatpush.msra.mxu0 %v1870
    %2555 = vmatpush.msra.mxu0 %v1863
    %2556 = vmatpush.msra.mxu0 %v1856
    %2557 = vmatpush.msra.mxu0 %v1849
    %2558 = vmatpush.msra.mxu0 %v1842
    %2559 = vmatmul.f32.gmra.mxu0 %v1835
    %v2560 = vpop.f32.mrf.mxu0
    %v2561 = vadd.f32 %v2292, %v2560
    %2562 = vdwg.mxu0
    %2563 = vmatpush.msra.mxu0 %v2059
    %2564 = vmatpush.msra.mxu0 %v2052
    %2565 = vmatpush.msra.mxu0 %v2045
    %2566 = vmatpush.msra.mxu0 %v2038
    %2567 = vmatpush.msra.mxu0 %v2031
    %2568 = vmatpush.msra.mxu0 %v2024
    %2569 = vmatpush.msra.mxu0 %v2017
    %2570 = vmatpush.msra.mxu0 %v2010
    %2571 = vmatpush.msra.mxu0 %v2003
    %2572 = vmatpush.msra.mxu0 %v1996
    %2573 = vmatpush.msra.mxu0 %v1989
    %2574 = vmatpush.msra.mxu0 %v1982
    %2575 = vmatpush.msra.mxu0 %v1975
    %2576 = vmatpush.msra.mxu0 %v1968
    %2577 = vmatpush.msra.mxu0 %v1961
    %2578 = vmatpush.msra.mxu0 %v1954
    %2579 = vmatmul.f32.gmra.mxu0 %v1836
    %v2580 = vpop.f32.mrf.mxu0
    %v2581 = vadd.f32 %v2561, %v2580
    %2582 = vdwg.mxu0
    %2583 = vmatpush.msra.mxu0 %v2171
    %2584 = vmatpush.msra.mxu0 %v2164
    %2585 = vmatpush.msra.mxu0 %v2157
    %2586 = vmatpush.msra.mxu0 %v2150
    %2587 = vmatpush.msra.mxu0 %v2143
    %2588 = vmatpush.msra.mxu0 %v2136
    %2589 = vmatpush.msra.mxu0 %v2129
    %2590 = vmatpush.msra.mxu0 %v2122
    %2591 = vmatpush.msra.mxu0 %v2115
    %2592 = vmatpush.msra.mxu0 %v2108
    %2593 = vmatpush.msra.mxu0 %v2101
    %2594 = vmatpush.msra.mxu0 %v2094
    %2595 = vmatpush.msra.mxu0 %v2087
    %2596 = vmatpush.msra.mxu0 %v2080
    %2597 = vmatpush.msra.mxu0 %v2073
    %2598 = vmatpush.msra.mxu0 %v2066
    %2599 = vmatmul.f32.gmra.mxu0 %v1837
    %v2600 = vpop.f32.mrf.mxu0
    %v2601 = vadd.f32 %v2581, %v2600
    %2602 = vdwg.mxu0
    %2603 = vmatpush.msra.mxu0 %v2283
    %2604 = vmatpush.msra.mxu0 %v2276
    %2605 = vmatpush.msra.mxu0 %v2269
    %2606 = vmatpush.msra.mxu0 %v2262
    %2607 = vmatpush.msra.mxu0 %v2255
    %2608 = vmatpush.msra.mxu0 %v2248
    %2609 = vmatpush.msra.mxu0 %v2241
    %2610 = vmatpush.msra.mxu0 %v2234
    %2611 = vmatpush.msra.mxu0 %v2227
    %2612 = vmatpush.msra.mxu0 %v2220
    %2613 = vmatpush.msra.mxu0 %v2213
    %2614 = vmatpush.msra.mxu0 %v2206
    %2615 = vmatpush.msra.mxu0 %v2199
    %2616 = vmatpush.msra.mxu0 %v2192
    %2617 = vmatpush.msra.mxu0 %v2185
    %2618 = vmatpush.msra.mxu0 %v2178
    %2619 = vmatmul.f32.gmra.mxu0 %v1838
    %v2620 = vpop.f32.mrf.mxu0
    %v2621 = vadd.f32 %v2601, %v2620
    %2622 = vdwg.mxu0
    %2623 = vmatpush.msra.mxu0 %v1948
    %2624 = vmatpush.msra.mxu0 %v1941
    %2625 = vmatpush.msra.mxu0 %v1934
    %2626 = vmatpush.msra.mxu0 %v1927
    %2627 = vmatpush.msra.mxu0 %v1920
    %2628 = vmatpush.msra.mxu0 %v1913
    %2629 = vmatpush.msra.mxu0 %v1906
    %2630 = vmatpush.msra.mxu0 %v1899
    %2631 = vmatpush.msra.mxu0 %v1892
    %2632 = vmatpush.msra.mxu0 %v1885
    %2633 = vmatpush.msra.mxu0 %v1878
    %2634 = vmatpush.msra.mxu0 %v1871
    %2635 = vmatpush.msra.mxu0 %v1864
    %2636 = vmatpush.msra.mxu0 %v1857
    %2637 = vmatpush.msra.mxu0 %v1850
    %2638 = vmatpush.msra.mxu0 %v1843
    %2639 = vmatmul.f32.gmra.mxu0 %v1835
    %v2640 = vpop.f32.mrf.mxu0
    %v2641 = vadd.f32 %v2293, %v2640
    %2642 = vdwg.mxu0
    %2643 = vmatpush.msra.mxu0 %v2060
    %2644 = vmatpush.msra.mxu0 %v2053
    %2645 = vmatpush.msra.mxu0 %v2046
    %2646 = vmatpush.msra.mxu0 %v2039
    %2647 = vmatpush.msra.mxu0 %v2032
    %2648 = vmatpush.msra.mxu0 %v2025
    %2649 = vmatpush.msra.mxu0 %v2018
    %2650 = vmatpush.msra.mxu0 %v2011
    %2651 = vmatpush.msra.mxu0 %v2004
    %2652 = vmatpush.msra.mxu0 %v1997
    %2653 = vmatpush.msra.mxu0 %v1990
    %2654 = vmatpush.msra.mxu0 %v1983
    %2655 = vmatpush.msra.mxu0 %v1976
    %2656 = vmatpush.msra.mxu0 %v1969
    %2657 = vmatpush.msra.mxu0 %v1962
    %2658 = vmatpush.msra.mxu0 %v1955
    %2659 = vmatmul.f32.gmra.mxu0 %v1836
    %v2660 = vpop.f32.mrf.mxu0
    %v2661 = vadd.f32 %v2641, %v2660
    %2662 = vdwg.mxu0
    %2663 = vmatpush.msra.mxu0 %v2172
    %2664 = vmatpush.msra.mxu0 %v2165
    %2665 = vmatpush.msra.mxu0 %v2158
    %2666 = vmatpush.msra.mxu0 %v2151
    %2667 = vmatpush.msra.mxu0 %v2144
    %2668 = vmatpush.msra.mxu0 %v2137
    %2669 = vmatpush.msra.mxu0 %v2130
    %2670 = vmatpush.msra.mxu0 %v2123
    %2671 = vmatpush.msra.mxu0 %v2116
    %2672 = vmatpush.msra.mxu0 %v2109
    %2673 = vmatpush.msra.mxu0 %v2102
    %2674 = vmatpush.msra.mxu0 %v2095
    %2675 = vmatpush.msra.mxu0 %v2088
    %2676 = vmatpush.msra.mxu0 %v2081
    %2677 = vmatpush.msra.mxu0 %v2074
    %2678 = vmatpush.msra.mxu0 %v2067
    %2679 = vmatmul.f32.gmra.mxu0 %v1837
    %v2680 = vpop.f32.mrf.mxu0
    %v2681 = vadd.f32 %v2661, %v2680
    %2682 = vdwg.mxu0
    %2683 = vmatpush.msra.mxu0 %v2284
    %2684 = vmatpush.msra.mxu0 %v2277
    %2685 = vmatpush.msra.mxu0 %v2270
    %2686 = vmatpush.msra.mxu0 %v2263
    %2687 = vmatpush.msra.mxu0 %v2256
    %2688 = vmatpush.msra.mxu0 %v2249
    %2689 = vmatpush.msra.mxu0 %v2242
    %2690 = vmatpush.msra.mxu0 %v2235
    %2691 = vmatpush.msra.mxu0 %v2228
    %2692 = vmatpush.msra.mxu0 %v2221
    %2693 = vmatpush.msra.mxu0 %v2214
    %2694 = vmatpush.msra.mxu0 %v2207
    %2695 = vmatpush.msra.mxu0 %v2200
    %2696 = vmatpush.msra.mxu0 %v2193
    %2697 = vmatpush.msra.mxu0 %v2186
    %2698 = vmatpush.msra.mxu0 %v2179
    %2699 = vmatmul.f32.gmra.mxu0 %v1838
    %v2700 = vpop.f32.mrf.mxu0
    %v2701 = vadd.f32 %v2681, %v2700
    %2702 = vdwg.mxu0
    %2703 = vmatpush.msra.mxu0 %v1949
    %2704 = vmatpush.msra.mxu0 %v1942
    %2705 = vmatpush.msra.mxu0 %v1935
    %2706 = vmatpush.msra.mxu0 %v1928
    %2707 = vmatpush.msra.mxu0 %v1921
    %2708 = vmatpush.msra.mxu0 %v1914
    %2709 = vmatpush.msra.mxu0 %v1907
    %2710 = vmatpush.msra.mxu0 %v1900
    %2711 = vmatpush.msra.mxu0 %v1893
    %2712 = vmatpush.msra.mxu0 %v1886
    %2713 = vmatpush.msra.mxu0 %v1879
    %2714 = vmatpush.msra.mxu0 %v1872
    %2715 = vmatpush.msra.mxu0 %v1865
    %2716 = vmatpush.msra.mxu0 %v1858
    %2717 = vmatpush.msra.mxu0 %v1851
    %2718 = vmatpush.msra.mxu0 %v1844
    %2719 = vmatmul.f32.gmra.mxu0 %v1835
    %v2720 = vpop.f32.mrf.mxu0
    %v2721 = vadd.f32 %v2294, %v2720
    %2722 = vdwg.mxu0
    %2723 = vmatpush.msra.mxu0 %v2061
    %2724 = vmatpush.msra.mxu0 %v2054
    %2725 = vmatpush.msra.mxu0 %v2047
    %2726 = vmatpush.msra.mxu0 %v2040
    %2727 = vmatpush.msra.mxu0 %v2033
    %2728 = vmatpush.msra.mxu0 %v2026
    %2729 = vmatpush.msra.mxu0 %v2019
    %2730 = vmatpush.msra.mxu0 %v2012
    %2731 = vmatpush.msra.mxu0 %v2005
    %2732 = vmatpush.msra.mxu0 %v1998
    %2733 = vmatpush.msra.mxu0 %v1991
    %2734 = vmatpush.msra.mxu0 %v1984
    %2735 = vmatpush.msra.mxu0 %v1977
    %2736 = vmatpush.msra.mxu0 %v1970
    %2737 = vmatpush.msra.mxu0 %v1963
    %2738 = vmatpush.msra.mxu0 %v1956
    %2739 = vmatmul.f32.gmra.mxu0 %v1836
    %v2740 = vpop.f32.mrf.mxu0
    %v2741 = vadd.f32 %v2721, %v2740
    %2742 = vdwg.mxu0
    %2743 = vmatpush.msra.mxu0 %v2173
    %2744 = vmatpush.msra.mxu0 %v2166
    %2745 = vmatpush.msra.mxu0 %v2159
    %2746 = vmatpush.msra.mxu0 %v2152
    %2747 = vmatpush.msra.mxu0 %v2145
    %2748 = vmatpush.msra.mxu0 %v2138
    %2749 = vmatpush.msra.mxu0 %v2131
    %2750 = vmatpush.msra.mxu0 %v2124
    %2751 = vmatpush.msra.mxu0 %v2117
    %2752 = vmatpush.msra.mxu0 %v2110
    %2753 = vmatpush.msra.mxu0 %v2103
    %2754 = vmatpush.msra.mxu0 %v2096
    %2755 = vmatpush.msra.mxu0 %v2089
    %2756 = vmatpush.msra.mxu0 %v2082
    %2757 = vmatpush.msra.mxu0 %v2075
    %2758 = vmatpush.msra.mxu0 %v2068
    %2759 = vmatmul.f32.gmra.mxu0 %v1837
    %v2760 = vpop.f32.mrf.mxu0
    %v2761 = vadd.f32 %v2741, %v2760
    %2762 = vdwg.mxu0
    %2763 = vmatpush.msra.mxu0 %v2285
    %2764 = vmatpush.msra.mxu0 %v2278
    %2765 = vmatpush.msra.mxu0 %v2271
    %2766 = vmatpush.msra.mxu0 %v2264
    %2767 = vmatpush.msra.mxu0 %v2257
    %2768 = vmatpush.msra.mxu0 %v2250
    %2769 = vmatpush.msra.mxu0 %v2243
    %2770 = vmatpush.msra.mxu0 %v2236
    %2771 = vmatpush.msra.mxu0 %v2229
    %2772 = vmatpush.msra.mxu0 %v2222
    %2773 = vmatpush.msra.mxu0 %v2215
    %2774 = vmatpush.msra.mxu0 %v2208
    %2775 = vmatpush.msra.mxu0 %v2201
    %2776 = vmatpush.msra.mxu0 %v2194
    %2777 = vmatpush.msra.mxu0 %v2187
    %2778 = vmatpush.msra.mxu0 %v2180
    %2779 = vmatmul.f32.gmra.mxu0 %v1838
    %v2780 = vpop.f32.mrf.mxu0
    %v2781 = vadd.f32 %v2761, %v2780
    %2782 = vdwg.mxu0
    %2783 = vmatpush.msra.mxu0 %v1950
    %2784 = vmatpush.msra.mxu0 %v1943
    %2785 = vmatpush.msra.mxu0 %v1936
    %2786 = vmatpush.msra.mxu0 %v1929
    %2787 = vmatpush.msra.mxu0 %v1922
    %2788 = vmatpush.msra.mxu0 %v1915
    %2789 = vmatpush.msra.mxu0 %v1908
    %2790 = vmatpush.msra.mxu0 %v1901
    %2791 = vmatpush.msra.mxu0 %v1894
    %2792 = vmatpush.msra.mxu0 %v1887
    %2793 = vmatpush.msra.mxu0 %v1880
    %2794 = vmatpush.msra.mxu0 %v1873
    %2795 = vmatpush.msra.mxu0 %v1866
    %2796 = vmatpush.msra.mxu0 %v1859
    %2797 = vmatpush.msra.mxu0 %v1852
    %2798 = vmatpush.msra.mxu0 %v1845
    %2799 = vmatmul.f32.gmra.mxu0 %v1835
    %v2800 = vpop.f32.mrf.mxu0
    %v2801 = vadd.f32 %v2295, %v2800
    %2802 = vdwg.mxu0
    %2803 = vmatpush.msra.mxu0 %v2062
    %2804 = vmatpush.msra.mxu0 %v2055
    %2805 = vmatpush.msra.mxu0 %v2048
    %2806 = vmatpush.msra.mxu0 %v2041
    %2807 = vmatpush.msra.mxu0 %v2034
    %2808 = vmatpush.msra.mxu0 %v2027
    %2809 = vmatpush.msra.mxu0 %v2020
    %2810 = vmatpush.msra.mxu0 %v2013
    %2811 = vmatpush.msra.mxu0 %v2006
    %2812 = vmatpush.msra.mxu0 %v1999
    %2813 = vmatpush.msra.mxu0 %v1992
    %2814 = vmatpush.msra.mxu0 %v1985
    %2815 = vmatpush.msra.mxu0 %v1978
    %2816 = vmatpush.msra.mxu0 %v1971
    %2817 = vmatpush.msra.mxu0 %v1964
    %2818 = vmatpush.msra.mxu0 %v1957
    %2819 = vmatmul.f32.gmra.mxu0 %v1836
    %v2820 = vpop.f32.mrf.mxu0
    %v2821 = vadd.f32 %v2801, %v2820
    %2822 = vdwg.mxu0
    %2823 = vmatpush.msra.mxu0 %v2174
    %2824 = vmatpush.msra.mxu0 %v2167
    %2825 = vmatpush.msra.mxu0 %v2160
    %2826 = vmatpush.msra.mxu0 %v2153
    %2827 = vmatpush.msra.mxu0 %v2146
    %2828 = vmatpush.msra.mxu0 %v2139
    %2829 = vmatpush.msra.mxu0 %v2132
    %2830 = vmatpush.msra.mxu0 %v2125
    %2831 = vmatpush.msra.mxu0 %v2118
    %2832 = vmatpush.msra.mxu0 %v2111
    %2833 = vmatpush.msra.mxu0 %v2104
    %2834 = vmatpush.msra.mxu0 %v2097
    %2835 = vmatpush.msra.mxu0 %v2090
    %2836 = vmatpush.msra.mxu0 %v2083
    %2837 = vmatpush.msra.mxu0 %v2076
    %2838 = vmatpush.msra.mxu0 %v2069
    %2839 = vmatmul.f32.gmra.mxu0 %v1837
    %v2840 = vpop.f32.mrf.mxu0
    %v2841 = vadd.f32 %v2821, %v2840
    %2842 = vdwg.mxu0
    %2843 = vmatpush.msra.mxu0 %v2286
    %2844 = vmatpush.msra.mxu0 %v2279
    %2845 = vmatpush.msra.mxu0 %v2272
    %2846 = vmatpush.msra.mxu0 %v2265
    %2847 = vmatpush.msra.mxu0 %v2258
    %2848 = vmatpush.msra.mxu0 %v2251
    %2849 = vmatpush.msra.mxu0 %v2244
    %2850 = vmatpush.msra.mxu0 %v2237
    %2851 = vmatpush.msra.mxu0 %v2230
    %2852 = vmatpush.msra.mxu0 %v2223
    %2853 = vmatpush.msra.mxu0 %v2216
    %2854 = vmatpush.msra.mxu0 %v2209
    %2855 = vmatpush.msra.mxu0 %v2202
    %2856 = vmatpush.msra.mxu0 %v2195
    %2857 = vmatpush.msra.mxu0 %v2188
    %2858 = vmatpush.msra.mxu0 %v2181
    %2859 = vmatmul.f32.gmra.mxu0 %v1838
    %v2860 = vpop.f32.mrf.mxu0
    %v2861 = vadd.f32 %v2841, %v2860
    %2862 = vdwg.mxu0
    %v2863 = vmul.f32 %v2381, %v2381
    %v2864 = vmul.f32 %v2461, %v2461
    %v2865 = vmul.f32 %v2541, %v2541
    %v2866 = vmul.f32 %v2621, %v2621
    %v2867 = vmul.f32 %v2701, %v2701
    %v2868 = vmul.f32 %v2781, %v2781
    %v2869 = vmul.f32 %v2861, %v2861
    %v2870 = vadd.f32 %v2863, %v2864
    %v2871 = vadd.f32 %v2870, %v2865
    %v2872 = vadd.f32 %v2871, %v2866
    %v2873 = vadd.f32 %v2872, %v2867
    %v2874 = vadd.f32 %v2873, %v2868
    %v2875 = vsel %vm67, %v2869, 0.0
    %v2876 = vadd.f32 %v2874, %v2875
    %2877 = vadd.xlane.f32.xlu0 %v2876
    %v2878 = vpop.xlane.xlu0 %2877
    %v2879 = vrsqrt.pop %v2878
    %v2880 = vmul.f32 %v2879, %v2878
    %v2881 = vmul.f32 %v2880, %v2879
    %v2882 = vmul.f32 0.5, %v2881
    %v2883 = vsub.f32 1.5, %v2882
    %v2884 = vmul.f32 %v2879, %v2883
    %vm2885 = vweird.f32 %v2878
    %vm2886 = vweird.f32 %v2879
    %vm2887 = vmor %vm2885, %vm2886
    %v2888 = vsel %vm2887, %v2879, %v2884
    %v2889 = vmul.f32 %v2381, %v2888
    %v2890 = vmul.f32 %v2461, %v2888
    %v2891 = vmul.f32 %v2541, %v2888
    %v2892 = vmul.f32 %v2621, %v2888
    %v2893 = vmul.f32 %v2701, %v2888
    %v2894 = vmul.f32 %v2781, %v2888
    %v2895 = vmul.f32 %v2861, %v2888
    %v2896 = vmul.f32 %v2889, %v83
    %v2897 = vmul.f32 %v2890, %v83
    %v2898 = vmul.f32 %v2891, %v83
    %v2899 = vmul.f32 %v2892, %v83
    %v2900 = vmul.f32 %v2893, %v83
    %v2901 = vmul.f32 %v2894, %v83
    %v2902 = vmul.f32 %v2895, %v83
    %2903 = vst [vmem:[#allocation4] sm:$0xff] %v2896
    %2904 = vst [vmem:[#allocation4 + $0x8] sm:$0xff] %v2897
    %2905 = vst [vmem:[#allocation4 + $0x10] sm:$0xff] %v2898
    %2906 = vst [vmem:[#allocation4 + $0x18] sm:$0xff] %v2899
    %2907 = vst [vmem:[#allocation4 + $0x20] sm:$0xff] %v2900
    %2908 = vst [vmem:[#allocation4 + $0x28] sm:$0xff] %v2901
    %2909 = vst.msk [vmem:[#allocation4 + $0x30] sm:$0xff] %vm67, %v2902
    // Predicated region
    $region54: #{mnist_ae_forward.1} parent=1 // pred_check
      _
    $region55: #{mnist_ae_forward.1} parent=1 // pred_check_branch
      %2911 = sbr.rel (0) target = $region57
    $region56: #{mnist_ae_forward.1} parent=1 // pred_region
      %2913 = vsyncadd [#allocation3], 0
      %s2915 = sshll.u32 [#allocation2], 4
      %s2916 = int_to_ptr.vmem [resolvable:$true] %s2915
      %s2917 = sshll.u32 %s13, 4
      %s2918 = int_to_ptr.hbm [resolvable:$true] %s2917
      %2920 = dma.vmem_to_hbm [thread:$0]  %s2916, 128, %s2918, [#allocation3]
    $region57: #{mnist_ae_forward.1} parent=1 // pred_fallthru
      _
    // Predicated region
    $region58: #{mnist_ae_forward.1} parent=1 // pred_check
      _
    $region59: #{mnist_ae_forward.1} parent=1 // pred_check_branch
      %2922 = sbr.rel (0) target = $region61
    $region60: #{mnist_ae_forward.1} parent=1 // pred_region
      %2924 = vsyncadd [#allocation5], 0
      %s2926 = sshll.u32 [#allocation4], 4
      %s2927 = int_to_ptr.vmem [resolvable:$true] %s2926
      %s2928 = sshll.u32 %s14, 4
      %s2929 = int_to_ptr.hbm [resolvable:$true] %s2928
      %2931 = dma.vmem_to_hbm [thread:$0]  %s2927, 896, %s2929, [#allocation5]
    $region61: #{mnist_ae_forward.1} parent=1 // pred_fallthru
      _
    // Predicated region
    $region62: #{mnist_ae_forward.1} parent=1 // pred_check
      _
    $region63: #{mnist_ae_forward.1} parent=1 // pred_check_branch
      %2933 = sbr.rel (0) target = $region65
    $region64: #{mnist_ae_forward.1} parent=1 // pred_region
      %2935 = dma.done [#allocation3], 128
    $region65: #{mnist_ae_forward.1} parent=1 // pred_fallthru
      _
    // Predicated region
    $region66: #{mnist_ae_forward.1} parent=1 // pred_check
      _
    $region67: #{mnist_ae_forward.1} parent=1 // pred_check_branch
      %2937 = sbr.rel (0) target = $region69
    $region68: #{mnist_ae_forward.1} parent=1 // pred_region
      %2939 = dma.done [#allocation5], 896
    $region69: #{mnist_ae_forward.1} parent=1 // pred_fallthru
      _
    %2940 = vsyncpa [#allocation3], 1
    %2941 = vsyncpa [#allocation5], 1

</llo_original>
